<compile_context>
chip_gen: v7x
topology: tpu7x:2x2x1
jax: 0.10.0
libtpu: 0.0.40
codegen_flags: <defaults>
</compile_context>

<pallas_src>
import functools

import jax
import jax.numpy as jnp
import numpy as np
from jax import lax
from jax.experimental import pallas as pl
from jax.experimental.pallas import tpu as pltpu


# ---------------------------------------------------------------------------
# Pallas kernel: one tile of `bt` batch elements per grid step.
# Row layout of the stacked slab: rows [0, n1) = premise tokens (batch-major),
# rows [n1, n1+n2) = hypothesis tokens (batch-major).
# ---------------------------------------------------------------------------
def _decomp_attention_kernel(
    ids_ref, tw_ref, posw_ref, bias_qk_ref, bias_kq_ref,
    f_w1_ref, f_b1_ref, f_w2_ref, f_b2_ref,
    g_w1a_ref, g_w1b_ref, g_b1_ref, g_w2_ref, g_b2_ref,
    h_w1a_ref, h_w1b_ref, h_b1_ref, h_w2_ref, h_b2_ref,
    out_w_ref, out_b_ref,
    y_ref,
    *, bt, l1, l2, vpad,
):
    f32 = jnp.float32
    n1 = bt * l1
    n2 = bt * l2
    n = n1 + n2

    def leaky(x):
        # nn.LeakyReLU() default negative_slope = 0.01
        return jnp.where(x > 0, x, 0.01 * x)

    def recip(x):
        # EUP approx reciprocal + one Newton step (restores ~f32 accuracy).
        r = pl.reciprocal(x, approx=True)
        return r * (2.0 - x * r)

    def softmax_last(s):
        m = jnp.max(s, axis=-1, keepdims=True)
        p = jnp.exp(s - m)
        return p * recip(jnp.sum(p, axis=-1, keepdims=True))

    # ---- Encoder: fused one-hot embedding gather + input projection --------
    # ab = onehot @ (scale*emb_tbl @ w_in) + (pos @ w_in)
    ids = ids_ref[...]                                             # (n, 1) int32
    onehot = (ids == lax.broadcasted_iota(jnp.int32, (n, vpad), 1)).astype(f32)
    ab = (jnp.dot(onehot, tw_ref[...], preferred_element_type=f32)
          + posw_ref[...])                                         # (n, H)

    # ---- Attend: shared f MLP, one pass over the stacked rows --------------
    t = leaky(jnp.dot(ab, f_w1_ref[...], preferred_element_type=f32) + f_b1_ref[...])
    fab = leaky(jnp.dot(t, f_w2_ref[...], preferred_element_type=f32) + f_b2_ref[...])

    A, B = ab[:n1], ab[n1:]                                        # (n1,H), (n2,H)
    f_A, f_B = fab[:n1], fab[n1:]

    # Block-diagonal attention: two full-width (n1,n2)/(n2,n1) score matmuls
    # (contract on the last dims -> MXU-native X @ Y^T, no transposes), plus a
    # precomputed additive block mask (-1e30 off-block) before the softmax.
    dn_nt = (((1,), (1,)), ((), ()))
    e = lax.dot_general(f_A, f_B, dn_nt, preferred_element_type=f32) + bias_qk_ref[...]
    et = lax.dot_general(f_B, f_A, dn_nt, preferred_element_type=f32) + bias_kq_ref[...]

    beta = jnp.dot(softmax_last(e), B, preferred_element_type=f32)   # (n1, H)
    alpha = jnp.dot(softmax_last(et), A, preferred_element_type=f32)  # (n2, H)

    # ---- Compare: shared g MLP, split first-layer weights (no lane concat) --
    ba = jnp.concatenate([beta, alpha], axis=0)                    # (n, H)
    g1 = leaky(jnp.dot(ab, g_w1a_ref[...], preferred_element_type=f32)
               + jnp.dot(ba, g_w1b_ref[...], preferred_element_type=f32)
               + g_b1_ref[...])
    v = leaky(jnp.dot(g1, g_w2_ref[...], preferred_element_type=f32) + g_b2_ref[...])

    # ---- Aggregate: per-batch token sums + h MLP with split weights ---------
    v_A = jnp.sum(v[:n1].reshape(bt, l1, -1), axis=1)              # (bt, H)
    v_B = jnp.sum(v[n1:].reshape(bt, l2, -1), axis=1)              # (bt, H)

    h1 = leaky(jnp.dot(v_A, h_w1a_ref[...], preferred_element_type=f32)
               + jnp.dot(v_B, h_w1b_ref[...], preferred_element_type=f32)
               + h_b1_ref[...])
    h2 = leaky(jnp.dot(h1, h_w2_ref[...], preferred_element_type=f32) + h_b2_ref[...])

    # Lane-dense (H -> 128) padded classifier output (dense vst on v5e).
    y_ref[...] = (jnp.dot(h2, out_w_ref[...], preferred_element_type=f32)
                  + out_b_ref[...])                                # (bt, 128)


# ---------------------------------------------------------------------------
# Wrapper: only int32 ids + small constant tables cross HBM; everything else
# (gather, encoder, attend, compare, aggregate) runs inside the kernel.
# ---------------------------------------------------------------------------
def decomp_attention_pos(premises, hypotheses, params, *, b_tile=None):
    """premises/hypotheses: int32 (batch, L). Returns (batch, num_outputs) f32."""
    emb_tbl = params["embedding"]          # (vocab, E)
    pos_tbl = params["pos_embedding"]      # (max_len, E)
    w_in = params["w_in"]                  # (E, H)
    vocab, E = emb_tbl.shape
    H = w_in.shape[1]
    O = params["out_w"].shape[1]
    O_PAD = 128                            # lane-dense output width
    scale = jnp.sqrt(jnp.float32(E))

    bsz, L1 = premises.shape
    _, L2 = hypotheses.shape

    # Batch tile: keep bt*L ~= 128 so the (n1, n2) score slab stays ~128x128
    # f32 (16 vregs) — vreg pressure, not VMEM, limits this scheme.
    if b_tile is None:
        b_tile = max(1, min(bsz, 128 // max(1, max(L1, L2))))
    bsz_pad = pl.cdiv(bsz, b_tile) * b_tile
    num_tiles = bsz_pad // b_tile
    n1, n2 = b_tile * L1, b_tile * L2
    n = n1 + n2

    if bsz_pad != bsz:
        pad = bsz_pad - bsz
        premises = jnp.pad(premises, ((0, pad), (0, 0)))
        hypotheses = jnp.pad(hypotheses, ((0, pad), (0, 0)))

    # Token ids per tile: premise rows first, then hypothesis rows, batch-major.
    # Shaped (num_tiles*n, 1) so each block arrives sublane-oriented for the
    # in-kernel one-hot gather (no in-kernel relayout).
    prem_r = premises.reshape(num_tiles, n1)
    hyp_r = hypotheses.reshape(num_tiles, n2)
    ids = jnp.concatenate([prem_r, hyp_r], axis=1).reshape(num_tiles * n, 1)
    ids = ids.astype(jnp.int32)

    # Fold sqrt(E) scale + input_linear into the gather table; precompute the
    # positional contribution once (same for every tile).
    VPAD = max(128, ((vocab + 7) // 8) * 8)
    tw = jnp.zeros((VPAD, H), jnp.float32).at[:vocab].set(
        ((emb_tbl * scale) @ w_in).astype(jnp.float32))
    pos_rows = jnp.concatenate(
        [jnp.tile(pos_tbl[:L1], (b_tile, 1)), jnp.tile(pos_tbl[:L2], (b_tile, 1))],
        axis=0)
    posw = (pos_rows @ w_in).astype(jnp.float32)                   # (n, H)

    # Static block-diagonal additive masks (0 on-block, -1e30 off-block).
    qb = np.arange(n1)[:, None] // L1
    kb = np.arange(n2)[None, :] // L2
    bias_qk_np = np.where(qb == kb, 0.0, -1e30).astype(np.float32)  # (n1, n2)
    bias_qk = jnp.asarray(bias_qk_np)
    bias_kq = jnp.asarray(np.ascontiguousarray(bias_qk_np.T))       # (n2, n1)

    # Split the concat-consuming first-layer weights; pad the classifier to a
    # 128-lane-dense output.
    g_w1a, g_w1b = params["g_w1"][:H], params["g_w1"][H:]
    h_w1a, h_w1b = params["h_w1"][:H], params["h_w1"][H:]
    out_w_pad = jnp.zeros((H, O_PAD), jnp.float32).at[:, :O].set(params["out_w"])
    out_b_pad = jnp.zeros((1, O_PAD), jnp.float32).at[:, :O].set(params["out_b"])

    weights = [
        tw, posw, bias_qk, bias_kq,
        params["f_w1"], params["f_b1"], params["f_w2"], params["f_b2"],
        g_w1a, g_w1b, params["g_b1"], params["g_w2"], params["g_b2"],
        h_w1a, h_w1b, params["h_b1"], params["h_w2"], params["h_b2"],
        out_w_pad, out_b_pad,
    ]

    def full_spec(arr):
        nd = arr.ndim
        return pl.BlockSpec(arr.shape, lambda b: (0,) * nd)

    in_specs = [pl.BlockSpec((n, 1), lambda b: (b, 0))] + [full_spec(w) for w in weights]

    kernel = functools.partial(_decomp_attention_kernel,
                               bt=b_tile, l1=L1, l2=L2, vpad=VPAD)

    out = pl.pallas_call(
        kernel,
        out_shape=jax.ShapeDtypeStruct((bsz_pad, O_PAD), jnp.float32),
        grid=(num_tiles,),
        in_specs=in_specs,
        out_specs=pl.BlockSpec((b_tile, O_PAD), lambda b: (b, 0)),
        compiler_params=pltpu.CompilerParams(
            dimension_semantics=("parallel",),   # shards batch tiles across v7x TCs
            vmem_limit_bytes=32 * 1024 * 1024,   # tiny working set; fits all gens
        ),
    )(ids, *weights)
    return out[:bsz, :O]


# ---------------------------------------------------------------------------
# Pure-JAX reference (mirrors the PyTorch forward in eval mode).
# ---------------------------------------------------------------------------
def reference(premises, hypotheses, params):
    emb_tbl = params["embedding"]
    pos_tbl = params["pos_embedding"]
    E = emb_tbl.shape[1]
    scale = jnp.sqrt(jnp.float32(E))
    L1, L2 = premises.shape[1], hypotheses.shape[1]
    sent1 = emb_tbl[premises] * scale + pos_tbl[jnp.arange(L1)][None]
    sent2 = emb_tbl[hypotheses] * scale + pos_tbl[jnp.arange(L2)][None]

    def leaky(x):
        return jnp.where(x > 0, x, 0.01 * x)

    def mlp(x, w1, b1, w2, b2):
        return leaky(leaky(x @ w1 + b1) @ w2 + b2)

    A = sent1 @ params["w_in"]
    B = sent2 @ params["w_in"]
    f_A = mlp(A, params["f_w1"], params["f_b1"], params["f_w2"], params["f_b2"])
    f_B = mlp(B, params["f_w1"], params["f_b1"], params["f_w2"], params["f_b2"])
    e = jnp.einsum("bik,bjk->bij", f_A, f_B)
    beta = jnp.einsum("bij,bjk->bik", jax.nn.softmax(e, axis=-1), B)
    alpha = jnp.einsum("bji,bjk->bik", jax.nn.softmax(e, axis=1), A)
    V_A = mlp(jnp.concatenate([A, beta], -1),
              params["g_w1"], params["g_b1"], params["g_w2"], params["g_b2"])
    V_B = mlp(jnp.concatenate([B, alpha], -1),
              params["g_w1"], params["g_b1"], params["g_w2"], params["g_b2"])
    cat = jnp.concatenate([V_A.sum(1), V_B.sum(1)], -1)
    h = mlp(cat, params["h_w1"], params["h_b1"], params["h_w2"], params["h_b2"])
    return h @ params["out_w"] + params["out_b"]


# ---------------------------------------------------------------------------
# Deterministic parameter construction (synthetic weights).
# ---------------------------------------------------------------------------
def make_params(key, vocab, embed_dim, hidden, num_outputs, max_length=100):
    keys = jax.random.split(key, 20)

    def w(k, shape, s=0.1):
        return jax.random.normal(k, shape, jnp.float32) * s

    return {
        "embedding": w(keys[0], (vocab, embed_dim), 0.5),
        "pos_embedding": w(keys[1], (max_length, embed_dim), 0.5),
        "w_in": w(keys[2], (embed_dim, hidden)),
        # Attend.f : MLP(hidden -> hidden)
        "f_w1": w(keys[3], (hidden, hidden)), "f_b1": w(keys[4], (1, hidden), 0.01),
        "f_w2": w(keys[5], (hidden, hidden)), "f_b2": w(keys[6], (1, hidden), 0.01),
        # Compare.g : MLP(2*hidden -> hidden)
        "g_w1": w(keys[7], (2 * hidden, hidden)), "g_b1": w(keys[8], (1, hidden), 0.01),
        "g_w2": w(keys[9], (hidden, hidden)), "g_b2": w(keys[10], (1, hidden), 0.01),
        # Aggregate.h : MLP(2*hidden -> hidden)
        "h_w1": w(keys[11], (2 * hidden, hidden)), "h_b1": w(keys[12], (1, hidden), 0.01),
        "h_w2": w(keys[13], (hidden, hidden)), "h_b2": w(keys[14], (1, hidden), 0.01),
        # Aggregate.linear : hidden -> num_outputs
        "out_w": w(keys[15], (hidden, num_outputs)),
        "out_b": w(keys[16], (1, num_outputs), 0.01),
    }


if __name__ == "__main__":
    key = jax.random.PRNGKey(0)
    k_param, k_p, k_h = jax.random.split(key, 3)

    vocab = 50
    embed_dim = 32     # embedding_size
    hidden = 32        # num_hiddens
    num_outputs = 3
    batch = 32         # 2 batch tiles of 16 -> even, parallel 2-step grid
    L1, L2 = 8, 8

    params = make_params(k_param, vocab, embed_dim, hidden, num_outputs)

    premises = jax.random.randint(k_p, (batch, L1), 0, vocab, dtype=jnp.int32)
    hypotheses = jax.random.randint(k_h, (batch, L2), 0, vocab, dtype=jnp.int32)

    y = decomp_attention_pos(premises, hypotheses, params)
    y = jax.block_until_ready(y)

    y_ref = reference(premises, hypotheses, params)
    np.testing.assert_allclose(np.asarray(y), np.asarray(y_ref), rtol=1e-4, atol=1e-4)

    print("KERNEL_OK")
</pallas_src>

<mosaic_0001>
module attributes {stable_mosaic.version = 11 : i64} {
  func.func @_decomp_attention_kernel(%arg0: i32, %arg1: memref<256x1xi32, #tpu.memory_space<vmem>>, %arg2: memref<128x32xf32, #tpu.memory_space<vmem>>, %arg3: memref<256x32xf32, #tpu.memory_space<vmem>>, %arg4: memref<128x128xf32, #tpu.memory_space<vmem>>, %arg5: memref<128x128xf32, #tpu.memory_space<vmem>>, %arg6: memref<32x32xf32, #tpu.memory_space<vmem>>, %arg7: memref<1x32xf32, #tpu.memory_space<vmem>>, %arg8: memref<32x32xf32, #tpu.memory_space<vmem>>, %arg9: memref<1x32xf32, #tpu.memory_space<vmem>>, %arg10: memref<32x32xf32, #tpu.memory_space<vmem>>, %arg11: memref<32x32xf32, #tpu.memory_space<vmem>>, %arg12: memref<1x32xf32, #tpu.memory_space<vmem>>, %arg13: memref<32x32xf32, #tpu.memory_space<vmem>>, %arg14: memref<1x32xf32, #tpu.memory_space<vmem>>, %arg15: memref<32x32xf32, #tpu.memory_space<vmem>>, %arg16: memref<32x32xf32, #tpu.memory_space<vmem>>, %arg17: memref<1x32xf32, #tpu.memory_space<vmem>>, %arg18: memref<32x32xf32, #tpu.memory_space<vmem>>, %arg19: memref<1x32xf32, #tpu.memory_space<vmem>>, %arg20: memref<32x128xf32, #tpu.memory_space<vmem>>, %arg21: memref<1x128xf32, #tpu.memory_space<vmem>>, %arg22: memref<16x128xf32, #tpu.memory_space<vmem>>) attributes {dimension_semantics = [#tpu.dimension_semantics<parallel>], iteration_bounds = array<i64: 2>, scalar_prefetch = 0 : i64, scratch_operands = 0 : i64, tpu.core_type = #tpu.core_type<tc>, window_params = [{transform_indices = @transform_0, window_bounds = array<i64: 256, 1>}, {pipeline_mode = #tpu.pipeline_mode<synchronous>, transform_indices = @transform_1, window_bounds = array<i64: 128, 32>}, {pipeline_mode = #tpu.pipeline_mode<synchronous>, transform_indices = @transform_2, window_bounds = array<i64: 256, 32>}, {pipeline_mode = #tpu.pipeline_mode<synchronous>, transform_indices = @transform_3, window_bounds = array<i64: 128, 128>}, {pipeline_mode = #tpu.pipeline_mode<synchronous>, transform_indices = @transform_4, window_bounds = array<i64: 128, 128>}, {pipeline_mode = #tpu.pipeline_mode<synchronous>, transform_indices = @transform_5, window_bounds = array<i64: 32, 32>}, {pipeline_mode = #tpu.pipeline_mode<synchronous>, transform_indices = @transform_6, window_bounds = array<i64: 1, 32>}, {pipeline_mode = #tpu.pipeline_mode<synchronous>, transform_indices = @transform_7, window_bounds = array<i64: 32, 32>}, {pipeline_mode = #tpu.pipeline_mode<synchronous>, transform_indices = @transform_8, window_bounds = array<i64: 1, 32>}, {pipeline_mode = #tpu.pipeline_mode<synchronous>, transform_indices = @transform_9, window_bounds = array<i64: 32, 32>}, {pipeline_mode = #tpu.pipeline_mode<synchronous>, transform_indices = @transform_10, window_bounds = array<i64: 32, 32>}, {pipeline_mode = #tpu.pipeline_mode<synchronous>, transform_indices = @transform_11, window_bounds = array<i64: 1, 32>}, {pipeline_mode = #tpu.pipeline_mode<synchronous>, transform_indices = @transform_12, window_bounds = array<i64: 32, 32>}, {pipeline_mode = #tpu.pipeline_mode<synchronous>, transform_indices = @transform_13, window_bounds = array<i64: 1, 32>}, {pipeline_mode = #tpu.pipeline_mode<synchronous>, transform_indices = @transform_14, window_bounds = array<i64: 32, 32>}, {pipeline_mode = #tpu.pipeline_mode<synchronous>, transform_indices = @transform_15, window_bounds = array<i64: 32, 32>}, {pipeline_mode = #tpu.pipeline_mode<synchronous>, transform_indices = @transform_16, window_bounds = array<i64: 1, 32>}, {pipeline_mode = #tpu.pipeline_mode<synchronous>, transform_indices = @transform_17, window_bounds = array<i64: 32, 32>}, {pipeline_mode = #tpu.pipeline_mode<synchronous>, transform_indices = @transform_18, window_bounds = array<i64: 1, 32>}, {pipeline_mode = #tpu.pipeline_mode<synchronous>, transform_indices = @transform_19, window_bounds = array<i64: 32, 128>}, {pipeline_mode = #tpu.pipeline_mode<synchronous>, transform_indices = @transform_20, window_bounds = array<i64: 1, 128>}, {transform_indices = @transform_21, window_bounds = array<i64: 16, 128>}]} {
    %c0 = arith.constant 0 : index
    %c0_0 = arith.constant 0 : index
    %0 = vector.load %arg1[%c0, %c0_0] : memref<256x1xi32, #tpu.memory_space<vmem>>, vector<256x1xi32>
    %1 = tpu.iota {dimensions = array<i32: 1>} : vector<256x128xi32>
    %2 = vector.broadcast %0 : vector<256x1xi32> to vector<256x128xi32>
    %3 = arith.cmpi eq, %2, %1 : vector<256x128xi32>
    %4 = arith.extui %3 : vector<256x128xi1> to vector<256x128xi32>
    %5 = arith.sitofp %4 : vector<256x128xi32> to vector<256x128xf32>
    %c0_1 = arith.constant 0 : index
    %c0_2 = arith.constant 0 : index
    %6 = vector.load %arg2[%c0_1, %c0_2] : memref<128x32xf32, #tpu.memory_space<vmem>>, vector<128x32xf32>
    %cst = arith.constant dense<0.000000e+00> : vector<256x32xf32>
    %7 = tpu.matmul %5, %6, %cst {dimension_numbers = #tpu.dot_dimension_numbers<[1], [0], [0], [1], [0, 0, 1, 1], [], []>} : vector<256x128xf32>, vector<128x32xf32>, vector<256x32xf32> -> vector<256x32xf32>
    %c0_3 = arith.constant 0 : index
    %c0_4 = arith.constant 0 : index
    %8 = vector.load %arg3[%c0_3, %c0_4] : memref<256x32xf32, #tpu.memory_space<vmem>>, vector<256x32xf32>
    %9 = arith.addf %7, %8 : vector<256x32xf32>
    %c0_5 = arith.constant 0 : index
    %c0_6 = arith.constant 0 : index
    %10 = vector.load %arg6[%c0_5, %c0_6] : memref<32x32xf32, #tpu.memory_space<vmem>>, vector<32x32xf32>
    %cst_7 = arith.constant dense<0.000000e+00> : vector<256x32xf32>
    %11 = tpu.matmul %9, %10, %cst_7 {dimension_numbers = #tpu.dot_dimension_numbers<[1], [0], [0], [1], [0, 0, 1, 1], [], []>} : vector<256x32xf32>, vector<32x32xf32>, vector<256x32xf32> -> vector<256x32xf32>
    %c0_8 = arith.constant 0 : index
    %c0_9 = arith.constant 0 : index
    %12 = vector.load %arg7[%c0_8, %c0_9] : memref<1x32xf32, #tpu.memory_space<vmem>>, vector<1x32xf32>
    %13 = vector.broadcast %12 : vector<1x32xf32> to vector<256x32xf32>
    %14 = arith.addf %11, %13 : vector<256x32xf32>
    %cst_10 = arith.constant 0.000000e+00 : f32
    %15 = vector.broadcast %cst_10 : f32 to vector<256x32xf32>
    %16 = arith.cmpf ogt, %14, %15 : vector<256x32xf32>
    %cst_11 = arith.constant 0.00999999977 : f32
    %17 = vector.broadcast %cst_11 : f32 to vector<256x32xf32>
    %18 = arith.mulf %17, %14 : vector<256x32xf32>
    %19 = arith.select %16, %14, %18 : vector<256x32xi1>, vector<256x32xf32>
    %c0_12 = arith.constant 0 : index
    %c0_13 = arith.constant 0 : index
    %20 = vector.load %arg8[%c0_12, %c0_13] : memref<32x32xf32, #tpu.memory_space<vmem>>, vector<32x32xf32>
    %cst_14 = arith.constant dense<0.000000e+00> : vector<256x32xf32>
    %21 = tpu.matmul %19, %20, %cst_14 {dimension_numbers = #tpu.dot_dimension_numbers<[1], [0], [0], [1], [0, 0, 1, 1], [], []>} : vector<256x32xf32>, vector<32x32xf32>, vector<256x32xf32> -> vector<256x32xf32>
    %c0_15 = arith.constant 0 : index
    %c0_16 = arith.constant 0 : index
    %22 = vector.load %arg9[%c0_15, %c0_16] : memref<1x32xf32, #tpu.memory_space<vmem>>, vector<1x32xf32>
    %23 = vector.broadcast %22 : vector<1x32xf32> to vector<256x32xf32>
    %24 = arith.addf %21, %23 : vector<256x32xf32>
    %cst_17 = arith.constant 0.000000e+00 : f32
    %25 = vector.broadcast %cst_17 : f32 to vector<256x32xf32>
    %26 = arith.cmpf ogt, %24, %25 : vector<256x32xf32>
    %cst_18 = arith.constant 0.00999999977 : f32
    %27 = vector.broadcast %cst_18 : f32 to vector<256x32xf32>
    %28 = arith.mulf %27, %24 : vector<256x32xf32>
    %29 = arith.select %26, %24, %28 : vector<256x32xi1>, vector<256x32xf32>
    %30 = vector.extract_strided_slice %9 {offsets = [0, 0], sizes = [128, 32], strides = [1, 1]} : vector<256x32xf32> to vector<128x32xf32>
    %31 = vector.extract_strided_slice %9 {offsets = [128, 0], sizes = [128, 32], strides = [1, 1]} : vector<256x32xf32> to vector<128x32xf32>
    %32 = vector.extract_strided_slice %29 {offsets = [0, 0], sizes = [128, 32], strides = [1, 1]} : vector<256x32xf32> to vector<128x32xf32>
    %33 = vector.extract_strided_slice %29 {offsets = [128, 0], sizes = [128, 32], strides = [1, 1]} : vector<256x32xf32> to vector<128x32xf32>
    %cst_19 = arith.constant dense<0.000000e+00> : vector<128x128xf32>
    %34 = tpu.matmul %32, %33, %cst_19 {dimension_numbers = #tpu.dot_dimension_numbers<[1], [1], [0], [0], [0, 0, 1, 0], [], []>} : vector<128x32xf32>, vector<128x32xf32>, vector<128x128xf32> -> vector<128x128xf32>
    %c0_20 = arith.constant 0 : index
    %c0_21 = arith.constant 0 : index
    %35 = vector.load %arg4[%c0_20, %c0_21] : memref<128x128xf32, #tpu.memory_space<vmem>>, vector<128x128xf32>
    %36 = arith.addf %34, %35 : vector<128x128xf32>
    %cst_22 = arith.constant dense<0.000000e+00> : vector<128x128xf32>
    %37 = tpu.matmul %33, %32, %cst_22 {dimension_numbers = #tpu.dot_dimension_numbers<[1], [1], [0], [0], [0, 0, 1, 0], [], []>} : vector<128x32xf32>, vector<128x32xf32>, vector<128x128xf32> -> vector<128x128xf32>
    %c0_23 = arith.constant 0 : index
    %c0_24 = arith.constant 0 : index
    %38 = vector.load %arg5[%c0_23, %c0_24] : memref<128x128xf32, #tpu.memory_space<vmem>>, vector<128x128xf32>
    %39 = arith.addf %37, %38 : vector<128x128xf32>
    %cst_25 = arith.constant dense<0xFF800000> : vector<128xf32>
    %40 = vector.multi_reduction <maximumf>, %36, %cst_25 [1] : vector<128x128xf32> to vector<128xf32>
    %41 = vector.shape_cast %40 : vector<128xf32> to vector<128x1xf32>
    %42 = vector.broadcast %41 : vector<128x1xf32> to vector<128x128xf32>
    %43 = arith.subf %36, %42 : vector<128x128xf32>
    %44 = math.exp %43 : vector<128x128xf32>
    %cst_26 = arith.constant dense<0.000000e+00> : vector<128xf32>
    %45 = vector.multi_reduction <add>, %44, %cst_26 [1] : vector<128x128xf32> to vector<128xf32>
    %46 = vector.shape_cast %45 : vector<128xf32> to vector<128x1xf32>
    %47 = tpu.reciprocal %46 {approx = true} : vector<128x1xf32> -> vector<128x1xf32>
    %48 = arith.mulf %46, %47 : vector<128x1xf32>
    %cst_27 = arith.constant 2.000000e+00 : f32
    %49 = vector.broadcast %cst_27 : f32 to vector<128x1xf32>
    %50 = arith.subf %49, %48 : vector<128x1xf32>
    %51 = arith.mulf %47, %50 : vector<128x1xf32>
    %52 = vector.broadcast %51 : vector<128x1xf32> to vector<128x128xf32>
    %53 = arith.mulf %44, %52 : vector<128x128xf32>
    %cst_28 = arith.constant dense<0.000000e+00> : vector<128x32xf32>
    %54 = tpu.matmul %53, %31, %cst_28 {dimension_numbers = #tpu.dot_dimension_numbers<[1], [0], [0], [1], [0, 0, 1, 1], [], []>} : vector<128x128xf32>, vector<128x32xf32>, vector<128x32xf32> -> vector<128x32xf32>
    %cst_29 = arith.constant dense<0xFF800000> : vector<128xf32>
    %55 = vector.multi_reduction <maximumf>, %39, %cst_29 [1] : vector<128x128xf32> to vector<128xf32>
    %56 = vector.shape_cast %55 : vector<128xf32> to vector<128x1xf32>
    %57 = vector.broadcast %56 : vector<128x1xf32> to vector<128x128xf32>
    %58 = arith.subf %39, %57 : vector<128x128xf32>
    %59 = math.exp %58 : vector<128x128xf32>
    %cst_30 = arith.constant dense<0.000000e+00> : vector<128xf32>
    %60 = vector.multi_reduction <add>, %59, %cst_30 [1] : vector<128x128xf32> to vector<128xf32>
    %61 = vector.shape_cast %60 : vector<128xf32> to vector<128x1xf32>
    %62 = tpu.reciprocal %61 {approx = true} : vector<128x1xf32> -> vector<128x1xf32>
    %63 = arith.mulf %61, %62 : vector<128x1xf32>
    %cst_31 = arith.constant 2.000000e+00 : f32
    %64 = vector.broadcast %cst_31 : f32 to vector<128x1xf32>
    %65 = arith.subf %64, %63 : vector<128x1xf32>
    %66 = arith.mulf %62, %65 : vector<128x1xf32>
    %67 = vector.broadcast %66 : vector<128x1xf32> to vector<128x128xf32>
    %68 = arith.mulf %59, %67 : vector<128x128xf32>
    %cst_32 = arith.constant dense<0.000000e+00> : vector<128x32xf32>
    %69 = tpu.matmul %68, %30, %cst_32 {dimension_numbers = #tpu.dot_dimension_numbers<[1], [0], [0], [1], [0, 0, 1, 1], [], []>} : vector<128x128xf32>, vector<128x32xf32>, vector<128x32xf32> -> vector<128x32xf32>
    %70 = tpu.concatenate %54, %69 in 0 : vector<128x32xf32>, vector<128x32xf32> -> vector<256x32xf32>
    %c0_33 = arith.constant 0 : index
    %c0_34 = arith.constant 0 : index
    %71 = vector.load %arg10[%c0_33, %c0_34] : memref<32x32xf32, #tpu.memory_space<vmem>>, vector<32x32xf32>
    %cst_35 = arith.constant dense<0.000000e+00> : vector<256x32xf32>
    %72 = tpu.matmul %9, %71, %cst_35 {dimension_numbers = #tpu.dot_dimension_numbers<[1], [0], [0], [1], [0, 0, 1, 1], [], []>} : vector<256x32xf32>, vector<32x32xf32>, vector<256x32xf32> -> vector<256x32xf32>
    %c0_36 = arith.constant 0 : index
    %c0_37 = arith.constant 0 : index
    %73 = vector.load %arg11[%c0_36, %c0_37] : memref<32x32xf32, #tpu.memory_space<vmem>>, vector<32x32xf32>
    %cst_38 = arith.constant dense<0.000000e+00> : vector<256x32xf32>
    %74 = tpu.matmul %70, %73, %cst_38 {dimension_numbers = #tpu.dot_dimension_numbers<[1], [0], [0], [1], [0, 0, 1, 1], [], []>} : vector<256x32xf32>, vector<32x32xf32>, vector<256x32xf32> -> vector<256x32xf32>
    %75 = arith.addf %72, %74 : vector<256x32xf32>
    %c0_39 = arith.constant 0 : index
    %c0_40 = arith.constant 0 : index
    %76 = vector.load %arg12[%c0_39, %c0_40] : memref<1x32xf32, #tpu.memory_space<vmem>>, vector<1x32xf32>
    %77 = vector.broadcast %76 : vector<1x32xf32> to vector<256x32xf32>
    %78 = arith.addf %75, %77 : vector<256x32xf32>
    %cst_41 = arith.constant 0.000000e+00 : f32
    %79 = vector.broadcast %cst_41 : f32 to vector<256x32xf32>
    %80 = arith.cmpf ogt, %78, %79 : vector<256x32xf32>
    %cst_42 = arith.constant 0.00999999977 : f32
    %81 = vector.broadcast %cst_42 : f32 to vector<256x32xf32>
    %82 = arith.mulf %81, %78 : vector<256x32xf32>
    %83 = arith.select %80, %78, %82 : vector<256x32xi1>, vector<256x32xf32>
    %c0_43 = arith.constant 0 : index
    %c0_44 = arith.constant 0 : index
    %84 = vector.load %arg13[%c0_43, %c0_44] : memref<32x32xf32, #tpu.memory_space<vmem>>, vector<32x32xf32>
    %cst_45 = arith.constant dense<0.000000e+00> : vector<256x32xf32>
    %85 = tpu.matmul %83, %84, %cst_45 {dimension_numbers = #tpu.dot_dimension_numbers<[1], [0], [0], [1], [0, 0, 1, 1], [], []>} : vector<256x32xf32>, vector<32x32xf32>, vector<256x32xf32> -> vector<256x32xf32>
    %c0_46 = arith.constant 0 : index
    %c0_47 = arith.constant 0 : index
    %86 = vector.load %arg14[%c0_46, %c0_47] : memref<1x32xf32, #tpu.memory_space<vmem>>, vector<1x32xf32>
    %87 = vector.broadcast %86 : vector<1x32xf32> to vector<256x32xf32>
    %88 = arith.addf %85, %87 : vector<256x32xf32>
    %cst_48 = arith.constant 0.000000e+00 : f32
    %89 = vector.broadcast %cst_48 : f32 to vector<256x32xf32>
    %90 = arith.cmpf ogt, %88, %89 : vector<256x32xf32>
    %cst_49 = arith.constant 0.00999999977 : f32
    %91 = vector.broadcast %cst_49 : f32 to vector<256x32xf32>
    %92 = arith.mulf %91, %88 : vector<256x32xf32>
    %93 = arith.select %90, %88, %92 : vector<256x32xi1>, vector<256x32xf32>
    %94 = vector.extract_strided_slice %93 {offsets = [0, 0], sizes = [128, 32], strides = [1, 1]} : vector<256x32xf32> to vector<128x32xf32>
    %95 = vector.shape_cast %94 : vector<128x32xf32> to vector<16x8x32xf32>
    %cst_50 = arith.constant dense<0.000000e+00> : vector<16x32xf32>
    %96 = vector.multi_reduction <add>, %95, %cst_50 [1] : vector<16x8x32xf32> to vector<16x32xf32>
    %97 = vector.extract_strided_slice %93 {offsets = [128, 0], sizes = [128, 32], strides = [1, 1]} : vector<256x32xf32> to vector<128x32xf32>
    %98 = vector.shape_cast %97 : vector<128x32xf32> to vector<16x8x32xf32>
    %cst_51 = arith.constant dense<0.000000e+00> : vector<16x32xf32>
    %99 = vector.multi_reduction <add>, %98, %cst_51 [1] : vector<16x8x32xf32> to vector<16x32xf32>
    %c0_52 = arith.constant 0 : index
    %c0_53 = arith.constant 0 : index
    %100 = vector.load %arg15[%c0_52, %c0_53] : memref<32x32xf32, #tpu.memory_space<vmem>>, vector<32x32xf32>
    %cst_54 = arith.constant dense<0.000000e+00> : vector<16x32xf32>
    %101 = tpu.matmul %96, %100, %cst_54 {dimension_numbers = #tpu.dot_dimension_numbers<[1], [0], [0], [1], [0, 0, 1, 1], [], []>} : vector<16x32xf32>, vector<32x32xf32>, vector<16x32xf32> -> vector<16x32xf32>
    %c0_55 = arith.constant 0 : index
    %c0_56 = arith.constant 0 : index
    %102 = vector.load %arg16[%c0_55, %c0_56] : memref<32x32xf32, #tpu.memory_space<vmem>>, vector<32x32xf32>
    %cst_57 = arith.constant dense<0.000000e+00> : vector<16x32xf32>
    %103 = tpu.matmul %99, %102, %cst_57 {dimension_numbers = #tpu.dot_dimension_numbers<[1], [0], [0], [1], [0, 0, 1, 1], [], []>} : vector<16x32xf32>, vector<32x32xf32>, vector<16x32xf32> -> vector<16x32xf32>
    %104 = arith.addf %101, %103 : vector<16x32xf32>
    %c0_58 = arith.constant 0 : index
    %c0_59 = arith.constant 0 : index
    %105 = vector.load %arg17[%c0_58, %c0_59] : memref<1x32xf32, #tpu.memory_space<vmem>>, vector<1x32xf32>
    %106 = vector.broadcast %105 : vector<1x32xf32> to vector<16x32xf32>
    %107 = arith.addf %104, %106 : vector<16x32xf32>
    %cst_60 = arith.constant 0.000000e+00 : f32
    %108 = vector.broadcast %cst_60 : f32 to vector<16x32xf32>
    %109 = arith.cmpf ogt, %107, %108 : vector<16x32xf32>
    %cst_61 = arith.constant 0.00999999977 : f32
    %110 = vector.broadcast %cst_61 : f32 to vector<16x32xf32>
    %111 = arith.mulf %110, %107 : vector<16x32xf32>
    %112 = arith.select %109, %107, %111 : vector<16x32xi1>, vector<16x32xf32>
    %c0_62 = arith.constant 0 : index
    %c0_63 = arith.constant 0 : index
    %113 = vector.load %arg18[%c0_62, %c0_63] : memref<32x32xf32, #tpu.memory_space<vmem>>, vector<32x32xf32>
    %cst_64 = arith.constant dense<0.000000e+00> : vector<16x32xf32>
    %114 = tpu.matmul %112, %113, %cst_64 {dimension_numbers = #tpu.dot_dimension_numbers<[1], [0], [0], [1], [0, 0, 1, 1], [], []>} : vector<16x32xf32>, vector<32x32xf32>, vector<16x32xf32> -> vector<16x32xf32>
    %c0_65 = arith.constant 0 : index
    %c0_66 = arith.constant 0 : index
    %115 = vector.load %arg19[%c0_65, %c0_66] : memref<1x32xf32, #tpu.memory_space<vmem>>, vector<1x32xf32>
    %116 = vector.broadcast %115 : vector<1x32xf32> to vector<16x32xf32>
    %117 = arith.addf %114, %116 : vector<16x32xf32>
    %cst_67 = arith.constant 0.000000e+00 : f32
    %118 = vector.broadcast %cst_67 : f32 to vector<16x32xf32>
    %119 = arith.cmpf ogt, %117, %118 : vector<16x32xf32>
    %cst_68 = arith.constant 0.00999999977 : f32
    %120 = vector.broadcast %cst_68 : f32 to vector<16x32xf32>
    %121 = arith.mulf %120, %117 : vector<16x32xf32>
    %122 = arith.select %119, %117, %121 : vector<16x32xi1>, vector<16x32xf32>
    %c0_69 = arith.constant 0 : index
    %c0_70 = arith.constant 0 : index
    %123 = vector.load %arg20[%c0_69, %c0_70] : memref<32x128xf32, #tpu.memory_space<vmem>>, vector<32x128xf32>
    %cst_71 = arith.constant dense<0.000000e+00> : vector<16x128xf32>
    %124 = tpu.matmul %122, %123, %cst_71 {dimension_numbers = #tpu.dot_dimension_numbers<[1], [0], [0], [1], [0, 0, 1, 1], [], []>} : vector<16x32xf32>, vector<32x128xf32>, vector<16x128xf32> -> vector<16x128xf32>
    %c0_72 = arith.constant 0 : index
    %c0_73 = arith.constant 0 : index
    %125 = vector.load %arg21[%c0_72, %c0_73] : memref<1x128xf32, #tpu.memory_space<vmem>>, vector<1x128xf32>
    %126 = vector.broadcast %125 : vector<1x128xf32> to vector<16x128xf32>
    %127 = arith.addf %124, %126 : vector<16x128xf32>
    %c0_74 = arith.constant 0 : index
    %c0_75 = arith.constant 0 : index
    %128 = vector.load %arg22[%c0_74, %c0_75] : memref<16x128xf32, #tpu.memory_space<vmem>>, vector<16x128xf32>
    tpu.vector_store %arg22[%c0_74, %c0_75], %127 {strides = array<i32>} : memref<16x128xf32, #tpu.memory_space<vmem>>, vector<16x128xf32>,
    return
  }
  func.func @transform_0(%arg0: i32) -> (i32, i32) {
    %c0_i32 = arith.constant 0 : i32
    %c0_i32_0 = arith.constant 0 : i32
    return %arg0, %c0_i32 : i32, i32
  }
  func.func @transform_1(%arg0: i32) -> (i32, i32) {
    %c0_i32 = arith.constant 0 : i32
    %c0_i32_0 = arith.constant 0 : i32
    %c0_i32_1 = arith.constant 0 : i32
    return %c0_i32, %c0_i32_0 : i32, i32
  }
  func.func @transform_2(%arg0: i32) -> (i32, i32) {
    %c0_i32 = arith.constant 0 : i32
    %c0_i32_0 = arith.constant 0 : i32
    %c0_i32_1 = arith.constant 0 : i32
    return %c0_i32, %c0_i32_0 : i32, i32
  }
  func.func @transform_3(%arg0: i32) -> (i32, i32) {
    %c0_i32 = arith.constant 0 : i32
    %c0_i32_0 = arith.constant 0 : i32
    %c0_i32_1 = arith.constant 0 : i32
    return %c0_i32, %c0_i32_0 : i32, i32
  }
  func.func @transform_4(%arg0: i32) -> (i32, i32) {
    %c0_i32 = arith.constant 0 : i32
    %c0_i32_0 = arith.constant 0 : i32
    %c0_i32_1 = arith.constant 0 : i32
    return %c0_i32, %c0_i32_0 : i32, i32
  }
  func.func @transform_5(%arg0: i32) -> (i32, i32) {
    %c0_i32 = arith.constant 0 : i32
    %c0_i32_0 = arith.constant 0 : i32
    %c0_i32_1 = arith.constant 0 : i32
    return %c0_i32, %c0_i32_0 : i32, i32
  }
  func.func @transform_6(%arg0: i32) -> (i32, i32) {
    %c0_i32 = arith.constant 0 : i32
    %c0_i32_0 = arith.constant 0 : i32
    %c0_i32_1 = arith.constant 0 : i32
    return %c0_i32, %c0_i32_0 : i32, i32
  }
  func.func @transform_7(%arg0: i32) -> (i32, i32) {
    %c0_i32 = arith.constant 0 : i32
    %c0_i32_0 = arith.constant 0 : i32
    %c0_i32_1 = arith.constant 0 : i32
    return %c0_i32, %c0_i32_0 : i32, i32
  }
  func.func @transform_8(%arg0: i32) -> (i32, i32) {
    %c0_i32 = arith.constant 0 : i32
    %c0_i32_0 = arith.constant 0 : i32
    %c0_i32_1 = arith.constant 0 : i32
    return %c0_i32, %c0_i32_0 : i32, i32
  }
  func.func @transform_9(%arg0: i32) -> (i32, i32) {
    %c0_i32 = arith.constant 0 : i32
    %c0_i32_0 = arith.constant 0 : i32
    %c0_i32_1 = arith.constant 0 : i32
    return %c0_i32, %c0_i32_0 : i32, i32
  }
  func.func @transform_10(%arg0: i32) -> (i32, i32) {
    %c0_i32 = arith.constant 0 : i32
    %c0_i32_0 = arith.constant 0 : i32
    %c0_i32_1 = arith.constant 0 : i32
    return %c0_i32, %c0_i32_0 : i32, i32
  }
  func.func @transform_11(%arg0: i32) -> (i32, i32) {
    %c0_i32 = arith.constant 0 : i32
    %c0_i32_0 = arith.constant 0 : i32
    %c0_i32_1 = arith.constant 0 : i32
    return %c0_i32, %c0_i32_0 : i32, i32
  }
  func.func @transform_12(%arg0: i32) -> (i32, i32) {
    %c0_i32 = arith.constant 0 : i32
    %c0_i32_0 = arith.constant 0 : i32
    %c0_i32_1 = arith.constant 0 : i32
    return %c0_i32, %c0_i32_0 : i32, i32
  }
  func.func @transform_13(%arg0: i32) -> (i32, i32) {
    %c0_i32 = arith.constant 0 : i32
    %c0_i32_0 = arith.constant 0 : i32
    %c0_i32_1 = arith.constant 0 : i32
    return %c0_i32, %c0_i32_0 : i32, i32
  }
  func.func @transform_14(%arg0: i32) -> (i32, i32) {
    %c0_i32 = arith.constant 0 : i32
    %c0_i32_0 = arith.constant 0 : i32
    %c0_i32_1 = arith.constant 0 : i32
    return %c0_i32, %c0_i32_0 : i32, i32
  }
  func.func @transform_15(%arg0: i32) -> (i32, i32) {
    %c0_i32 = arith.constant 0 : i32
    %c0_i32_0 = arith.constant 0 : i32
    %c0_i32_1 = arith.constant 0 : i32
    return %c0_i32, %c0_i32_0 : i32, i32
  }
  func.func @transform_16(%arg0: i32) -> (i32, i32) {
    %c0_i32 = arith.constant 0 : i32
    %c0_i32_0 = arith.constant 0 : i32
    %c0_i32_1 = arith.constant 0 : i32
    return %c0_i32, %c0_i32_0 : i32, i32
  }
  func.func @transform_17(%arg0: i32) -> (i32, i32) {
    %c0_i32 = arith.constant 0 : i32
    %c0_i32_0 = arith.constant 0 : i32
    %c0_i32_1 = arith.constant 0 : i32
    return %c0_i32, %c0_i32_0 : i32, i32
  }
  func.func @transform_18(%arg0: i32) -> (i32, i32) {
    %c0_i32 = arith.constant 0 : i32
    %c0_i32_0 = arith.constant 0 : i32
    %c0_i32_1 = arith.constant 0 : i32
    return %c0_i32, %c0_i32_0 : i32, i32
  }
  func.func @transform_19(%arg0: i32) -> (i32, i32) {
    %c0_i32 = arith.constant 0 : i32
    %c0_i32_0 = arith.constant 0 : i32
    %c0_i32_1 = arith.constant 0 : i32
    return %c0_i32, %c0_i32_0 : i32, i32
  }
  func.func @transform_20(%arg0: i32) -> (i32, i32) {
    %c0_i32 = arith.constant 0 : i32
    %c0_i32_0 = arith.constant 0 : i32
    %c0_i32_1 = arith.constant 0 : i32
    return %c0_i32, %c0_i32_0 : i32, i32
  }
  func.func @transform_21(%arg0: i32) -> (i32, i32) {
    %c0_i32 = arith.constant 0 : i32
    %c0_i32_0 = arith.constant 0 : i32
    return %arg0, %c0_i32 : i32, i32
  }
}

</mosaic_0001>

<llo_original>
// kernel: tpu_custom_call.1
$region0: #{tpu_custom_call.1}
  #allocation0 [shape = 'u32[]', space=smem, size = 0x4, offset = 0x4, fixed_abs, tag = 'smem constant byte address 0x4 - core index']
  #allocation1 [shape = 'u32[144,128]{1,0:T(1,128)}', space=vmem, size = 0x12000, scoped, tag = 'internal scratch']
  %s0 = inlined_call_operand.vmem [shape: s32[512,1], index: 0, kind: input, shape index: {}]
  %s1 = inlined_call_operand.vmem [shape: f32[128,32], index: 1, kind: input, shape index: {}]
  %s2 = inlined_call_operand.vmem [shape: f32[256,32], index: 2, kind: input, shape index: {}]
  %s3 = inlined_call_operand.vmem [shape: f32[128,128], index: 3, kind: input, shape index: {}]
  %s4 = inlined_call_operand.vmem [shape: f32[128,128], index: 4, kind: input, shape index: {}]
  %s5 = inlined_call_operand.vmem [shape: f32[32,32], index: 5, kind: input, shape index: {}]
  %s6 = inlined_call_operand.vmem [shape: f32[1,32], index: 6, kind: input, shape index: {}]
  %s7 = inlined_call_operand.vmem [shape: f32[32,32], index: 7, kind: input, shape index: {}]
  %s8 = inlined_call_operand.vmem [shape: f32[1,32], index: 8, kind: input, shape index: {}]
  %s9 = inlined_call_operand.vmem [shape: f32[32,32], index: 9, kind: input, shape index: {}]
  %s10 = inlined_call_operand.vmem [shape: f32[32,32], index: 10, kind: input, shape index: {}]
  %s11 = inlined_call_operand.vmem [shape: f32[1,32], index: 11, kind: input, shape index: {}]
  %s12 = inlined_call_operand.vmem [shape: f32[32,32], index: 12, kind: input, shape index: {}]
  %s13 = inlined_call_operand.vmem [shape: f32[1,32], index: 13, kind: input, shape index: {}]
  %s14 = inlined_call_operand.vmem [shape: f32[32,32], index: 14, kind: input, shape index: {}]
  %s15 = inlined_call_operand.vmem [shape: f32[32,32], index: 15, kind: input, shape index: {}]
  %s16 = inlined_call_operand.vmem [shape: f32[1,32], index: 16, kind: input, shape index: {}]
  %s17 = inlined_call_operand.vmem [shape: f32[32,32], index: 17, kind: input, shape index: {}]
  %s18 = inlined_call_operand.vmem [shape: f32[1,32], index: 18, kind: input, shape index: {}]
  %s19 = inlined_call_operand.vmem [shape: f32[32,128], index: 19, kind: input, shape index: {}]
  %s20 = inlined_call_operand.vmem [shape: f32[1,128], index: 20, kind: input, shape index: {}]
  %s21 = inlined_call_operand.hbm [shape: f32[32,128], index: 21, kind: output, shape index: {}]
  %s22 = sld [smem:[#allocation0]]
  $region117: #{tpu_custom_call.1} parent=0
    _
  %s24 = ssub.s32 1, %s22
  %s25 = scalar_select 0, %s24, %s22
  $region1: #{tpu_custom_call.1} parent=0
    #allocation2 [shape = 'u8[16384]{0}', space=vmem, size = 0x4000, scoped, tag = 'output window, operand 0']
    #allocation3 [shape = 's32[2]{0}', space=sflag, size = 0x8, scoped, tag = 'scoped memory for tpu_custom_call.1']
    %26 = vsyncpa [#allocation3], 0
    %s27 = scalar_lea.sflag [#allocation3], 1
    %28 = vsyncpa %s27, 0
    loop: start=0, step=1, limit=4
    $region2: #{tpu_custom_call.1} parent=1 // loop_pre_header
      _
    $region3: #{tpu_custom_call.1} parent=1 // loop_header
      %s30 = sphi 0, %s34
      %p31 = scmp.ge.s32.totalorder %s30, 4
      %s40 = sphi 0, %s42
      %s43 = sphi 0, %s40
      %s44 = sphi 0, %s43
      %s60 = sphi 0, %s44
      %s64 = sphi 0, %s64
      %s66 = sphi 0, %s64
      %s67 = sphi 0, %s66
      %s81 = sphi 0, %s67
      %s85 = sphi 0, %s85
      %s87 = sphi 0, %s85
      %s88 = sphi 0, %s87
      %s102 = sphi 0, %s88
      %s106 = sphi 0, %s106
      %s108 = sphi 0, %s106
      %s109 = sphi 0, %s108
      %s123 = sphi 0, %s109
      %s127 = sphi 0, %s127
      %s129 = sphi 0, %s127
      %s130 = sphi 0, %s129
      %s144 = sphi 0, %s130
      %s148 = sphi 0, %s148
      %s150 = sphi 0, %s148
      %s151 = sphi 0, %s150
      %s165 = sphi 0, %s151
      %s169 = sphi 0, %s169
      %s171 = sphi 0, %s169
      %s172 = sphi 0, %s171
      %s186 = sphi 0, %s172
      %s190 = sphi 0, %s190
      %s192 = sphi 0, %s190
      %s193 = sphi 0, %s192
      %s207 = sphi 0, %s193
      %s211 = sphi 0, %s211
      %s213 = sphi 0, %s211
      %s214 = sphi 0, %s213
      %s228 = sphi 0, %s214
      %s232 = sphi 0, %s232
      %s234 = sphi 0, %s232
      %s235 = sphi 0, %s234
      %s249 = sphi 0, %s235
      %s253 = sphi 0, %s253
      %s255 = sphi 0, %s253
      %s256 = sphi 0, %s255
      %s270 = sphi 0, %s256
      %s274 = sphi 0, %s274
      %s276 = sphi 0, %s274
      %s277 = sphi 0, %s276
      %s291 = sphi 0, %s277
      %s295 = sphi 0, %s295
      %s297 = sphi 0, %s295
      %s298 = sphi 0, %s297
      %s312 = sphi 0, %s298
      %s316 = sphi 0, %s316
      %s318 = sphi 0, %s316
      %s319 = sphi 0, %s318
      %s333 = sphi 0, %s319
      %s337 = sphi 0, %s337
      %s339 = sphi 0, %s337
      %s340 = sphi 0, %s339
      %s354 = sphi 0, %s340
      %s358 = sphi 0, %s358
      %s360 = sphi 0, %s358
      %s361 = sphi 0, %s360
      %s375 = sphi 0, %s361
      %s379 = sphi 0, %s379
      %s381 = sphi 0, %s379
      %s382 = sphi 0, %s381
      %s396 = sphi 0, %s382
      %s400 = sphi 0, %s400
      %s402 = sphi 0, %s400
      %s403 = sphi 0, %s402
      %s417 = sphi 0, %s403
      %s421 = sphi 0, %s421
      %s423 = sphi 0, %s421
      %s424 = sphi 0, %s423
      %s438 = sphi 0, %s424
      %s442 = sphi 0, %s442
      %s444 = sphi 0, %s442
      %s445 = sphi 0, %s444
      %s459 = sphi 0, %s445
      %s463 = sphi 0, %s463
      %s465 = sphi 0, %s463
      %s466 = sphi 0, %s465
      %s480 = sphi 0, %s466
      %s486 = sphi 0, %s488
      %s489 = sphi 0, %s486
      %s490 = sphi 0, %s489
      %s506 = sphi 0, %s490
    $region4: #{tpu_custom_call.1} parent=1 // loop_header_branch
      %33 = sbr.rel (%p31) target = $region8
    $region5: #{tpu_custom_call.1} parent=1 // loop_body
      %s35 = ssub.s32 %s30, 1
      %s36 = ssub.s32 %s30, 2
      %s37 = sadd.s32 %s30, 1
      %s38 = ssub.s32 %s30, %s37
      %p39 = scmp.eq.s32.totalorder %s38, 0
      %s41 = sadd.s32 %s40, 1
      %s42 = scalar_select %p39, %s40, %s41
      %p45 = pneg %p39
      %p46 = scmp.eq.s32.totalorder %s30, 1
      %p47 = por %p45, %p46
      %p48 = scmp.ne.s32.totalorder %s40, %s43
      %p49 = scmp.eq.s32.totalorder %s30, 0
      %p50 = por %p48, %p49
      %p51 = scmp.ne.s32.totalorder %s40, %s43
      %p52 = scmp.eq.s32.totalorder %s35, 1
      %p53 = por %p51, %p52
      %p54 = scmp.ne.s32.totalorder %s43, %s44
      %p55 = scmp.eq.s32.totalorder %s35, 0
      %p56 = por %p54, %p55
      %p57 = scmp.ne.s32.totalorder %s43, %s44
      %p58 = scmp.eq.s32.totalorder %s36, 1
      %p59 = por %p57, %p58
      %p61 = scmp.ne.s32.totalorder %s44, %s60
      %p62 = scmp.eq.s32.totalorder %s36, 0
      %p63 = por %p61, %p62
      %s65 = sadd.s32 %s64, 1
      %p68 = scmp.eq.s32.totalorder %s30, 1
      %p69 = scmp.ne.s32.totalorder %s64, %s66
      %p70 = scmp.eq.s32.totalorder %s30, 0
      %p71 = por %p69, %p70
      %p72 = scmp.ne.s32.totalorder %s64, %s66
      %p73 = scmp.eq.s32.totalorder %s35, 1
      %p74 = por %p72, %p73
      %p75 = scmp.ne.s32.totalorder %s66, %s67
      %p76 = scmp.eq.s32.totalorder %s35, 0
      %p77 = por %p75, %p76
      %p78 = scmp.ne.s32.totalorder %s66, %s67
      %p79 = scmp.eq.s32.totalorder %s36, 1
      %p80 = por %p78, %p79
      %p82 = scmp.ne.s32.totalorder %s67, %s81
      %p83 = scmp.eq.s32.totalorder %s36, 0
      %p84 = por %p82, %p83
      %s86 = sadd.s32 %s85, 1
      %p89 = scmp.eq.s32.totalorder %s30, 1
      %p90 = scmp.ne.s32.totalorder %s85, %s87
      %p91 = scmp.eq.s32.totalorder %s30, 0
      %p92 = por %p90, %p91
      %p93 = scmp.ne.s32.totalorder %s85, %s87
      %p94 = scmp.eq.s32.totalorder %s35, 1
      %p95 = por %p93, %p94
      %p96 = scmp.ne.s32.totalorder %s87, %s88
      %p97 = scmp.eq.s32.totalorder %s35, 0
      %p98 = por %p96, %p97
      %p99 = scmp.ne.s32.totalorder %s87, %s88
      %p100 = scmp.eq.s32.totalorder %s36, 1
      %p101 = por %p99, %p100
      %p103 = scmp.ne.s32.totalorder %s88, %s102
      %p104 = scmp.eq.s32.totalorder %s36, 0
      %p105 = por %p103, %p104
      %s107 = sadd.s32 %s106, 1
      %p110 = scmp.eq.s32.totalorder %s30, 1
      %p111 = scmp.ne.s32.totalorder %s106, %s108
      %p112 = scmp.eq.s32.totalorder %s30, 0
      %p113 = por %p111, %p112
      %p114 = scmp.ne.s32.totalorder %s106, %s108
      %p115 = scmp.eq.s32.totalorder %s35, 1
      %p116 = por %p114, %p115
      %p117 = scmp.ne.s32.totalorder %s108, %s109
      %p118 = scmp.eq.s32.totalorder %s35, 0
      %p119 = por %p117, %p118
      %p120 = scmp.ne.s32.totalorder %s108, %s109
      %p121 = scmp.eq.s32.totalorder %s36, 1
      %p122 = por %p120, %p121
      %p124 = scmp.ne.s32.totalorder %s109, %s123
      %p125 = scmp.eq.s32.totalorder %s36, 0
      %p126 = por %p124, %p125
      %s128 = sadd.s32 %s127, 1
      %p131 = scmp.eq.s32.totalorder %s30, 1
      %p132 = scmp.ne.s32.totalorder %s127, %s129
      %p133 = scmp.eq.s32.totalorder %s30, 0
      %p134 = por %p132, %p133
      %p135 = scmp.ne.s32.totalorder %s127, %s129
      %p136 = scmp.eq.s32.totalorder %s35, 1
      %p137 = por %p135, %p136
      %p138 = scmp.ne.s32.totalorder %s129, %s130
      %p139 = scmp.eq.s32.totalorder %s35, 0
      %p140 = por %p138, %p139
      %p141 = scmp.ne.s32.totalorder %s129, %s130
      %p142 = scmp.eq.s32.totalorder %s36, 1
      %p143 = por %p141, %p142
      %p145 = scmp.ne.s32.totalorder %s130, %s144
      %p146 = scmp.eq.s32.totalorder %s36, 0
      %p147 = por %p145, %p146
      %s149 = sadd.s32 %s148, 1
      %p152 = scmp.eq.s32.totalorder %s30, 1
      %p153 = scmp.ne.s32.totalorder %s148, %s150
      %p154 = scmp.eq.s32.totalorder %s30, 0
      %p155 = por %p153, %p154
      %p156 = scmp.ne.s32.totalorder %s148, %s150
      %p157 = scmp.eq.s32.totalorder %s35, 1
      %p158 = por %p156, %p157
      %p159 = scmp.ne.s32.totalorder %s150, %s151
      %p160 = scmp.eq.s32.totalorder %s35, 0
      %p161 = por %p159, %p160
      %p162 = scmp.ne.s32.totalorder %s150, %s151
      %p163 = scmp.eq.s32.totalorder %s36, 1
      %p164 = por %p162, %p163
      %p166 = scmp.ne.s32.totalorder %s151, %s165
      %p167 = scmp.eq.s32.totalorder %s36, 0
      %p168 = por %p166, %p167
      %s170 = sadd.s32 %s169, 1
      %p173 = scmp.eq.s32.totalorder %s30, 1
      %p174 = scmp.ne.s32.totalorder %s169, %s171
      %p175 = scmp.eq.s32.totalorder %s30, 0
      %p176 = por %p174, %p175
      %p177 = scmp.ne.s32.totalorder %s169, %s171
      %p178 = scmp.eq.s32.totalorder %s35, 1
      %p179 = por %p177, %p178
      %p180 = scmp.ne.s32.totalorder %s171, %s172
      %p181 = scmp.eq.s32.totalorder %s35, 0
      %p182 = por %p180, %p181
      %p183 = scmp.ne.s32.totalorder %s171, %s172
      %p184 = scmp.eq.s32.totalorder %s36, 1
      %p185 = por %p183, %p184
      %p187 = scmp.ne.s32.totalorder %s172, %s186
      %p188 = scmp.eq.s32.totalorder %s36, 0
      %p189 = por %p187, %p188
      %s191 = sadd.s32 %s190, 1
      %p194 = scmp.eq.s32.totalorder %s30, 1
      %p195 = scmp.ne.s32.totalorder %s190, %s192
      %p196 = scmp.eq.s32.totalorder %s30, 0
      %p197 = por %p195, %p196
      %p198 = scmp.ne.s32.totalorder %s190, %s192
      %p199 = scmp.eq.s32.totalorder %s35, 1
      %p200 = por %p198, %p199
      %p201 = scmp.ne.s32.totalorder %s192, %s193
      %p202 = scmp.eq.s32.totalorder %s35, 0
      %p203 = por %p201, %p202
      %p204 = scmp.ne.s32.totalorder %s192, %s193
      %p205 = scmp.eq.s32.totalorder %s36, 1
      %p206 = por %p204, %p205
      %p208 = scmp.ne.s32.totalorder %s193, %s207
      %p209 = scmp.eq.s32.totalorder %s36, 0
      %p210 = por %p208, %p209
      %s212 = sadd.s32 %s211, 1
      %p215 = scmp.eq.s32.totalorder %s30, 1
      %p216 = scmp.ne.s32.totalorder %s211, %s213
      %p217 = scmp.eq.s32.totalorder %s30, 0
      %p218 = por %p216, %p217
      %p219 = scmp.ne.s32.totalorder %s211, %s213
      %p220 = scmp.eq.s32.totalorder %s35, 1
      %p221 = por %p219, %p220
      %p222 = scmp.ne.s32.totalorder %s213, %s214
      %p223 = scmp.eq.s32.totalorder %s35, 0
      %p224 = por %p222, %p223
      %p225 = scmp.ne.s32.totalorder %s213, %s214
      %p226 = scmp.eq.s32.totalorder %s36, 1
      %p227 = por %p225, %p226
      %p229 = scmp.ne.s32.totalorder %s214, %s228
      %p230 = scmp.eq.s32.totalorder %s36, 0
      %p231 = por %p229, %p230
      %s233 = sadd.s32 %s232, 1
      %p236 = scmp.eq.s32.totalorder %s30, 1
      %p237 = scmp.ne.s32.totalorder %s232, %s234
      %p238 = scmp.eq.s32.totalorder %s30, 0
      %p239 = por %p237, %p238
      %p240 = scmp.ne.s32.totalorder %s232, %s234
      %p241 = scmp.eq.s32.totalorder %s35, 1
      %p242 = por %p240, %p241
      %p243 = scmp.ne.s32.totalorder %s234, %s235
      %p244 = scmp.eq.s32.totalorder %s35, 0
      %p245 = por %p243, %p244
      %p246 = scmp.ne.s32.totalorder %s234, %s235
      %p247 = scmp.eq.s32.totalorder %s36, 1
      %p248 = por %p246, %p247
      %p250 = scmp.ne.s32.totalorder %s235, %s249
      %p251 = scmp.eq.s32.totalorder %s36, 0
      %p252 = por %p250, %p251
      %s254 = sadd.s32 %s253, 1
      %p257 = scmp.eq.s32.totalorder %s30, 1
      %p258 = scmp.ne.s32.totalorder %s253, %s255
      %p259 = scmp.eq.s32.totalorder %s30, 0
      %p260 = por %p258, %p259
      %p261 = scmp.ne.s32.totalorder %s253, %s255
      %p262 = scmp.eq.s32.totalorder %s35, 1
      %p263 = por %p261, %p262
      %p264 = scmp.ne.s32.totalorder %s255, %s256
      %p265 = scmp.eq.s32.totalorder %s35, 0
      %p266 = por %p264, %p265
      %p267 = scmp.ne.s32.totalorder %s255, %s256
      %p268 = scmp.eq.s32.totalorder %s36, 1
      %p269 = por %p267, %p268
      %p271 = scmp.ne.s32.totalorder %s256, %s270
      %p272 = scmp.eq.s32.totalorder %s36, 0
      %p273 = por %p271, %p272
      %s275 = sadd.s32 %s274, 1
      %p278 = scmp.eq.s32.totalorder %s30, 1
      %p279 = scmp.ne.s32.totalorder %s274, %s276
      %p280 = scmp.eq.s32.totalorder %s30, 0
      %p281 = por %p279, %p280
      %p282 = scmp.ne.s32.totalorder %s274, %s276
      %p283 = scmp.eq.s32.totalorder %s35, 1
      %p284 = por %p282, %p283
      %p285 = scmp.ne.s32.totalorder %s276, %s277
      %p286 = scmp.eq.s32.totalorder %s35, 0
      %p287 = por %p285, %p286
      %p288 = scmp.ne.s32.totalorder %s276, %s277
      %p289 = scmp.eq.s32.totalorder %s36, 1
      %p290 = por %p288, %p289
      %p292 = scmp.ne.s32.totalorder %s277, %s291
      %p293 = scmp.eq.s32.totalorder %s36, 0
      %p294 = por %p292, %p293
      %s296 = sadd.s32 %s295, 1
      %p299 = scmp.eq.s32.totalorder %s30, 1
      %p300 = scmp.ne.s32.totalorder %s295, %s297
      %p301 = scmp.eq.s32.totalorder %s30, 0
      %p302 = por %p300, %p301
      %p303 = scmp.ne.s32.totalorder %s295, %s297
      %p304 = scmp.eq.s32.totalorder %s35, 1
      %p305 = por %p303, %p304
      %p306 = scmp.ne.s32.totalorder %s297, %s298
      %p307 = scmp.eq.s32.totalorder %s35, 0
      %p308 = por %p306, %p307
      %p309 = scmp.ne.s32.totalorder %s297, %s298
      %p310 = scmp.eq.s32.totalorder %s36, 1
      %p311 = por %p309, %p310
      %p313 = scmp.ne.s32.totalorder %s298, %s312
      %p314 = scmp.eq.s32.totalorder %s36, 0
      %p315 = por %p313, %p314
      %s317 = sadd.s32 %s316, 1
      %p320 = scmp.eq.s32.totalorder %s30, 1
      %p321 = scmp.ne.s32.totalorder %s316, %s318
      %p322 = scmp.eq.s32.totalorder %s30, 0
      %p323 = por %p321, %p322
      %p324 = scmp.ne.s32.totalorder %s316, %s318
      %p325 = scmp.eq.s32.totalorder %s35, 1
      %p326 = por %p324, %p325
      %p327 = scmp.ne.s32.totalorder %s318, %s319
      %p328 = scmp.eq.s32.totalorder %s35, 0
      %p329 = por %p327, %p328
      %p330 = scmp.ne.s32.totalorder %s318, %s319
      %p331 = scmp.eq.s32.totalorder %s36, 1
      %p332 = por %p330, %p331
      %p334 = scmp.ne.s32.totalorder %s319, %s333
      %p335 = scmp.eq.s32.totalorder %s36, 0
      %p336 = por %p334, %p335
      %s338 = sadd.s32 %s337, 1
      %p341 = scmp.eq.s32.totalorder %s30, 1
      %p342 = scmp.ne.s32.totalorder %s337, %s339
      %p343 = scmp.eq.s32.totalorder %s30, 0
      %p344 = por %p342, %p343
      %p345 = scmp.ne.s32.totalorder %s337, %s339
      %p346 = scmp.eq.s32.totalorder %s35, 1
      %p347 = por %p345, %p346
      %p348 = scmp.ne.s32.totalorder %s339, %s340
      %p349 = scmp.eq.s32.totalorder %s35, 0
      %p350 = por %p348, %p349
      %p351 = scmp.ne.s32.totalorder %s339, %s340
      %p352 = scmp.eq.s32.totalorder %s36, 1
      %p353 = por %p351, %p352
      %p355 = scmp.ne.s32.totalorder %s340, %s354
      %p356 = scmp.eq.s32.totalorder %s36, 0
      %p357 = por %p355, %p356
      %s359 = sadd.s32 %s358, 1
      %p362 = scmp.eq.s32.totalorder %s30, 1
      %p363 = scmp.ne.s32.totalorder %s358, %s360
      %p364 = scmp.eq.s32.totalorder %s30, 0
      %p365 = por %p363, %p364
      %p366 = scmp.ne.s32.totalorder %s358, %s360
      %p367 = scmp.eq.s32.totalorder %s35, 1
      %p368 = por %p366, %p367
      %p369 = scmp.ne.s32.totalorder %s360, %s361
      %p370 = scmp.eq.s32.totalorder %s35, 0
      %p371 = por %p369, %p370
      %p372 = scmp.ne.s32.totalorder %s360, %s361
      %p373 = scmp.eq.s32.totalorder %s36, 1
      %p374 = por %p372, %p373
      %p376 = scmp.ne.s32.totalorder %s361, %s375
      %p377 = scmp.eq.s32.totalorder %s36, 0
      %p378 = por %p376, %p377
      %s380 = sadd.s32 %s379, 1
      %p383 = scmp.eq.s32.totalorder %s30, 1
      %p384 = scmp.ne.s32.totalorder %s379, %s381
      %p385 = scmp.eq.s32.totalorder %s30, 0
      %p386 = por %p384, %p385
      %p387 = scmp.ne.s32.totalorder %s379, %s381
      %p388 = scmp.eq.s32.totalorder %s35, 1
      %p389 = por %p387, %p388
      %p390 = scmp.ne.s32.totalorder %s381, %s382
      %p391 = scmp.eq.s32.totalorder %s35, 0
      %p392 = por %p390, %p391
      %p393 = scmp.ne.s32.totalorder %s381, %s382
      %p394 = scmp.eq.s32.totalorder %s36, 1
      %p395 = por %p393, %p394
      %p397 = scmp.ne.s32.totalorder %s382, %s396
      %p398 = scmp.eq.s32.totalorder %s36, 0
      %p399 = por %p397, %p398
      %s401 = sadd.s32 %s400, 1
      %p404 = scmp.eq.s32.totalorder %s30, 1
      %p405 = scmp.ne.s32.totalorder %s400, %s402
      %p406 = scmp.eq.s32.totalorder %s30, 0
      %p407 = por %p405, %p406
      %p408 = scmp.ne.s32.totalorder %s400, %s402
      %p409 = scmp.eq.s32.totalorder %s35, 1
      %p410 = por %p408, %p409
      %p411 = scmp.ne.s32.totalorder %s402, %s403
      %p412 = scmp.eq.s32.totalorder %s35, 0
      %p413 = por %p411, %p412
      %p414 = scmp.ne.s32.totalorder %s402, %s403
      %p415 = scmp.eq.s32.totalorder %s36, 1
      %p416 = por %p414, %p415
      %p418 = scmp.ne.s32.totalorder %s403, %s417
      %p419 = scmp.eq.s32.totalorder %s36, 0
      %p420 = por %p418, %p419
      %s422 = sadd.s32 %s421, 1
      %p425 = scmp.eq.s32.totalorder %s30, 1
      %p426 = scmp.ne.s32.totalorder %s421, %s423
      %p427 = scmp.eq.s32.totalorder %s30, 0
      %p428 = por %p426, %p427
      %p429 = scmp.ne.s32.totalorder %s421, %s423
      %p430 = scmp.eq.s32.totalorder %s35, 1
      %p431 = por %p429, %p430
      %p432 = scmp.ne.s32.totalorder %s423, %s424
      %p433 = scmp.eq.s32.totalorder %s35, 0
      %p434 = por %p432, %p433
      %p435 = scmp.ne.s32.totalorder %s423, %s424
      %p436 = scmp.eq.s32.totalorder %s36, 1
      %p437 = por %p435, %p436
      %p439 = scmp.ne.s32.totalorder %s424, %s438
      %p440 = scmp.eq.s32.totalorder %s36, 0
      %p441 = por %p439, %p440
      %s443 = sadd.s32 %s442, 1
      %p446 = scmp.eq.s32.totalorder %s30, 1
      %p447 = scmp.ne.s32.totalorder %s442, %s444
      %p448 = scmp.eq.s32.totalorder %s30, 0
      %p449 = por %p447, %p448
      %p450 = scmp.ne.s32.totalorder %s442, %s444
      %p451 = scmp.eq.s32.totalorder %s35, 1
      %p452 = por %p450, %p451
      %p453 = scmp.ne.s32.totalorder %s444, %s445
      %p454 = scmp.eq.s32.totalorder %s35, 0
      %p455 = por %p453, %p454
      %p456 = scmp.ne.s32.totalorder %s444, %s445
      %p457 = scmp.eq.s32.totalorder %s36, 1
      %p458 = por %p456, %p457
      %p460 = scmp.ne.s32.totalorder %s445, %s459
      %p461 = scmp.eq.s32.totalorder %s36, 0
      %p462 = por %p460, %p461
      %s464 = sadd.s32 %s463, 1
      %p467 = scmp.eq.s32.totalorder %s30, 1
      %p468 = scmp.ne.s32.totalorder %s463, %s465
      %p469 = scmp.eq.s32.totalorder %s30, 0
      %p470 = por %p468, %p469
      %p471 = scmp.ne.s32.totalorder %s463, %s465
      %p472 = scmp.eq.s32.totalorder %s35, 1
      %p473 = por %p471, %p472
      %p474 = scmp.ne.s32.totalorder %s465, %s466
      %p475 = scmp.eq.s32.totalorder %s35, 0
      %p476 = por %p474, %p475
      %p477 = scmp.ne.s32.totalorder %s465, %s466
      %p478 = scmp.eq.s32.totalorder %s36, 1
      %p479 = por %p477, %p478
      %p481 = scmp.ne.s32.totalorder %s466, %s480
      %p482 = scmp.eq.s32.totalorder %s36, 0
      %p483 = por %p481, %p482
      %s484 = ssub.s32 %s30, %s37
      %p485 = scmp.eq.s32.totalorder %s484, 0
      %s487 = sadd.s32 %s486, 1
      %s488 = scalar_select %p485, %s486, %s487
      %p491 = pneg %p485
      %p492 = scmp.eq.s32.totalorder %s30, 1
      %p493 = por %p491, %p492
      %p494 = scmp.ne.s32.totalorder %s486, %s489
      %p495 = scmp.eq.s32.totalorder %s30, 0
      %p496 = por %p494, %p495
      %p497 = scmp.ne.s32.totalorder %s486, %s489
      %p498 = scmp.eq.s32.totalorder %s35, 1
      %p499 = por %p497, %p498
      %p500 = scmp.ne.s32.totalorder %s489, %s490
      %p501 = scmp.eq.s32.totalorder %s35, 0
      %p502 = por %p500, %p501
      %p503 = scmp.ne.s32.totalorder %s489, %s490
      %p504 = scmp.eq.s32.totalorder %s36, 1
      %p505 = por %p503, %p504
      %p507 = scmp.ne.s32.totalorder %s490, %s506
      %p508 = scmp.eq.s32.totalorder %s36, 0
      %p509 = por %p507, %p508
      %p510 = scmp.le.s32.totalorder 1, %s30
      %p511 = scmp.lt.s32.totalorder %s30, 3
      %p512 = pnand %p510, %p511
      %p513 = pneg %p512
      // Predicated region
      $region9: #{tpu_custom_call.1} parent=5 // pred_check
        _
      $region10: #{tpu_custom_call.1} parent=5 // pred_check_branch
        %515 = sbr.rel (%p512) target = $region12
      $region11: #{tpu_custom_call.1} parent=5 // pred_region
        %s516 = ssub.s32 %s30, 1
        // Predicated region
        $region13: #{tpu_custom_call.1} parent=11 // pred_check
          %p517 = pneg %p77
        $region14: #{tpu_custom_call.1} parent=11 // pred_check_branch
          %519 = sbr.rel (%p517) target = $region16
        $region15: #{tpu_custom_call.1} parent=11 // pred_region
          _
        $region16: #{tpu_custom_call.1} parent=11 // pred_fallthru
          _
        // Predicated region
        $region17: #{tpu_custom_call.1} parent=11 // pred_check
          %p520 = pneg %p98
        $region18: #{tpu_custom_call.1} parent=11 // pred_check_branch
          %522 = sbr.rel (%p520) target = $region20
        $region19: #{tpu_custom_call.1} parent=11 // pred_region
          _
        $region20: #{tpu_custom_call.1} parent=11 // pred_fallthru
          _
        // Predicated region
        $region21: #{tpu_custom_call.1} parent=11 // pred_check
          %p523 = pneg %p119
        $region22: #{tpu_custom_call.1} parent=11 // pred_check_branch
          %525 = sbr.rel (%p523) target = $region24
        $region23: #{tpu_custom_call.1} parent=11 // pred_region
          _
        $region24: #{tpu_custom_call.1} parent=11 // pred_fallthru
          _
        // Predicated region
        $region25: #{tpu_custom_call.1} parent=11 // pred_check
          %p526 = pneg %p140
        $region26: #{tpu_custom_call.1} parent=11 // pred_check_branch
          %528 = sbr.rel (%p526) target = $region28
        $region27: #{tpu_custom_call.1} parent=11 // pred_region
          _
        $region28: #{tpu_custom_call.1} parent=11 // pred_fallthru
          _
        // Predicated region
        $region29: #{tpu_custom_call.1} parent=11 // pred_check
          %p529 = pneg %p161
        $region30: #{tpu_custom_call.1} parent=11 // pred_check_branch
          %531 = sbr.rel (%p529) target = $region32
        $region31: #{tpu_custom_call.1} parent=11 // pred_region
          _
        $region32: #{tpu_custom_call.1} parent=11 // pred_fallthru
          _
        // Predicated region
        $region33: #{tpu_custom_call.1} parent=11 // pred_check
          %p532 = pneg %p182
        $region34: #{tpu_custom_call.1} parent=11 // pred_check_branch
          %534 = sbr.rel (%p532) target = $region36
        $region35: #{tpu_custom_call.1} parent=11 // pred_region
          _
        $region36: #{tpu_custom_call.1} parent=11 // pred_fallthru
          _
        // Predicated region
        $region37: #{tpu_custom_call.1} parent=11 // pred_check
          %p535 = pneg %p203
        $region38: #{tpu_custom_call.1} parent=11 // pred_check_branch
          %537 = sbr.rel (%p535) target = $region40
        $region39: #{tpu_custom_call.1} parent=11 // pred_region
          _
        $region40: #{tpu_custom_call.1} parent=11 // pred_fallthru
          _
        // Predicated region
        $region41: #{tpu_custom_call.1} parent=11 // pred_check
          %p538 = pneg %p224
        $region42: #{tpu_custom_call.1} parent=11 // pred_check_branch
          %540 = sbr.rel (%p538) target = $region44
        $region43: #{tpu_custom_call.1} parent=11 // pred_region
          _
        $region44: #{tpu_custom_call.1} parent=11 // pred_fallthru
          _
        // Predicated region
        $region45: #{tpu_custom_call.1} parent=11 // pred_check
          %p541 = pneg %p245
        $region46: #{tpu_custom_call.1} parent=11 // pred_check_branch
          %543 = sbr.rel (%p541) target = $region48
        $region47: #{tpu_custom_call.1} parent=11 // pred_region
          _
        $region48: #{tpu_custom_call.1} parent=11 // pred_fallthru
          _
        // Predicated region
        $region49: #{tpu_custom_call.1} parent=11 // pred_check
          %p544 = pneg %p266
        $region50: #{tpu_custom_call.1} parent=11 // pred_check_branch
          %546 = sbr.rel (%p544) target = $region52
        $region51: #{tpu_custom_call.1} parent=11 // pred_region
          _
        $region52: #{tpu_custom_call.1} parent=11 // pred_fallthru
          _
        // Predicated region
        $region53: #{tpu_custom_call.1} parent=11 // pred_check
          %p547 = pneg %p287
        $region54: #{tpu_custom_call.1} parent=11 // pred_check_branch
          %549 = sbr.rel (%p547) target = $region56
        $region55: #{tpu_custom_call.1} parent=11 // pred_region
          _
        $region56: #{tpu_custom_call.1} parent=11 // pred_fallthru
          _
        // Predicated region
        $region57: #{tpu_custom_call.1} parent=11 // pred_check
          %p550 = pneg %p308
        $region58: #{tpu_custom_call.1} parent=11 // pred_check_branch
          %552 = sbr.rel (%p550) target = $region60
        $region59: #{tpu_custom_call.1} parent=11 // pred_region
          _
        $region60: #{tpu_custom_call.1} parent=11 // pred_fallthru
          _
        // Predicated region
        $region61: #{tpu_custom_call.1} parent=11 // pred_check
          %p553 = pneg %p329
        $region62: #{tpu_custom_call.1} parent=11 // pred_check_branch
          %555 = sbr.rel (%p553) target = $region64
        $region63: #{tpu_custom_call.1} parent=11 // pred_region
          _
        $region64: #{tpu_custom_call.1} parent=11 // pred_fallthru
          _
        // Predicated region
        $region65: #{tpu_custom_call.1} parent=11 // pred_check
          %p556 = pneg %p350
        $region66: #{tpu_custom_call.1} parent=11 // pred_check_branch
          %558 = sbr.rel (%p556) target = $region68
        $region67: #{tpu_custom_call.1} parent=11 // pred_region
          _
        $region68: #{tpu_custom_call.1} parent=11 // pred_fallthru
          _
        // Predicated region
        $region69: #{tpu_custom_call.1} parent=11 // pred_check
          %p559 = pneg %p371
        $region70: #{tpu_custom_call.1} parent=11 // pred_check_branch
          %561 = sbr.rel (%p559) target = $region72
        $region71: #{tpu_custom_call.1} parent=11 // pred_region
          _
        $region72: #{tpu_custom_call.1} parent=11 // pred_fallthru
          _
        // Predicated region
        $region73: #{tpu_custom_call.1} parent=11 // pred_check
          %p562 = pneg %p392
        $region74: #{tpu_custom_call.1} parent=11 // pred_check_branch
          %564 = sbr.rel (%p562) target = $region76
        $region75: #{tpu_custom_call.1} parent=11 // pred_region
          _
        $region76: #{tpu_custom_call.1} parent=11 // pred_fallthru
          _
        // Predicated region
        $region77: #{tpu_custom_call.1} parent=11 // pred_check
          %p565 = pneg %p413
        $region78: #{tpu_custom_call.1} parent=11 // pred_check_branch
          %567 = sbr.rel (%p565) target = $region80
        $region79: #{tpu_custom_call.1} parent=11 // pred_region
          _
        $region80: #{tpu_custom_call.1} parent=11 // pred_fallthru
          _
        // Predicated region
        $region81: #{tpu_custom_call.1} parent=11 // pred_check
          %p568 = pneg %p434
        $region82: #{tpu_custom_call.1} parent=11 // pred_check_branch
          %570 = sbr.rel (%p568) target = $region84
        $region83: #{tpu_custom_call.1} parent=11 // pred_region
          _
        $region84: #{tpu_custom_call.1} parent=11 // pred_fallthru
          _
        // Predicated region
        $region85: #{tpu_custom_call.1} parent=11 // pred_check
          %p571 = pneg %p455
        $region86: #{tpu_custom_call.1} parent=11 // pred_check_branch
          %573 = sbr.rel (%p571) target = $region88
        $region87: #{tpu_custom_call.1} parent=11 // pred_region
          _
        $region88: #{tpu_custom_call.1} parent=11 // pred_fallthru
          _
        // Predicated region
        $region89: #{tpu_custom_call.1} parent=11 // pred_check
          %p574 = pneg %p476
        $region90: #{tpu_custom_call.1} parent=11 // pred_check_branch
          %576 = sbr.rel (%p574) target = $region92
        $region91: #{tpu_custom_call.1} parent=11 // pred_region
          _
        $region92: #{tpu_custom_call.1} parent=11 // pred_fallthru
          _
      $region12: #{tpu_custom_call.1} parent=5 // pred_fallthru
        _
      %p577 = scmp.lt.s32.totalorder %s30, 2
      // Predicated region
      $region93: #{tpu_custom_call.1} parent=5 // pred_check
        %p578 = pneg %p577
      $region94: #{tpu_custom_call.1} parent=5 // pred_check_branch
        %580 = sbr.rel (%p578) target = $region96
      $region95: #{tpu_custom_call.1} parent=5 // pred_region
        // Predicated region
        $region97: #{tpu_custom_call.1} parent=95 // pred_check
          %p581 = pneg %p50
        $region98: #{tpu_custom_call.1} parent=95 // pred_check_branch
          %583 = sbr.rel (%p581) target = $region100
        $region99: #{tpu_custom_call.1} parent=95 // pred_region
          %s584 = smul.u32 32, %s30
          %p585 = scmp.lt.s32.totalorder %s584, 63
          %s586 = scalar_select %p585, %s584, 63
          %s587 = smul.addr %s586, 8
          %s588 = scalar_lea.vmem %s0, %s587
          %s589 = smul.u32 32, %s30
        $region100: #{tpu_custom_call.1} parent=95 // pred_fallthru
          _
      $region96: #{tpu_custom_call.1} parent=5 // pred_fallthru
        _
      %p590 = scmp.le.s32.totalorder 1, %s30
      %p591 = scmp.lt.s32.totalorder %s30, 3
      %p592 = pnand %p590, %p591
      %p593 = pneg %p592
      // Predicated region
      $region101: #{tpu_custom_call.1} parent=5 // pred_check
        _
      $region102: #{tpu_custom_call.1} parent=5 // pred_check_branch
        %595 = sbr.rel (%p592) target = $region104
      $region103: #{tpu_custom_call.1} parent=5 // pred_region
        %s596 = ssub.s32 %s30, 1
        %s597 = smul.u32 32, %s35
        %p598 = scmp.lt.s32.totalorder %s597, 63
        %s599 = scalar_select %p598, %s597, 63
        %s600 = smul.addr %s599, 8
        %s601 = scalar_lea.vmem %s0, %s600
        %p602 = pneg %p56
        %p603 = pneg %p53
        %p604 = pneg %p77
        %p605 = pneg %p74
        %p606 = pneg %p98
        %p607 = pneg %p95
        %p608 = pneg %p119
        %p609 = pneg %p116
        %p610 = pneg %p140
        %p611 = pneg %p137
        %p612 = pneg %p161
        %p613 = pneg %p158
        %p614 = pneg %p182
        %p615 = pneg %p179
        %p616 = pneg %p203
        %p617 = pneg %p200
        %p618 = pneg %p224
        %p619 = pneg %p221
        %p620 = pneg %p245
        %p621 = pneg %p242
        %p622 = pneg %p266
        %p623 = pneg %p263
        %p624 = pneg %p287
        %p625 = pneg %p284
        %p626 = pneg %p308
        %p627 = pneg %p305
        %p628 = pneg %p329
        %p629 = pneg %p326
        %p630 = pneg %p350
        %p631 = pneg %p347
        %p632 = pneg %p371
        %p633 = pneg %p368
        %p634 = pneg %p392
        %p635 = pneg %p389
        %p636 = pneg %p413
        %p637 = pneg %p410
        %p638 = pneg %p434
        %p639 = pneg %p431
        %p640 = pneg %p455
        %p641 = pneg %p452
        %p642 = pneg %p476
        %p643 = pneg %p473
        %p644 = pneg %p502
        %p645 = pneg %p499
        %s646 = sand.u32 %s489, 1
        %s647 = scalar_lea.sflag [#allocation3], %s646
        %s648 = sand.u32 %s489, 1
        %s649 = smul.addr %s648, 16
        %s650 = scalar_lea.vmem [#allocation2], %s649
        %s651 = smul.u32 32, %s35
        %p652 = scmp.lt.s32.totalorder %s651, 63
        %s653 = scalar_select %p652, %s651, 63
        %s654 = smul.addr %s653, 8
        %s655 = scalar_lea.vmem %s0, %s654
        %s656 = smul.u32 32, %s35
        %s657 = smul.u32 2, %s35
        %v658 = vld [vmem:[%s655] sm:$0xff]
        %v659 = vld [vmem:[%s655 + $0x8] sm:$0xff]
        %v660 = vld [vmem:[%s655 + $0x10] sm:$0xff]
        %v661 = vld [vmem:[%s655 + $0x18] sm:$0xff]
        %v662 = vld [vmem:[%s655 + $0x20] sm:$0xff]
        %v663 = vld [vmem:[%s655 + $0x28] sm:$0xff]
        %v664 = vld [vmem:[%s655 + $0x30] sm:$0xff]
        %v665 = vld [vmem:[%s655 + $0x38] sm:$0xff]
        %v666 = vld [vmem:[%s655 + $0x40] sm:$0xff]
        %v667 = vld [vmem:[%s655 + $0x48] sm:$0xff]
        %v668 = vld [vmem:[%s655 + $0x50] sm:$0xff]
        %v669 = vld [vmem:[%s655 + $0x58] sm:$0xff]
        %v670 = vld [vmem:[%s655 + $0x60] sm:$0xff]
        %v671 = vld [vmem:[%s655 + $0x68] sm:$0xff]
        %v672 = vld [vmem:[%s655 + $0x70] sm:$0xff]
        %v673 = vld [vmem:[%s655 + $0x78] sm:$0xff]
        %v674 = vld [vmem:[%s655 + $0x80] sm:$0xff]
        %v675 = vld [vmem:[%s655 + $0x88] sm:$0xff]
        %v676 = vld [vmem:[%s655 + $0x90] sm:$0xff]
        %v677 = vld [vmem:[%s655 + $0x98] sm:$0xff]
        %v678 = vld [vmem:[%s655 + $0xa0] sm:$0xff]
        %v679 = vld [vmem:[%s655 + $0xa8] sm:$0xff]
        %v680 = vld [vmem:[%s655 + $0xb0] sm:$0xff]
        %v681 = vld [vmem:[%s655 + $0xb8] sm:$0xff]
        %v682 = vld [vmem:[%s655 + $0xc0] sm:$0xff]
        %v683 = vld [vmem:[%s655 + $0xc8] sm:$0xff]
        %v684 = vld [vmem:[%s655 + $0xd0] sm:$0xff]
        %v685 = vld [vmem:[%s655 + $0xd8] sm:$0xff]
        %v686 = vld [vmem:[%s655 + $0xe0] sm:$0xff]
        %v687 = vld [vmem:[%s655 + $0xe8] sm:$0xff]
        %v688 = vld [vmem:[%s655 + $0xf0] sm:$0xff]
        %v689 = vld [vmem:[%s655 + $0xf8] sm:$0xff]
        %v690 = vlaneseq
        %v691 = vand.u32 %v690, 127
        %692 = vset.pattern.permute.xlu0 0
        %693 = vperm.xlu0 %692, %v658
        %v694 = vpop.permute.xlu0 %693
        %695 = vset.pattern.permute.xlu0 0
        %696 = vperm.xlu0 %695, %v659
        %v697 = vpop.permute.xlu0 %696
        %698 = vset.pattern.permute.xlu0 0
        %699 = vperm.xlu0 %698, %v660
        %v700 = vpop.permute.xlu0 %699
        %701 = vset.pattern.permute.xlu0 0
        %702 = vperm.xlu0 %701, %v661
        %v703 = vpop.permute.xlu0 %702
        %704 = vset.pattern.permute.xlu0 0
        %705 = vperm.xlu0 %704, %v662
        %v706 = vpop.permute.xlu0 %705
        %707 = vset.pattern.permute.xlu0 0
        %708 = vperm.xlu0 %707, %v663
        %v709 = vpop.permute.xlu0 %708
        %710 = vset.pattern.permute.xlu0 0
        %711 = vperm.xlu0 %710, %v664
        %v712 = vpop.permute.xlu0 %711
        %713 = vset.pattern.permute.xlu0 0
        %714 = vperm.xlu0 %713, %v665
        %v715 = vpop.permute.xlu0 %714
        %716 = vset.pattern.permute.xlu0 0
        %717 = vperm.xlu0 %716, %v666
        %v718 = vpop.permute.xlu0 %717
        %719 = vset.pattern.permute.xlu0 0
        %720 = vperm.xlu0 %719, %v667
        %v721 = vpop.permute.xlu0 %720
        %722 = vset.pattern.permute.xlu0 0
        %723 = vperm.xlu0 %722, %v668
        %v724 = vpop.permute.xlu0 %723
        %725 = vset.pattern.permute.xlu0 0
        %726 = vperm.xlu0 %725, %v669
        %v727 = vpop.permute.xlu0 %726
        %728 = vset.pattern.permute.xlu0 0
        %729 = vperm.xlu0 %728, %v670
        %v730 = vpop.permute.xlu0 %729
        %731 = vset.pattern.permute.xlu0 0
        %732 = vperm.xlu0 %731, %v671
        %v733 = vpop.permute.xlu0 %732
        %734 = vset.pattern.permute.xlu0 0
        %735 = vperm.xlu0 %734, %v672
        %v736 = vpop.permute.xlu0 %735
        %737 = vset.pattern.permute.xlu0 0
        %738 = vperm.xlu0 %737, %v673
        %v739 = vpop.permute.xlu0 %738
        %740 = vset.pattern.permute.xlu0 0
        %741 = vperm.xlu0 %740, %v674
        %v742 = vpop.permute.xlu0 %741
        %743 = vset.pattern.permute.xlu0 0
        %744 = vperm.xlu0 %743, %v675
        %v745 = vpop.permute.xlu0 %744
        %746 = vset.pattern.permute.xlu0 0
        %747 = vperm.xlu0 %746, %v676
        %v748 = vpop.permute.xlu0 %747
        %749 = vset.pattern.permute.xlu0 0
        %750 = vperm.xlu0 %749, %v677
        %v751 = vpop.permute.xlu0 %750
        %752 = vset.pattern.permute.xlu0 0
        %753 = vperm.xlu0 %752, %v678
        %v754 = vpop.permute.xlu0 %753
        %755 = vset.pattern.permute.xlu0 0
        %756 = vperm.xlu0 %755, %v679
        %v757 = vpop.permute.xlu0 %756
        %758 = vset.pattern.permute.xlu0 0
        %759 = vperm.xlu0 %758, %v680
        %v760 = vpop.permute.xlu0 %759
        %761 = vset.pattern.permute.xlu0 0
        %762 = vperm.xlu0 %761, %v681
        %v763 = vpop.permute.xlu0 %762
        %764 = vset.pattern.permute.xlu0 0
        %765 = vperm.xlu0 %764, %v682
        %v766 = vpop.permute.xlu0 %765
        %767 = vset.pattern.permute.xlu0 0
        %768 = vperm.xlu0 %767, %v683
        %v769 = vpop.permute.xlu0 %768
        %770 = vset.pattern.permute.xlu0 0
        %771 = vperm.xlu0 %770, %v684
        %v772 = vpop.permute.xlu0 %771
        %773 = vset.pattern.permute.xlu0 0
        %774 = vperm.xlu0 %773, %v685
        %v775 = vpop.permute.xlu0 %774
        %776 = vset.pattern.permute.xlu0 0
        %777 = vperm.xlu0 %776, %v686
        %v778 = vpop.permute.xlu0 %777
        %779 = vset.pattern.permute.xlu0 0
        %780 = vperm.xlu0 %779, %v687
        %v781 = vpop.permute.xlu0 %780
        %782 = vset.pattern.permute.xlu0 0
        %783 = vperm.xlu0 %782, %v688
        %v784 = vpop.permute.xlu0 %783
        %785 = vset.pattern.permute.xlu0 0
        %786 = vperm.xlu0 %785, %v689
        %v787 = vpop.permute.xlu0 %786
        %vm788 = vcmp.eq.s32.totalorder %v694, %v691
        %vm789 = vcmp.eq.s32.totalorder %v697, %v691
        %vm790 = vcmp.eq.s32.totalorder %v700, %v691
        %vm791 = vcmp.eq.s32.totalorder %v703, %v691
        %vm792 = vcmp.eq.s32.totalorder %v706, %v691
        %vm793 = vcmp.eq.s32.totalorder %v709, %v691
        %vm794 = vcmp.eq.s32.totalorder %v712, %v691
        %vm795 = vcmp.eq.s32.totalorder %v715, %v691
        %vm796 = vcmp.eq.s32.totalorder %v718, %v691
        %vm797 = vcmp.eq.s32.totalorder %v721, %v691
        %vm798 = vcmp.eq.s32.totalorder %v724, %v691
        %vm799 = vcmp.eq.s32.totalorder %v727, %v691
        %vm800 = vcmp.eq.s32.totalorder %v730, %v691
        %vm801 = vcmp.eq.s32.totalorder %v733, %v691
        %vm802 = vcmp.eq.s32.totalorder %v736, %v691
        %vm803 = vcmp.eq.s32.totalorder %v739, %v691
        %vm804 = vcmp.eq.s32.totalorder %v742, %v691
        %vm805 = vcmp.eq.s32.totalorder %v745, %v691
        %vm806 = vcmp.eq.s32.totalorder %v748, %v691
        %vm807 = vcmp.eq.s32.totalorder %v751, %v691
        %vm808 = vcmp.eq.s32.totalorder %v754, %v691
        %vm809 = vcmp.eq.s32.totalorder %v757, %v691
        %vm810 = vcmp.eq.s32.totalorder %v760, %v691
        %vm811 = vcmp.eq.s32.totalorder %v763, %v691
        %vm812 = vcmp.eq.s32.totalorder %v766, %v691
        %vm813 = vcmp.eq.s32.totalorder %v769, %v691
        %vm814 = vcmp.eq.s32.totalorder %v772, %v691
        %vm815 = vcmp.eq.s32.totalorder %v775, %v691
        %vm816 = vcmp.eq.s32.totalorder %v778, %v691
        %vm817 = vcmp.eq.s32.totalorder %v781, %v691
        %vm818 = vcmp.eq.s32.totalorder %v784, %v691
        %vm819 = vcmp.eq.s32.totalorder %v787, %v691
        %v820 = vsel %vm788, 1, 0
        %v821 = vsel %vm789, 1, 0
        %v822 = vsel %vm790, 1, 0
        %v823 = vsel %vm791, 1, 0
        %v824 = vsel %vm792, 1, 0
        %v825 = vsel %vm793, 1, 0
        %v826 = vsel %vm794, 1, 0
        %v827 = vsel %vm795, 1, 0
        %v828 = vsel %vm796, 1, 0
        %v829 = vsel %vm797, 1, 0
        %v830 = vsel %vm798, 1, 0
        %v831 = vsel %vm799, 1, 0
        %v832 = vsel %vm800, 1, 0
        %v833 = vsel %vm801, 1, 0
        %v834 = vsel %vm802, 1, 0
        %v835 = vsel %vm803, 1, 0
        %v836 = vsel %vm804, 1, 0
        %v837 = vsel %vm805, 1, 0
        %v838 = vsel %vm806, 1, 0
        %v839 = vsel %vm807, 1, 0
        %v840 = vsel %vm808, 1, 0
        %v841 = vsel %vm809, 1, 0
        %v842 = vsel %vm810, 1, 0
        %v843 = vsel %vm811, 1, 0
        %v844 = vsel %vm812, 1, 0
        %v845 = vsel %vm813, 1, 0
        %v846 = vsel %vm814, 1, 0
        %v847 = vsel %vm815, 1, 0
        %v848 = vsel %vm816, 1, 0
        %v849 = vsel %vm817, 1, 0
        %v850 = vsel %vm818, 1, 0
        %v851 = vsel %vm819, 1, 0
        %v852 = vcvt.s32.f32 %v820
        %v853 = vcvt.s32.f32 %v821
        %v854 = vcvt.s32.f32 %v822
        %v855 = vcvt.s32.f32 %v823
        %v856 = vcvt.s32.f32 %v824
        %v857 = vcvt.s32.f32 %v825
        %v858 = vcvt.s32.f32 %v826
        %v859 = vcvt.s32.f32 %v827
        %v860 = vcvt.s32.f32 %v828
        %v861 = vcvt.s32.f32 %v829
        %v862 = vcvt.s32.f32 %v830
        %v863 = vcvt.s32.f32 %v831
        %v864 = vcvt.s32.f32 %v832
        %v865 = vcvt.s32.f32 %v833
        %v866 = vcvt.s32.f32 %v834
        %v867 = vcvt.s32.f32 %v835
        %v868 = vcvt.s32.f32 %v836
        %v869 = vcvt.s32.f32 %v837
        %v870 = vcvt.s32.f32 %v838
        %v871 = vcvt.s32.f32 %v839
        %v872 = vcvt.s32.f32 %v840
        %v873 = vcvt.s32.f32 %v841
        %v874 = vcvt.s32.f32 %v842
        %v875 = vcvt.s32.f32 %v843
        %v876 = vcvt.s32.f32 %v844
        %v877 = vcvt.s32.f32 %v845
        %v878 = vcvt.s32.f32 %v846
        %v879 = vcvt.s32.f32 %v847
        %v880 = vcvt.s32.f32 %v848
        %v881 = vcvt.s32.f32 %v849
        %v882 = vcvt.s32.f32 %v850
        %v883 = vcvt.s32.f32 %v851
        %v884 = vld [vmem:[%s1] sm:$0xff]
        %v885 = vld [vmem:[%s1 + $0x8] sm:$0xff]
        %v886 = vld [vmem:[%s1 + $0x10] sm:$0xff]
        %v887 = vld [vmem:[%s1 + $0x18] sm:$0xff]
        %v888 = vld [vmem:[%s1 + $0x20] sm:$0xff]
        %v889 = vld [vmem:[%s1 + $0x28] sm:$0xff]
        %v890 = vld [vmem:[%s1 + $0x30] sm:$0xff]
        %v891 = vld [vmem:[%s1 + $0x38] sm:$0xff]
        %v892 = vld [vmem:[%s1 + $0x40] sm:$0xff]
        %v893 = vld [vmem:[%s1 + $0x48] sm:$0xff]
        %v894 = vld [vmem:[%s1 + $0x50] sm:$0xff]
        %v895 = vld [vmem:[%s1 + $0x58] sm:$0xff]
        %v896 = vld [vmem:[%s1 + $0x60] sm:$0xff]
        %v897 = vld [vmem:[%s1 + $0x68] sm:$0xff]
        %v898 = vld [vmem:[%s1 + $0x70] sm:$0xff]
        %v899 = vld [vmem:[%s1 + $0x78] sm:$0xff]
        %v900 = vld [vmem:[%s2] sm:$0xff]
        %v901 = vld [vmem:[%s2 + $0x8] sm:$0xff]
        %v902 = vld [vmem:[%s2 + $0x10] sm:$0xff]
        %v903 = vld [vmem:[%s2 + $0x18] sm:$0xff]
        %v904 = vld [vmem:[%s2 + $0x20] sm:$0xff]
        %v905 = vld [vmem:[%s2 + $0x28] sm:$0xff]
        %v906 = vld [vmem:[%s2 + $0x30] sm:$0xff]
        %v907 = vld [vmem:[%s2 + $0x38] sm:$0xff]
        %v908 = vld [vmem:[%s2 + $0x40] sm:$0xff]
        %v909 = vld [vmem:[%s2 + $0x48] sm:$0xff]
        %v910 = vld [vmem:[%s2 + $0x50] sm:$0xff]
        %v911 = vld [vmem:[%s2 + $0x58] sm:$0xff]
        %v912 = vld [vmem:[%s2 + $0x60] sm:$0xff]
        %v913 = vld [vmem:[%s2 + $0x68] sm:$0xff]
        %v914 = vld [vmem:[%s2 + $0x70] sm:$0xff]
        %v915 = vld [vmem:[%s2 + $0x78] sm:$0xff]
        %v916 = vld [vmem:[%s2 + $0x80] sm:$0xff]
        %v917 = vld [vmem:[%s2 + $0x88] sm:$0xff]
        %v918 = vld [vmem:[%s2 + $0x90] sm:$0xff]
        %v919 = vld [vmem:[%s2 + $0x98] sm:$0xff]
        %v920 = vld [vmem:[%s2 + $0xa0] sm:$0xff]
        %v921 = vld [vmem:[%s2 + $0xa8] sm:$0xff]
        %v922 = vld [vmem:[%s2 + $0xb0] sm:$0xff]
        %v923 = vld [vmem:[%s2 + $0xb8] sm:$0xff]
        %v924 = vld [vmem:[%s2 + $0xc0] sm:$0xff]
        %v925 = vld [vmem:[%s2 + $0xc8] sm:$0xff]
        %v926 = vld [vmem:[%s2 + $0xd0] sm:$0xff]
        %v927 = vld [vmem:[%s2 + $0xd8] sm:$0xff]
        %v928 = vld [vmem:[%s2 + $0xe0] sm:$0xff]
        %v929 = vld [vmem:[%s2 + $0xe8] sm:$0xff]
        %v930 = vld [vmem:[%s2 + $0xf0] sm:$0xff]
        %v931 = vld [vmem:[%s2 + $0xf8] sm:$0xff]
        %932 = vmatprep.subr.mxu0 0.0
        %933 = vmatpush1.msra.mxu0 %v884
        %934 = vmatprep.subr.mxu0 0.0
        %935 = vmatpush1.msra.mxu0 %v885
        %936 = vmatprep.subr.mxu0 0.0
        %937 = vmatpush1.msra.mxu0 %v886
        %938 = vmatprep.subr.mxu0 0.0
        %939 = vmatpush1.msra.mxu0 %v887
        %940 = vmatprep.subr.mxu0 0.0
        %941 = vmatpush1.msra.mxu0 %v888
        %942 = vmatprep.subr.mxu0 0.0
        %943 = vmatpush1.msra.mxu0 %v889
        %944 = vmatprep.subr.mxu0 0.0
        %945 = vmatpush1.msra.mxu0 %v890
        %946 = vmatprep.subr.mxu0 0.0
        %947 = vmatpush1.msra.mxu0 %v891
        %948 = vmatprep.subr.mxu0 0.0
        %949 = vmatpush1.msra.mxu0 %v892
        %950 = vmatprep.subr.mxu0 0.0
        %951 = vmatpush1.msra.mxu0 %v893
        %952 = vmatprep.subr.mxu0 0.0
        %953 = vmatpush1.msra.mxu0 %v894
        %954 = vmatprep.subr.mxu0 0.0
        %955 = vmatpush1.msra.mxu0 %v895
        %956 = vmatprep.subr.mxu0 0.0
        %957 = vmatpush1.msra.mxu0 %v896
        %958 = vmatprep.subr.mxu0 0.0
        %959 = vmatpush1.msra.mxu0 %v897
        %960 = vmatprep.subr.mxu0 0.0
        %961 = vmatpush1.msra.mxu0 %v898
        %962 = vmatprep.subr.mxu0 0.0
        %963 = vmatpush1.msra.mxu0 %v899
        %964 = vmatprep.subr.mxu0 0.0
        %965 = vmatpush1.msra.mxu0 0.0
        %966 = vmatprep.subr.mxu0 0.0
        %967 = vmatpush1.msra.mxu0 0.0
        %968 = vmatprep.subr.mxu0 0.0
        %969 = vmatpush1.msra.mxu0 0.0
        %970 = vmatprep.subr.mxu0 0.0
        %971 = vmatpush1.msra.mxu0 0.0
        %972 = vmatprep.subr.mxu0 0.0
        %973 = vmatpush1.msra.mxu0 0.0
        %974 = vmatprep.subr.mxu0 0.0
        %975 = vmatpush1.msra.mxu0 0.0
        %976 = vmatprep.subr.mxu0 0.0
        %977 = vmatpush1.msra.mxu0 0.0
        %978 = vmatprep.subr.mxu0 0.0
        %979 = vmatpush1.msra.mxu0 0.0
        %980 = vmatprep.subr.mxu0 0.0
        %981 = vmatpush1.msra.mxu0 0.0
        %982 = vmatprep.subr.mxu0 0.0
        %983 = vmatpush1.msra.mxu0 0.0
        %984 = vmatprep.subr.mxu0 0.0
        %985 = vmatpush1.msra.mxu0 0.0
        %986 = vmatprep.subr.mxu0 0.0
        %987 = vmatpush1.msra.mxu0 0.0
        %988 = vmatprep.subr.mxu0 0.0
        %989 = vmatpush1.msra.mxu0 0.0
        %990 = vmatprep.subr.mxu0 0.0
        %991 = vmatpush1.msra.mxu0 0.0
        %992 = vmatprep.subr.mxu0 0.0
        %993 = vmatpush1.msra.mxu0 0.0
        %994 = vmatprep.subr.mxu0 0.0
        %995 = vmatpush1.msra.mxu0 0.0
        %996 = vmatprep.mubr.f32.mxu0 0.0
        %997 = vmatmul.mubr.f32.gmra.mrb[0].mxu0 %v852
        %v998 = vpop.f32.mrb[0].mxu0
        %v999 = vadd.f32 %v900, %v998
        %v1000 = vpop.f32.mrb[0].mxu0
        %1001 = vmatprep.mubr.f32.mxu0 0.0
        %1002 = vmatmul.mubr.f32.gmra.mrb[0].mxu0 %v853
        %v1003 = vpop.f32.mrb[0].mxu0
        %v1004 = vadd.f32 %v901, %v1003
        %v1005 = vpop.f32.mrb[0].mxu0
        %1006 = vmatprep.mubr.f32.mxu0 0.0
        %1007 = vmatmul.mubr.f32.gmra.mrb[0].mxu0 %v854
        %v1008 = vpop.f32.mrb[0].mxu0
        %v1009 = vadd.f32 %v902, %v1008
        %v1010 = vpop.f32.mrb[0].mxu0
        %1011 = vmatprep.mubr.f32.mxu0 0.0
        %1012 = vmatmul.mubr.f32.gmra.mrb[0].mxu0 %v855
        %v1013 = vpop.f32.mrb[0].mxu0
        %v1014 = vadd.f32 %v903, %v1013
        %v1015 = vpop.f32.mrb[0].mxu0
        %1016 = vmatprep.mubr.f32.mxu0 0.0
        %1017 = vmatmul.mubr.f32.gmra.mrb[0].mxu0 %v856
        %v1018 = vpop.f32.mrb[0].mxu0
        %v1019 = vadd.f32 %v904, %v1018
        %v1020 = vpop.f32.mrb[0].mxu0
        %1021 = vmatprep.mubr.f32.mxu0 0.0
        %1022 = vmatmul.mubr.f32.gmra.mrb[0].mxu0 %v857
        %v1023 = vpop.f32.mrb[0].mxu0
        %v1024 = vadd.f32 %v905, %v1023
        %v1025 = vpop.f32.mrb[0].mxu0
        %1026 = vmatprep.mubr.f32.mxu0 0.0
        %1027 = vmatmul.mubr.f32.gmra.mrb[0].mxu0 %v858
        %v1028 = vpop.f32.mrb[0].mxu0
        %v1029 = vadd.f32 %v906, %v1028
        %v1030 = vpop.f32.mrb[0].mxu0
        %1031 = vmatprep.mubr.f32.mxu0 0.0
        %1032 = vmatmul.mubr.f32.gmra.mrb[0].mxu0 %v859
        %v1033 = vpop.f32.mrb[0].mxu0
        %v1034 = vadd.f32 %v907, %v1033
        %v1035 = vpop.f32.mrb[0].mxu0
        %1036 = vmatprep.mubr.f32.mxu0 0.0
        %1037 = vmatmul.mubr.f32.gmra.mrb[0].mxu0 %v860
        %v1038 = vpop.f32.mrb[0].mxu0
        %v1039 = vadd.f32 %v908, %v1038
        %v1040 = vpop.f32.mrb[0].mxu0
        %1041 = vmatprep.mubr.f32.mxu0 0.0
        %1042 = vmatmul.mubr.f32.gmra.mrb[0].mxu0 %v861
        %v1043 = vpop.f32.mrb[0].mxu0
        %v1044 = vadd.f32 %v909, %v1043
        %v1045 = vpop.f32.mrb[0].mxu0
        %1046 = vmatprep.mubr.f32.mxu0 0.0
        %1047 = vmatmul.mubr.f32.gmra.mrb[0].mxu0 %v862
        %v1048 = vpop.f32.mrb[0].mxu0
        %v1049 = vadd.f32 %v910, %v1048
        %v1050 = vpop.f32.mrb[0].mxu0
        %1051 = vmatprep.mubr.f32.mxu0 0.0
        %1052 = vmatmul.mubr.f32.gmra.mrb[0].mxu0 %v863
        %v1053 = vpop.f32.mrb[0].mxu0
        %v1054 = vadd.f32 %v911, %v1053
        %v1055 = vpop.f32.mrb[0].mxu0
        %1056 = vmatprep.mubr.f32.mxu0 0.0
        %1057 = vmatmul.mubr.f32.gmra.mrb[0].mxu0 %v864
        %v1058 = vpop.f32.mrb[0].mxu0
        %v1059 = vadd.f32 %v912, %v1058
        %v1060 = vpop.f32.mrb[0].mxu0
        %1061 = vmatprep.mubr.f32.mxu0 0.0
        %1062 = vmatmul.mubr.f32.gmra.mrb[0].mxu0 %v865
        %v1063 = vpop.f32.mrb[0].mxu0
        %v1064 = vadd.f32 %v913, %v1063
        %v1065 = vpop.f32.mrb[0].mxu0
        %1066 = vmatprep.mubr.f32.mxu0 0.0
        %1067 = vmatmul.mubr.f32.gmra.mrb[0].mxu0 %v866
        %v1068 = vpop.f32.mrb[0].mxu0
        %v1069 = vadd.f32 %v914, %v1068
        %v1070 = vpop.f32.mrb[0].mxu0
        %1071 = vmatprep.mubr.f32.mxu0 0.0
        %1072 = vmatmul.mubr.f32.gmra.mrb[0].mxu0 %v867
        %v1073 = vpop.f32.mrb[0].mxu0
        %v1074 = vadd.f32 %v915, %v1073
        %v1075 = vpop.f32.mrb[0].mxu0
        %1076 = vmatprep.mubr.f32.mxu0 0.0
        %1077 = vmatmul.mubr.f32.gmra.mrb[0].mxu0 %v868
        %v1078 = vpop.f32.mrb[0].mxu0
        %v1079 = vadd.f32 %v916, %v1078
        %v1080 = vpop.f32.mrb[0].mxu0
        %1081 = vmatprep.mubr.f32.mxu0 0.0
        %1082 = vmatmul.mubr.f32.gmra.mrb[0].mxu0 %v869
        %v1083 = vpop.f32.mrb[0].mxu0
        %v1084 = vadd.f32 %v917, %v1083
        %v1085 = vpop.f32.mrb[0].mxu0
        %1086 = vmatprep.mubr.f32.mxu0 0.0
        %1087 = vmatmul.mubr.f32.gmra.mrb[0].mxu0 %v870
        %v1088 = vpop.f32.mrb[0].mxu0
        %v1089 = vadd.f32 %v918, %v1088
        %v1090 = vpop.f32.mrb[0].mxu0
        %1091 = vmatprep.mubr.f32.mxu0 0.0
        %1092 = vmatmul.mubr.f32.gmra.mrb[0].mxu0 %v871
        %v1093 = vpop.f32.mrb[0].mxu0
        %v1094 = vadd.f32 %v919, %v1093
        %v1095 = vpop.f32.mrb[0].mxu0
        %1096 = vmatprep.mubr.f32.mxu0 0.0
        %1097 = vmatmul.mubr.f32.gmra.mrb[0].mxu0 %v872
        %v1098 = vpop.f32.mrb[0].mxu0
        %v1099 = vadd.f32 %v920, %v1098
        %v1100 = vpop.f32.mrb[0].mxu0
        %1101 = vmatprep.mubr.f32.mxu0 0.0
        %1102 = vmatmul.mubr.f32.gmra.mrb[0].mxu0 %v873
        %v1103 = vpop.f32.mrb[0].mxu0
        %v1104 = vadd.f32 %v921, %v1103
        %v1105 = vpop.f32.mrb[0].mxu0
        %1106 = vmatprep.mubr.f32.mxu0 0.0
        %1107 = vmatmul.mubr.f32.gmra.mrb[0].mxu0 %v874
        %v1108 = vpop.f32.mrb[0].mxu0
        %v1109 = vadd.f32 %v922, %v1108
        %v1110 = vpop.f32.mrb[0].mxu0
        %1111 = vmatprep.mubr.f32.mxu0 0.0
        %1112 = vmatmul.mubr.f32.gmra.mrb[0].mxu0 %v875
        %v1113 = vpop.f32.mrb[0].mxu0
        %v1114 = vadd.f32 %v923, %v1113
        %v1115 = vpop.f32.mrb[0].mxu0
        %1116 = vmatprep.mubr.f32.mxu0 0.0
        %1117 = vmatmul.mubr.f32.gmra.mrb[0].mxu0 %v876
        %v1118 = vpop.f32.mrb[0].mxu0
        %v1119 = vadd.f32 %v924, %v1118
        %v1120 = vpop.f32.mrb[0].mxu0
        %1121 = vmatprep.mubr.f32.mxu0 0.0
        %1122 = vmatmul.mubr.f32.gmra.mrb[0].mxu0 %v877
        %v1123 = vpop.f32.mrb[0].mxu0
        %v1124 = vadd.f32 %v925, %v1123
        %v1125 = vpop.f32.mrb[0].mxu0
        %1126 = vmatprep.mubr.f32.mxu0 0.0
        %1127 = vmatmul.mubr.f32.gmra.mrb[0].mxu0 %v878
        %v1128 = vpop.f32.mrb[0].mxu0
        %v1129 = vadd.f32 %v926, %v1128
        %v1130 = vpop.f32.mrb[0].mxu0
        %1131 = vmatprep.mubr.f32.mxu0 0.0
        %1132 = vmatmul.mubr.f32.gmra.mrb[0].mxu0 %v879
        %v1133 = vpop.f32.mrb[0].mxu0
        %v1134 = vadd.f32 %v927, %v1133
        %v1135 = vpop.f32.mrb[0].mxu0
        %1136 = vmatprep.mubr.f32.mxu0 0.0
        %1137 = vmatmul.mubr.f32.gmra.mrb[0].mxu0 %v880
        %v1138 = vpop.f32.mrb[0].mxu0
        %v1139 = vadd.f32 %v928, %v1138
        %v1140 = vpop.f32.mrb[0].mxu0
        %1141 = vmatprep.mubr.f32.mxu0 0.0
        %1142 = vmatmul.mubr.f32.gmra.mrb[0].mxu0 %v881
        %v1143 = vpop.f32.mrb[0].mxu0
        %v1144 = vadd.f32 %v929, %v1143
        %v1145 = vpop.f32.mrb[0].mxu0
        %1146 = vmatprep.mubr.f32.mxu0 0.0
        %1147 = vmatmul.mubr.f32.gmra.mrb[0].mxu0 %v882
        %v1148 = vpop.f32.mrb[0].mxu0
        %v1149 = vadd.f32 %v930, %v1148
        %v1150 = vpop.f32.mrb[0].mxu0
        %1151 = vmatprep.mubr.f32.mxu0 0.0
        %1152 = vmatmul.mubr.f32.gmra.mrb[0].mxu0 %v883
        %v1153 = vpop.f32.mrb[0].mxu0
        %v1154 = vadd.f32 %v931, %v1153
        %v1155 = vpop.f32.mrb[0].mxu0
        %1156 = vdwg.mxu0
        %v1157 = vld [vmem:[%s5] sm:$0xff]
        %v1158 = vld [vmem:[%s5 + $0x8] sm:$0xff]
        %v1159 = vld [vmem:[%s5 + $0x10] sm:$0xff]
        %v1160 = vld [vmem:[%s5 + $0x18] sm:$0xff]
        %v1161 = vld [vmem:[%s6] sm:$0x1]
        %v1163 = vlaneseq
        %v1164 = vshrl.u32 %v1163, 7
        %v1165 = vsub.s32 0, %v1164
        %v1166 = vrot.slane %v1161, %v1165
        %vm1168 = vcmask 261120
        %v1170 = vsel %vm1168, %v999, 0
        %v1173 = vsel %vm1168, %v1004, 0
        %v1176 = vsel %vm1168, %v1009, 0
        %v1179 = vsel %vm1168, %v1014, 0
        %v1182 = vsel %vm1168, %v1019, 0
        %v1185 = vsel %vm1168, %v1024, 0
        %v1188 = vsel %vm1168, %v1029, 0
        %v1191 = vsel %vm1168, %v1034, 0
        %v1194 = vsel %vm1168, %v1039, 0
        %v1197 = vsel %vm1168, %v1044, 0
        %v1200 = vsel %vm1168, %v1049, 0
        %v1203 = vsel %vm1168, %v1054, 0
        %v1206 = vsel %vm1168, %v1059, 0
        %v1209 = vsel %vm1168, %v1064, 0
        %v1212 = vsel %vm1168, %v1069, 0
        %v1215 = vsel %vm1168, %v1074, 0
        %v1218 = vsel %vm1168, %v1079, 0
        %v1221 = vsel %vm1168, %v1084, 0
        %v1224 = vsel %vm1168, %v1089, 0
        %v1227 = vsel %vm1168, %v1094, 0
        %v1230 = vsel %vm1168, %v1099, 0
        %v1233 = vsel %vm1168, %v1104, 0
        %v1236 = vsel %vm1168, %v1109, 0
        %v1239 = vsel %vm1168, %v1114, 0
        %v1242 = vsel %vm1168, %v1119, 0
        %v1245 = vsel %vm1168, %v1124, 0
        %v1248 = vsel %vm1168, %v1129, 0
        %v1251 = vsel %vm1168, %v1134, 0
        %v1254 = vsel %vm1168, %v1139, 0
        %v1257 = vsel %vm1168, %v1144, 0
        %v1260 = vsel %vm1168, %v1149, 0
        %v1263 = vsel %vm1168, %v1154, 0
        %1265 = vmatprep.subr.mxu0 0.0
        %1266 = vmatpush1.msra.mxu0 %v1157
        %1267 = vmatprep.subr.mxu0 0.0
        %1268 = vmatpush1.msra.mxu0 %v1158
        %1269 = vmatprep.subr.mxu0 0.0
        %1270 = vmatpush1.msra.mxu0 %v1159
        %1271 = vmatprep.subr.mxu0 0.0
        %1272 = vmatpush1.msra.mxu0 %v1160
        %1273 = vmatprep.subr.mxu0 0.0
        %1274 = vmatpush1.msra.mxu0 0.0
        %1275 = vmatprep.subr.mxu0 0.0
        %1276 = vmatpush1.msra.mxu0 0.0
        %1277 = vmatprep.subr.mxu0 0.0
        %1278 = vmatpush1.msra.mxu0 0.0
        %1279 = vmatprep.subr.mxu0 0.0
        %1280 = vmatpush1.msra.mxu0 0.0
        %1281 = vmatprep.subr.mxu0 0.0
        %1282 = vmatpush1.msra.mxu0 0.0
        %1283 = vmatprep.subr.mxu0 0.0
        %1284 = vmatpush1.msra.mxu0 0.0
        %1285 = vmatprep.subr.mxu0 0.0
        %1286 = vmatpush1.msra.mxu0 0.0
        %1287 = vmatprep.subr.mxu0 0.0
        %1288 = vmatpush1.msra.mxu0 0.0
        %1289 = vmatprep.subr.mxu0 0.0
        %1290 = vmatpush1.msra.mxu0 0.0
        %1291 = vmatprep.subr.mxu0 0.0
        %1292 = vmatpush1.msra.mxu0 0.0
        %1293 = vmatprep.subr.mxu0 0.0
        %1294 = vmatpush1.msra.mxu0 0.0
        %1295 = vmatprep.subr.mxu0 0.0
        %1296 = vmatpush1.msra.mxu0 0.0
        %1297 = vmatprep.subr.mxu0 0.0
        %1298 = vmatpush1.msra.mxu0 0.0
        %1299 = vmatprep.subr.mxu0 0.0
        %1300 = vmatpush1.msra.mxu0 0.0
        %1301 = vmatprep.subr.mxu0 0.0
        %1302 = vmatpush1.msra.mxu0 0.0
        %1303 = vmatprep.subr.mxu0 0.0
        %1304 = vmatpush1.msra.mxu0 0.0
        %1305 = vmatprep.subr.mxu0 0.0
        %1306 = vmatpush1.msra.mxu0 0.0
        %1307 = vmatprep.subr.mxu0 0.0
        %1308 = vmatpush1.msra.mxu0 0.0
        %1309 = vmatprep.subr.mxu0 0.0
        %1310 = vmatpush1.msra.mxu0 0.0
        %1311 = vmatprep.subr.mxu0 0.0
        %1312 = vmatpush1.msra.mxu0 0.0
        %1313 = vmatprep.subr.mxu0 0.0
        %1314 = vmatpush1.msra.mxu0 0.0
        %1315 = vmatprep.subr.mxu0 0.0
        %1316 = vmatpush1.msra.mxu0 0.0
        %1317 = vmatprep.subr.mxu0 0.0
        %1318 = vmatpush1.msra.mxu0 0.0
        %1319 = vmatprep.subr.mxu0 0.0
        %1320 = vmatpush1.msra.mxu0 0.0
        %1321 = vmatprep.subr.mxu0 0.0
        %1322 = vmatpush1.msra.mxu0 0.0
        %1323 = vmatprep.subr.mxu0 0.0
        %1324 = vmatpush1.msra.mxu0 0.0
        %1325 = vmatprep.subr.mxu0 0.0
        %1326 = vmatpush1.msra.mxu0 0.0
        %1327 = vmatprep.subr.mxu0 0.0
        %1328 = vmatpush1.msra.mxu0 0.0
        %1329 = vmatprep.mubr.f32.mxu0 0.0
        %1330 = vmatmul.mubr.f32.gmra.mrb[0].mxu0 %v1170
        %v1331 = vpop.f32.mrb[0].mxu0
        %v1332 = vadd.f32 %v1166, %v1331
        %v1333 = vpop.f32.mrb[0].mxu0
        %1334 = vmatprep.mubr.f32.mxu0 0.0
        %1335 = vmatmul.mubr.f32.gmra.mrb[0].mxu0 %v1173
        %v1336 = vpop.f32.mrb[0].mxu0
        %v1337 = vadd.f32 %v1166, %v1336
        %v1338 = vpop.f32.mrb[0].mxu0
        %1339 = vmatprep.mubr.f32.mxu0 0.0
        %1340 = vmatmul.mubr.f32.gmra.mrb[0].mxu0 %v1176
        %v1341 = vpop.f32.mrb[0].mxu0
        %v1342 = vadd.f32 %v1166, %v1341
        %v1343 = vpop.f32.mrb[0].mxu0
        %1344 = vmatprep.mubr.f32.mxu0 0.0
        %1345 = vmatmul.mubr.f32.gmra.mrb[0].mxu0 %v1179
        %v1346 = vpop.f32.mrb[0].mxu0
        %v1347 = vadd.f32 %v1166, %v1346
        %v1348 = vpop.f32.mrb[0].mxu0
        %1349 = vmatprep.mubr.f32.mxu0 0.0
        %1350 = vmatmul.mubr.f32.gmra.mrb[0].mxu0 %v1182
        %v1351 = vpop.f32.mrb[0].mxu0
        %v1352 = vadd.f32 %v1166, %v1351
        %v1353 = vpop.f32.mrb[0].mxu0
        %1354 = vmatprep.mubr.f32.mxu0 0.0
        %1355 = vmatmul.mubr.f32.gmra.mrb[0].mxu0 %v1185
        %v1356 = vpop.f32.mrb[0].mxu0
        %v1357 = vadd.f32 %v1166, %v1356
        %v1358 = vpop.f32.mrb[0].mxu0
        %1359 = vmatprep.mubr.f32.mxu0 0.0
        %1360 = vmatmul.mubr.f32.gmra.mrb[0].mxu0 %v1188
        %v1361 = vpop.f32.mrb[0].mxu0
        %v1362 = vadd.f32 %v1166, %v1361
        %v1363 = vpop.f32.mrb[0].mxu0
        %1364 = vmatprep.mubr.f32.mxu0 0.0
        %1365 = vmatmul.mubr.f32.gmra.mrb[0].mxu0 %v1191
        %v1366 = vpop.f32.mrb[0].mxu0
        %v1367 = vadd.f32 %v1166, %v1366
        %v1368 = vpop.f32.mrb[0].mxu0
        %1369 = vmatprep.mubr.f32.mxu0 0.0
        %1370 = vmatmul.mubr.f32.gmra.mrb[0].mxu0 %v1194
        %v1371 = vpop.f32.mrb[0].mxu0
        %v1372 = vadd.f32 %v1166, %v1371
        %v1373 = vpop.f32.mrb[0].mxu0
        %1374 = vmatprep.mubr.f32.mxu0 0.0
        %1375 = vmatmul.mubr.f32.gmra.mrb[0].mxu0 %v1197
        %v1376 = vpop.f32.mrb[0].mxu0
        %v1377 = vadd.f32 %v1166, %v1376
        %v1378 = vpop.f32.mrb[0].mxu0
        %1379 = vmatprep.mubr.f32.mxu0 0.0
        %1380 = vmatmul.mubr.f32.gmra.mrb[0].mxu0 %v1200
        %v1381 = vpop.f32.mrb[0].mxu0
        %v1382 = vadd.f32 %v1166, %v1381
        %v1383 = vpop.f32.mrb[0].mxu0
        %1384 = vmatprep.mubr.f32.mxu0 0.0
        %1385 = vmatmul.mubr.f32.gmra.mrb[0].mxu0 %v1203
        %v1386 = vpop.f32.mrb[0].mxu0
        %v1387 = vadd.f32 %v1166, %v1386
        %v1388 = vpop.f32.mrb[0].mxu0
        %1389 = vmatprep.mubr.f32.mxu0 0.0
        %1390 = vmatmul.mubr.f32.gmra.mrb[0].mxu0 %v1206
        %v1391 = vpop.f32.mrb[0].mxu0
        %v1392 = vadd.f32 %v1166, %v1391
        %v1393 = vpop.f32.mrb[0].mxu0
        %1394 = vmatprep.mubr.f32.mxu0 0.0
        %1395 = vmatmul.mubr.f32.gmra.mrb[0].mxu0 %v1209
        %v1396 = vpop.f32.mrb[0].mxu0
        %v1397 = vadd.f32 %v1166, %v1396
        %v1398 = vpop.f32.mrb[0].mxu0
        %1399 = vmatprep.mubr.f32.mxu0 0.0
        %1400 = vmatmul.mubr.f32.gmra.mrb[0].mxu0 %v1212
        %v1401 = vpop.f32.mrb[0].mxu0
        %v1402 = vadd.f32 %v1166, %v1401
        %v1403 = vpop.f32.mrb[0].mxu0
        %1404 = vmatprep.mubr.f32.mxu0 0.0
        %1405 = vmatmul.mubr.f32.gmra.mrb[0].mxu0 %v1215
        %v1406 = vpop.f32.mrb[0].mxu0
        %v1407 = vadd.f32 %v1166, %v1406
        %v1408 = vpop.f32.mrb[0].mxu0
        %1409 = vmatprep.mubr.f32.mxu0 0.0
        %1410 = vmatmul.mubr.f32.gmra.mrb[0].mxu0 %v1218
        %v1411 = vpop.f32.mrb[0].mxu0
        %v1412 = vadd.f32 %v1166, %v1411
        %v1413 = vpop.f32.mrb[0].mxu0
        %1414 = vmatprep.mubr.f32.mxu0 0.0
        %1415 = vmatmul.mubr.f32.gmra.mrb[0].mxu0 %v1221
        %v1416 = vpop.f32.mrb[0].mxu0
        %v1417 = vadd.f32 %v1166, %v1416
        %v1418 = vpop.f32.mrb[0].mxu0
        %1419 = vmatprep.mubr.f32.mxu0 0.0
        %1420 = vmatmul.mubr.f32.gmra.mrb[0].mxu0 %v1224
        %v1421 = vpop.f32.mrb[0].mxu0
        %v1422 = vadd.f32 %v1166, %v1421
        %v1423 = vpop.f32.mrb[0].mxu0
        %1424 = vmatprep.mubr.f32.mxu0 0.0
        %1425 = vmatmul.mubr.f32.gmra.mrb[0].mxu0 %v1227
        %v1426 = vpop.f32.mrb[0].mxu0
        %v1427 = vadd.f32 %v1166, %v1426
        %v1428 = vpop.f32.mrb[0].mxu0
        %1429 = vmatprep.mubr.f32.mxu0 0.0
        %1430 = vmatmul.mubr.f32.gmra.mrb[0].mxu0 %v1230
        %v1431 = vpop.f32.mrb[0].mxu0
        %v1432 = vadd.f32 %v1166, %v1431
        %v1433 = vpop.f32.mrb[0].mxu0
        %1434 = vmatprep.mubr.f32.mxu0 0.0
        %1435 = vmatmul.mubr.f32.gmra.mrb[0].mxu0 %v1233
        %v1436 = vpop.f32.mrb[0].mxu0
        %v1437 = vadd.f32 %v1166, %v1436
        %v1438 = vpop.f32.mrb[0].mxu0
        %1439 = vmatprep.mubr.f32.mxu0 0.0
        %1440 = vmatmul.mubr.f32.gmra.mrb[0].mxu0 %v1236
        %v1441 = vpop.f32.mrb[0].mxu0
        %v1442 = vadd.f32 %v1166, %v1441
        %v1443 = vpop.f32.mrb[0].mxu0
        %1444 = vmatprep.mubr.f32.mxu0 0.0
        %1445 = vmatmul.mubr.f32.gmra.mrb[0].mxu0 %v1239
        %v1446 = vpop.f32.mrb[0].mxu0
        %v1447 = vadd.f32 %v1166, %v1446
        %v1448 = vpop.f32.mrb[0].mxu0
        %1449 = vmatprep.mubr.f32.mxu0 0.0
        %1450 = vmatmul.mubr.f32.gmra.mrb[0].mxu0 %v1242
        %v1451 = vpop.f32.mrb[0].mxu0
        %v1452 = vadd.f32 %v1166, %v1451
        %v1453 = vpop.f32.mrb[0].mxu0
        %1454 = vmatprep.mubr.f32.mxu0 0.0
        %1455 = vmatmul.mubr.f32.gmra.mrb[0].mxu0 %v1245
        %v1456 = vpop.f32.mrb[0].mxu0
        %v1457 = vadd.f32 %v1166, %v1456
        %v1458 = vpop.f32.mrb[0].mxu0
        %1459 = vmatprep.mubr.f32.mxu0 0.0
        %1460 = vmatmul.mubr.f32.gmra.mrb[0].mxu0 %v1248
        %v1461 = vpop.f32.mrb[0].mxu0
        %v1462 = vadd.f32 %v1166, %v1461
        %v1463 = vpop.f32.mrb[0].mxu0
        %1464 = vmatprep.mubr.f32.mxu0 0.0
        %1465 = vmatmul.mubr.f32.gmra.mrb[0].mxu0 %v1251
        %v1466 = vpop.f32.mrb[0].mxu0
        %v1467 = vadd.f32 %v1166, %v1466
        %v1468 = vpop.f32.mrb[0].mxu0
        %1469 = vmatprep.mubr.f32.mxu0 0.0
        %1470 = vmatmul.mubr.f32.gmra.mrb[0].mxu0 %v1254
        %v1471 = vpop.f32.mrb[0].mxu0
        %v1472 = vadd.f32 %v1166, %v1471
        %v1473 = vpop.f32.mrb[0].mxu0
        %1474 = vmatprep.mubr.f32.mxu0 0.0
        %1475 = vmatmul.mubr.f32.gmra.mrb[0].mxu0 %v1257
        %v1476 = vpop.f32.mrb[0].mxu0
        %v1477 = vadd.f32 %v1166, %v1476
        %v1478 = vpop.f32.mrb[0].mxu0
        %1479 = vmatprep.mubr.f32.mxu0 0.0
        %1480 = vmatmul.mubr.f32.gmra.mrb[0].mxu0 %v1260
        %v1481 = vpop.f32.mrb[0].mxu0
        %v1482 = vadd.f32 %v1166, %v1481
        %v1483 = vpop.f32.mrb[0].mxu0
        %1484 = vmatprep.mubr.f32.mxu0 0.0
        %1485 = vmatmul.mubr.f32.gmra.mrb[0].mxu0 %v1263
        %v1486 = vpop.f32.mrb[0].mxu0
        %v1487 = vadd.f32 %v1166, %v1486
        %v1488 = vpop.f32.mrb[0].mxu0
        %1489 = vdwg.mxu0
        %vm1490 = vcmp.gt.f32.partialorder %v1332, 0.0
        %vm1491 = vcmp.gt.f32.partialorder %v1337, 0.0
        %vm1492 = vcmp.gt.f32.partialorder %v1342, 0.0
        %vm1493 = vcmp.gt.f32.partialorder %v1347, 0.0
        %vm1494 = vcmp.gt.f32.partialorder %v1352, 0.0
        %vm1495 = vcmp.gt.f32.partialorder %v1357, 0.0
        %vm1496 = vcmp.gt.f32.partialorder %v1362, 0.0
        %vm1497 = vcmp.gt.f32.partialorder %v1367, 0.0
        %vm1498 = vcmp.gt.f32.partialorder %v1372, 0.0
        %vm1499 = vcmp.gt.f32.partialorder %v1377, 0.0
        %vm1500 = vcmp.gt.f32.partialorder %v1382, 0.0
        %vm1501 = vcmp.gt.f32.partialorder %v1387, 0.0
        %vm1502 = vcmp.gt.f32.partialorder %v1392, 0.0
        %vm1503 = vcmp.gt.f32.partialorder %v1397, 0.0
        %vm1504 = vcmp.gt.f32.partialorder %v1402, 0.0
        %vm1505 = vcmp.gt.f32.partialorder %v1407, 0.0
        %vm1506 = vcmp.gt.f32.partialorder %v1412, 0.0
        %vm1507 = vcmp.gt.f32.partialorder %v1417, 0.0
        %vm1508 = vcmp.gt.f32.partialorder %v1422, 0.0
        %vm1509 = vcmp.gt.f32.partialorder %v1427, 0.0
        %vm1510 = vcmp.gt.f32.partialorder %v1432, 0.0
        %vm1511 = vcmp.gt.f32.partialorder %v1437, 0.0
        %vm1512 = vcmp.gt.f32.partialorder %v1442, 0.0
        %vm1513 = vcmp.gt.f32.partialorder %v1447, 0.0
        %vm1514 = vcmp.gt.f32.partialorder %v1452, 0.0
        %vm1515 = vcmp.gt.f32.partialorder %v1457, 0.0
        %vm1516 = vcmp.gt.f32.partialorder %v1462, 0.0
        %vm1517 = vcmp.gt.f32.partialorder %v1467, 0.0
        %vm1518 = vcmp.gt.f32.partialorder %v1472, 0.0
        %vm1519 = vcmp.gt.f32.partialorder %v1477, 0.0
        %vm1520 = vcmp.gt.f32.partialorder %v1482, 0.0
        %vm1521 = vcmp.gt.f32.partialorder %v1487, 0.0
        %v1522 = vmul.f32 %v1332, 0.01
        %v1523 = vmul.f32 %v1337, 0.01
        %v1524 = vmul.f32 %v1342, 0.01
        %v1525 = vmul.f32 %v1347, 0.01
        %v1526 = vmul.f32 %v1352, 0.01
        %v1527 = vmul.f32 %v1357, 0.01
        %v1528 = vmul.f32 %v1362, 0.01
        %v1529 = vmul.f32 %v1367, 0.01
        %v1530 = vmul.f32 %v1372, 0.01
        %v1531 = vmul.f32 %v1377, 0.01
        %v1532 = vmul.f32 %v1382, 0.01
        %v1533 = vmul.f32 %v1387, 0.01
        %v1534 = vmul.f32 %v1392, 0.01
        %v1535 = vmul.f32 %v1397, 0.01
        %v1536 = vmul.f32 %v1402, 0.01
        %v1537 = vmul.f32 %v1407, 0.01
        %v1538 = vmul.f32 %v1412, 0.01
        %v1539 = vmul.f32 %v1417, 0.01
        %v1540 = vmul.f32 %v1422, 0.01
        %v1541 = vmul.f32 %v1427, 0.01
        %v1542 = vmul.f32 %v1432, 0.01
        %v1543 = vmul.f32 %v1437, 0.01
        %v1544 = vmul.f32 %v1442, 0.01
        %v1545 = vmul.f32 %v1447, 0.01
        %v1546 = vmul.f32 %v1452, 0.01
        %v1547 = vmul.f32 %v1457, 0.01
        %v1548 = vmul.f32 %v1462, 0.01
        %v1549 = vmul.f32 %v1467, 0.01
        %v1550 = vmul.f32 %v1472, 0.01
        %v1551 = vmul.f32 %v1477, 0.01
        %v1552 = vmul.f32 %v1482, 0.01
        %v1553 = vmul.f32 %v1487, 0.01
        %v1554 = vsel %vm1490, %v1332, %v1522
        %v1555 = vsel %vm1491, %v1337, %v1523
        %v1556 = vsel %vm1492, %v1342, %v1524
        %v1557 = vsel %vm1493, %v1347, %v1525
        %v1558 = vsel %vm1494, %v1352, %v1526
        %v1559 = vsel %vm1495, %v1357, %v1527
        %v1560 = vsel %vm1496, %v1362, %v1528
        %v1561 = vsel %vm1497, %v1367, %v1529
        %v1562 = vsel %vm1498, %v1372, %v1530
        %v1563 = vsel %vm1499, %v1377, %v1531
        %v1564 = vsel %vm1500, %v1382, %v1532
        %v1565 = vsel %vm1501, %v1387, %v1533
        %v1566 = vsel %vm1502, %v1392, %v1534
        %v1567 = vsel %vm1503, %v1397, %v1535
        %v1568 = vsel %vm1504, %v1402, %v1536
        %v1569 = vsel %vm1505, %v1407, %v1537
        %v1570 = vsel %vm1506, %v1412, %v1538
        %v1571 = vsel %vm1507, %v1417, %v1539
        %v1572 = vsel %vm1508, %v1422, %v1540
        %v1573 = vsel %vm1509, %v1427, %v1541
        %v1574 = vsel %vm1510, %v1432, %v1542
        %v1575 = vsel %vm1511, %v1437, %v1543
        %v1576 = vsel %vm1512, %v1442, %v1544
        %v1577 = vsel %vm1513, %v1447, %v1545
        %v1578 = vsel %vm1514, %v1452, %v1546
        %v1579 = vsel %vm1515, %v1457, %v1547
        %v1580 = vsel %vm1516, %v1462, %v1548
        %v1581 = vsel %vm1517, %v1467, %v1549
        %v1582 = vsel %vm1518, %v1472, %v1550
        %v1583 = vsel %vm1519, %v1477, %v1551
        %v1584 = vsel %vm1520, %v1482, %v1552
        %v1585 = vsel %vm1521, %v1487, %v1553
        %v1586 = vld [vmem:[%s7] sm:$0xff]
        %v1587 = vld [vmem:[%s7 + $0x8] sm:$0xff]
        %v1588 = vld [vmem:[%s7 + $0x10] sm:$0xff]
        %v1589 = vld [vmem:[%s7 + $0x18] sm:$0xff]
        %v1590 = vld [vmem:[%s8] sm:$0x1]
        %v1592 = vlaneseq
        %v1593 = vshrl.u32 %v1592, 7
        %v1594 = vsub.s32 0, %v1593
        %v1595 = vrot.slane %v1590, %v1594
        %v1598 = vsel %vm1168, %v1554, 0
        %v1601 = vsel %vm1168, %v1555, 0
        %v1604 = vsel %vm1168, %v1556, 0
        %v1607 = vsel %vm1168, %v1557, 0
        %v1610 = vsel %vm1168, %v1558, 0
        %v1613 = vsel %vm1168, %v1559, 0
        %v1616 = vsel %vm1168, %v1560, 0
        %v1619 = vsel %vm1168, %v1561, 0
        %v1622 = vsel %vm1168, %v1562, 0
        %v1625 = vsel %vm1168, %v1563, 0
        %v1628 = vsel %vm1168, %v1564, 0
        %v1631 = vsel %vm1168, %v1565, 0
        %v1634 = vsel %vm1168, %v1566, 0
        %v1637 = vsel %vm1168, %v1567, 0
        %v1640 = vsel %vm1168, %v1568, 0
        %v1643 = vsel %vm1168, %v1569, 0
        %v1646 = vsel %vm1168, %v1570, 0
        %v1649 = vsel %vm1168, %v1571, 0
        %v1652 = vsel %vm1168, %v1572, 0
        %v1655 = vsel %vm1168, %v1573, 0
        %v1658 = vsel %vm1168, %v1574, 0
        %v1661 = vsel %vm1168, %v1575, 0
        %v1664 = vsel %vm1168, %v1576, 0
        %v1667 = vsel %vm1168, %v1577, 0
        %v1670 = vsel %vm1168, %v1578, 0
        %v1673 = vsel %vm1168, %v1579, 0
        %v1676 = vsel %vm1168, %v1580, 0
        %v1679 = vsel %vm1168, %v1581, 0
        %v1682 = vsel %vm1168, %v1582, 0
        %v1685 = vsel %vm1168, %v1583, 0
        %v1688 = vsel %vm1168, %v1584, 0
        %v1691 = vsel %vm1168, %v1585, 0
        %1693 = vmatprep.subr.mxu0 0.0
        %1694 = vmatpush1.msra.mxu0 %v1586
        %1695 = vmatprep.subr.mxu0 0.0
        %1696 = vmatpush1.msra.mxu0 %v1587
        %1697 = vmatprep.subr.mxu0 0.0
        %1698 = vmatpush1.msra.mxu0 %v1588
        %1699 = vmatprep.subr.mxu0 0.0
        %1700 = vmatpush1.msra.mxu0 %v1589
        %1701 = vmatprep.subr.mxu0 0.0
        %1702 = vmatpush1.msra.mxu0 0.0
        %1703 = vmatprep.subr.mxu0 0.0
        %1704 = vmatpush1.msra.mxu0 0.0
        %1705 = vmatprep.subr.mxu0 0.0
        %1706 = vmatpush1.msra.mxu0 0.0
        %1707 = vmatprep.subr.mxu0 0.0
        %1708 = vmatpush1.msra.mxu0 0.0
        %1709 = vmatprep.subr.mxu0 0.0
        %1710 = vmatpush1.msra.mxu0 0.0
        %1711 = vmatprep.subr.mxu0 0.0
        %1712 = vmatpush1.msra.mxu0 0.0
        %1713 = vmatprep.subr.mxu0 0.0
        %1714 = vmatpush1.msra.mxu0 0.0
        %1715 = vmatprep.subr.mxu0 0.0
        %1716 = vmatpush1.msra.mxu0 0.0
        %1717 = vmatprep.subr.mxu0 0.0
        %1718 = vmatpush1.msra.mxu0 0.0
        %1719 = vmatprep.subr.mxu0 0.0
        %1720 = vmatpush1.msra.mxu0 0.0
        %1721 = vmatprep.subr.mxu0 0.0
        %1722 = vmatpush1.msra.mxu0 0.0
        %1723 = vmatprep.subr.mxu0 0.0
        %1724 = vmatpush1.msra.mxu0 0.0
        %1725 = vmatprep.subr.mxu0 0.0
        %1726 = vmatpush1.msra.mxu0 0.0
        %1727 = vmatprep.subr.mxu0 0.0
        %1728 = vmatpush1.msra.mxu0 0.0
        %1729 = vmatprep.subr.mxu0 0.0
        %1730 = vmatpush1.msra.mxu0 0.0
        %1731 = vmatprep.subr.mxu0 0.0
        %1732 = vmatpush1.msra.mxu0 0.0
        %1733 = vmatprep.subr.mxu0 0.0
        %1734 = vmatpush1.msra.mxu0 0.0
        %1735 = vmatprep.subr.mxu0 0.0
        %1736 = vmatpush1.msra.mxu0 0.0
        %1737 = vmatprep.subr.mxu0 0.0
        %1738 = vmatpush1.msra.mxu0 0.0
        %1739 = vmatprep.subr.mxu0 0.0
        %1740 = vmatpush1.msra.mxu0 0.0
        %1741 = vmatprep.subr.mxu0 0.0
        %1742 = vmatpush1.msra.mxu0 0.0
        %1743 = vmatprep.subr.mxu0 0.0
        %1744 = vmatpush1.msra.mxu0 0.0
        %1745 = vmatprep.subr.mxu0 0.0
        %1746 = vmatpush1.msra.mxu0 0.0
        %1747 = vmatprep.subr.mxu0 0.0
        %1748 = vmatpush1.msra.mxu0 0.0
        %1749 = vmatprep.subr.mxu0 0.0
        %1750 = vmatpush1.msra.mxu0 0.0
        %1751 = vmatprep.subr.mxu0 0.0
        %1752 = vmatpush1.msra.mxu0 0.0
        %1753 = vmatprep.subr.mxu0 0.0
        %1754 = vmatpush1.msra.mxu0 0.0
        %1755 = vmatprep.subr.mxu0 0.0
        %1756 = vmatpush1.msra.mxu0 0.0
        %1757 = vmatprep.mubr.f32.mxu0 0.0
        %1758 = vmatmul.mubr.f32.gmra.mrb[0].mxu0 %v1598
        %v1759 = vpop.f32.mrb[0].mxu0
        %v1760 = vadd.f32 %v1595, %v1759
        %v1761 = vpop.f32.mrb[0].mxu0
        %1762 = vmatprep.mubr.f32.mxu0 0.0
        %1763 = vmatmul.mubr.f32.gmra.mrb[0].mxu0 %v1601
        %v1764 = vpop.f32.mrb[0].mxu0
        %v1765 = vadd.f32 %v1595, %v1764
        %v1766 = vpop.f32.mrb[0].mxu0
        %1767 = vmatprep.mubr.f32.mxu0 0.0
        %1768 = vmatmul.mubr.f32.gmra.mrb[0].mxu0 %v1604
        %v1769 = vpop.f32.mrb[0].mxu0
        %v1770 = vadd.f32 %v1595, %v1769
        %v1771 = vpop.f32.mrb[0].mxu0
        %1772 = vmatprep.mubr.f32.mxu0 0.0
        %1773 = vmatmul.mubr.f32.gmra.mrb[0].mxu0 %v1607
        %v1774 = vpop.f32.mrb[0].mxu0
        %v1775 = vadd.f32 %v1595, %v1774
        %v1776 = vpop.f32.mrb[0].mxu0
        %1777 = vmatprep.mubr.f32.mxu0 0.0
        %1778 = vmatmul.mubr.f32.gmra.mrb[0].mxu0 %v1610
        %v1779 = vpop.f32.mrb[0].mxu0
        %v1780 = vadd.f32 %v1595, %v1779
        %v1781 = vpop.f32.mrb[0].mxu0
        %1782 = vmatprep.mubr.f32.mxu0 0.0
        %1783 = vmatmul.mubr.f32.gmra.mrb[0].mxu0 %v1613
        %v1784 = vpop.f32.mrb[0].mxu0
        %v1785 = vadd.f32 %v1595, %v1784
        %v1786 = vpop.f32.mrb[0].mxu0
        %1787 = vmatprep.mubr.f32.mxu0 0.0
        %1788 = vmatmul.mubr.f32.gmra.mrb[0].mxu0 %v1616
        %v1789 = vpop.f32.mrb[0].mxu0
        %v1790 = vadd.f32 %v1595, %v1789
        %v1791 = vpop.f32.mrb[0].mxu0
        %1792 = vmatprep.mubr.f32.mxu0 0.0
        %1793 = vmatmul.mubr.f32.gmra.mrb[0].mxu0 %v1619
        %v1794 = vpop.f32.mrb[0].mxu0
        %v1795 = vadd.f32 %v1595, %v1794
        %v1796 = vpop.f32.mrb[0].mxu0
        %1797 = vmatprep.mubr.f32.mxu0 0.0
        %1798 = vmatmul.mubr.f32.gmra.mrb[0].mxu0 %v1622
        %v1799 = vpop.f32.mrb[0].mxu0
        %v1800 = vadd.f32 %v1595, %v1799
        %v1801 = vpop.f32.mrb[0].mxu0
        %1802 = vmatprep.mubr.f32.mxu0 0.0
        %1803 = vmatmul.mubr.f32.gmra.mrb[0].mxu0 %v1625
        %v1804 = vpop.f32.mrb[0].mxu0
        %v1805 = vadd.f32 %v1595, %v1804
        %v1806 = vpop.f32.mrb[0].mxu0
        %1807 = vmatprep.mubr.f32.mxu0 0.0
        %1808 = vmatmul.mubr.f32.gmra.mrb[0].mxu0 %v1628
        %v1809 = vpop.f32.mrb[0].mxu0
        %v1810 = vadd.f32 %v1595, %v1809
        %v1811 = vpop.f32.mrb[0].mxu0
        %1812 = vmatprep.mubr.f32.mxu0 0.0
        %1813 = vmatmul.mubr.f32.gmra.mrb[0].mxu0 %v1631
        %v1814 = vpop.f32.mrb[0].mxu0
        %v1815 = vadd.f32 %v1595, %v1814
        %v1816 = vpop.f32.mrb[0].mxu0
        %1817 = vmatprep.mubr.f32.mxu0 0.0
        %1818 = vmatmul.mubr.f32.gmra.mrb[0].mxu0 %v1634
        %v1819 = vpop.f32.mrb[0].mxu0
        %v1820 = vadd.f32 %v1595, %v1819
        %v1821 = vpop.f32.mrb[0].mxu0
        %1822 = vmatprep.mubr.f32.mxu0 0.0
        %1823 = vmatmul.mubr.f32.gmra.mrb[0].mxu0 %v1637
        %v1824 = vpop.f32.mrb[0].mxu0
        %v1825 = vadd.f32 %v1595, %v1824
        %v1826 = vpop.f32.mrb[0].mxu0
        %1827 = vmatprep.mubr.f32.mxu0 0.0
        %1828 = vmatmul.mubr.f32.gmra.mrb[0].mxu0 %v1640
        %v1829 = vpop.f32.mrb[0].mxu0
        %v1830 = vadd.f32 %v1595, %v1829
        %v1831 = vpop.f32.mrb[0].mxu0
        %1832 = vmatprep.mubr.f32.mxu0 0.0
        %1833 = vmatmul.mubr.f32.gmra.mrb[0].mxu0 %v1643
        %v1834 = vpop.f32.mrb[0].mxu0
        %v1835 = vadd.f32 %v1595, %v1834
        %v1836 = vpop.f32.mrb[0].mxu0
        %1837 = vmatprep.mubr.f32.mxu0 0.0
        %1838 = vmatmul.mubr.f32.gmra.mrb[0].mxu0 %v1646
        %v1839 = vpop.f32.mrb[0].mxu0
        %v1840 = vadd.f32 %v1595, %v1839
        %v1841 = vpop.f32.mrb[0].mxu0
        %1842 = vmatprep.mubr.f32.mxu0 0.0
        %1843 = vmatmul.mubr.f32.gmra.mrb[0].mxu0 %v1649
        %v1844 = vpop.f32.mrb[0].mxu0
        %v1845 = vadd.f32 %v1595, %v1844
        %v1846 = vpop.f32.mrb[0].mxu0
        %1847 = vmatprep.mubr.f32.mxu0 0.0
        %1848 = vmatmul.mubr.f32.gmra.mrb[0].mxu0 %v1652
        %v1849 = vpop.f32.mrb[0].mxu0
        %v1850 = vadd.f32 %v1595, %v1849
        %v1851 = vpop.f32.mrb[0].mxu0
        %1852 = vmatprep.mubr.f32.mxu0 0.0
        %1853 = vmatmul.mubr.f32.gmra.mrb[0].mxu0 %v1655
        %v1854 = vpop.f32.mrb[0].mxu0
        %v1855 = vadd.f32 %v1595, %v1854
        %v1856 = vpop.f32.mrb[0].mxu0
        %1857 = vmatprep.mubr.f32.mxu0 0.0
        %1858 = vmatmul.mubr.f32.gmra.mrb[0].mxu0 %v1658
        %v1859 = vpop.f32.mrb[0].mxu0
        %v1860 = vadd.f32 %v1595, %v1859
        %v1861 = vpop.f32.mrb[0].mxu0
        %1862 = vmatprep.mubr.f32.mxu0 0.0
        %1863 = vmatmul.mubr.f32.gmra.mrb[0].mxu0 %v1661
        %v1864 = vpop.f32.mrb[0].mxu0
        %v1865 = vadd.f32 %v1595, %v1864
        %v1866 = vpop.f32.mrb[0].mxu0
        %1867 = vmatprep.mubr.f32.mxu0 0.0
        %1868 = vmatmul.mubr.f32.gmra.mrb[0].mxu0 %v1664
        %v1869 = vpop.f32.mrb[0].mxu0
        %v1870 = vadd.f32 %v1595, %v1869
        %v1871 = vpop.f32.mrb[0].mxu0
        %1872 = vmatprep.mubr.f32.mxu0 0.0
        %1873 = vmatmul.mubr.f32.gmra.mrb[0].mxu0 %v1667
        %v1874 = vpop.f32.mrb[0].mxu0
        %v1875 = vadd.f32 %v1595, %v1874
        %v1876 = vpop.f32.mrb[0].mxu0
        %1877 = vmatprep.mubr.f32.mxu0 0.0
        %1878 = vmatmul.mubr.f32.gmra.mrb[0].mxu0 %v1670
        %v1879 = vpop.f32.mrb[0].mxu0
        %v1880 = vadd.f32 %v1595, %v1879
        %v1881 = vpop.f32.mrb[0].mxu0
        %1882 = vmatprep.mubr.f32.mxu0 0.0
        %1883 = vmatmul.mubr.f32.gmra.mrb[0].mxu0 %v1673
        %v1884 = vpop.f32.mrb[0].mxu0
        %v1885 = vadd.f32 %v1595, %v1884
        %v1886 = vpop.f32.mrb[0].mxu0
        %1887 = vmatprep.mubr.f32.mxu0 0.0
        %1888 = vmatmul.mubr.f32.gmra.mrb[0].mxu0 %v1676
        %v1889 = vpop.f32.mrb[0].mxu0
        %v1890 = vadd.f32 %v1595, %v1889
        %v1891 = vpop.f32.mrb[0].mxu0
        %1892 = vmatprep.mubr.f32.mxu0 0.0
        %1893 = vmatmul.mubr.f32.gmra.mrb[0].mxu0 %v1679
        %v1894 = vpop.f32.mrb[0].mxu0
        %v1895 = vadd.f32 %v1595, %v1894
        %v1896 = vpop.f32.mrb[0].mxu0
        %1897 = vmatprep.mubr.f32.mxu0 0.0
        %1898 = vmatmul.mubr.f32.gmra.mrb[0].mxu0 %v1682
        %v1899 = vpop.f32.mrb[0].mxu0
        %v1900 = vadd.f32 %v1595, %v1899
        %v1901 = vpop.f32.mrb[0].mxu0
        %1902 = vmatprep.mubr.f32.mxu0 0.0
        %1903 = vmatmul.mubr.f32.gmra.mrb[0].mxu0 %v1685
        %v1904 = vpop.f32.mrb[0].mxu0
        %v1905 = vadd.f32 %v1595, %v1904
        %v1906 = vpop.f32.mrb[0].mxu0
        %1907 = vmatprep.mubr.f32.mxu0 0.0
        %1908 = vmatmul.mubr.f32.gmra.mrb[0].mxu0 %v1688
        %v1909 = vpop.f32.mrb[0].mxu0
        %v1910 = vadd.f32 %v1595, %v1909
        %v1911 = vpop.f32.mrb[0].mxu0
        %1912 = vmatprep.mubr.f32.mxu0 0.0
        %1913 = vmatmul.mubr.f32.gmra.mrb[0].mxu0 %v1691
        %v1914 = vpop.f32.mrb[0].mxu0
        %v1915 = vadd.f32 %v1595, %v1914
        %v1916 = vpop.f32.mrb[0].mxu0
        %1917 = vdwg.mxu0
        %vm1918 = vcmp.gt.f32.partialorder %v1760, 0.0
        %vm1919 = vcmp.gt.f32.partialorder %v1765, 0.0
        %vm1920 = vcmp.gt.f32.partialorder %v1770, 0.0
        %vm1921 = vcmp.gt.f32.partialorder %v1775, 0.0
        %vm1922 = vcmp.gt.f32.partialorder %v1780, 0.0
        %vm1923 = vcmp.gt.f32.partialorder %v1785, 0.0
        %vm1924 = vcmp.gt.f32.partialorder %v1790, 0.0
        %vm1925 = vcmp.gt.f32.partialorder %v1795, 0.0
        %vm1926 = vcmp.gt.f32.partialorder %v1800, 0.0
        %vm1927 = vcmp.gt.f32.partialorder %v1805, 0.0
        %vm1928 = vcmp.gt.f32.partialorder %v1810, 0.0
        %vm1929 = vcmp.gt.f32.partialorder %v1815, 0.0
        %vm1930 = vcmp.gt.f32.partialorder %v1820, 0.0
        %vm1931 = vcmp.gt.f32.partialorder %v1825, 0.0
        %vm1932 = vcmp.gt.f32.partialorder %v1830, 0.0
        %vm1933 = vcmp.gt.f32.partialorder %v1835, 0.0
        %vm1934 = vcmp.gt.f32.partialorder %v1840, 0.0
        %vm1935 = vcmp.gt.f32.partialorder %v1845, 0.0
        %vm1936 = vcmp.gt.f32.partialorder %v1850, 0.0
        %vm1937 = vcmp.gt.f32.partialorder %v1855, 0.0
        %vm1938 = vcmp.gt.f32.partialorder %v1860, 0.0
        %vm1939 = vcmp.gt.f32.partialorder %v1865, 0.0
        %vm1940 = vcmp.gt.f32.partialorder %v1870, 0.0
        %vm1941 = vcmp.gt.f32.partialorder %v1875, 0.0
        %vm1942 = vcmp.gt.f32.partialorder %v1880, 0.0
        %vm1943 = vcmp.gt.f32.partialorder %v1885, 0.0
        %vm1944 = vcmp.gt.f32.partialorder %v1890, 0.0
        %vm1945 = vcmp.gt.f32.partialorder %v1895, 0.0
        %vm1946 = vcmp.gt.f32.partialorder %v1900, 0.0
        %vm1947 = vcmp.gt.f32.partialorder %v1905, 0.0
        %vm1948 = vcmp.gt.f32.partialorder %v1910, 0.0
        %vm1949 = vcmp.gt.f32.partialorder %v1915, 0.0
        %v1950 = vmul.f32 %v1760, 0.01
        %v1951 = vmul.f32 %v1765, 0.01
        %v1952 = vmul.f32 %v1770, 0.01
        %v1953 = vmul.f32 %v1775, 0.01
        %v1954 = vmul.f32 %v1780, 0.01
        %v1955 = vmul.f32 %v1785, 0.01
        %v1956 = vmul.f32 %v1790, 0.01
        %v1957 = vmul.f32 %v1795, 0.01
        %v1958 = vmul.f32 %v1800, 0.01
        %v1959 = vmul.f32 %v1805, 0.01
        %v1960 = vmul.f32 %v1810, 0.01
        %v1961 = vmul.f32 %v1815, 0.01
        %v1962 = vmul.f32 %v1820, 0.01
        %v1963 = vmul.f32 %v1825, 0.01
        %v1964 = vmul.f32 %v1830, 0.01
        %v1965 = vmul.f32 %v1835, 0.01
        %v1966 = vmul.f32 %v1840, 0.01
        %v1967 = vmul.f32 %v1845, 0.01
        %v1968 = vmul.f32 %v1850, 0.01
        %v1969 = vmul.f32 %v1855, 0.01
        %v1970 = vmul.f32 %v1860, 0.01
        %v1971 = vmul.f32 %v1865, 0.01
        %v1972 = vmul.f32 %v1870, 0.01
        %v1973 = vmul.f32 %v1875, 0.01
        %v1974 = vmul.f32 %v1880, 0.01
        %v1975 = vmul.f32 %v1885, 0.01
        %v1976 = vmul.f32 %v1890, 0.01
        %v1977 = vmul.f32 %v1895, 0.01
        %v1978 = vmul.f32 %v1900, 0.01
        %v1979 = vmul.f32 %v1905, 0.01
        %v1980 = vmul.f32 %v1910, 0.01
        %v1981 = vmul.f32 %v1915, 0.01
        %v1982 = vsel %vm1918, %v1760, %v1950
        %v1983 = vsel %vm1919, %v1765, %v1951
        %v1984 = vsel %vm1920, %v1770, %v1952
        %v1985 = vsel %vm1921, %v1775, %v1953
        %v1986 = vsel %vm1922, %v1780, %v1954
        %v1987 = vsel %vm1923, %v1785, %v1955
        %v1988 = vsel %vm1924, %v1790, %v1956
        %v1989 = vsel %vm1925, %v1795, %v1957
        %v1990 = vsel %vm1926, %v1800, %v1958
        %v1991 = vsel %vm1927, %v1805, %v1959
        %v1992 = vsel %vm1928, %v1810, %v1960
        %v1993 = vsel %vm1929, %v1815, %v1961
        %v1994 = vsel %vm1930, %v1820, %v1962
        %v1995 = vsel %vm1931, %v1825, %v1963
        %v1996 = vsel %vm1932, %v1830, %v1964
        %v1997 = vsel %vm1933, %v1835, %v1965
        %v1998 = vsel %vm1934, %v1840, %v1966
        %v1999 = vsel %vm1935, %v1845, %v1967
        %v2000 = vsel %vm1936, %v1850, %v1968
        %v2001 = vsel %vm1937, %v1855, %v1969
        %v2002 = vsel %vm1938, %v1860, %v1970
        %v2003 = vsel %vm1939, %v1865, %v1971
        %v2004 = vsel %vm1940, %v1870, %v1972
        %v2005 = vsel %vm1941, %v1875, %v1973
        %v2006 = vsel %vm1942, %v1880, %v1974
        %v2007 = vsel %vm1943, %v1885, %v1975
        %v2008 = vsel %vm1944, %v1890, %v1976
        %v2009 = vsel %vm1945, %v1895, %v1977
        %v2010 = vsel %vm1946, %v1900, %v1978
        %v2011 = vsel %vm1947, %v1905, %v1979
        %v2012 = vsel %vm1948, %v1910, %v1980
        %v2013 = vsel %vm1949, %v1915, %v1981
        %v2014 = vld [vmem:[%s3] sm:$0xff]
        %v2015 = vld [vmem:[%s3 + $0x8] sm:$0xff]
        %v2016 = vld [vmem:[%s3 + $0x10] sm:$0xff]
        %v2017 = vld [vmem:[%s3 + $0x18] sm:$0xff]
        %v2018 = vld [vmem:[%s3 + $0x20] sm:$0xff]
        %v2019 = vld [vmem:[%s3 + $0x28] sm:$0xff]
        %v2020 = vld [vmem:[%s3 + $0x30] sm:$0xff]
        %v2021 = vld [vmem:[%s3 + $0x38] sm:$0xff]
        %v2022 = vld [vmem:[%s3 + $0x40] sm:$0xff]
        %v2023 = vld [vmem:[%s3 + $0x48] sm:$0xff]
        %v2024 = vld [vmem:[%s3 + $0x50] sm:$0xff]
        %v2025 = vld [vmem:[%s3 + $0x58] sm:$0xff]
        %v2026 = vld [vmem:[%s3 + $0x60] sm:$0xff]
        %v2027 = vld [vmem:[%s3 + $0x68] sm:$0xff]
        %v2028 = vld [vmem:[%s3 + $0x70] sm:$0xff]
        %v2029 = vld [vmem:[%s3 + $0x78] sm:$0xff]
        %v2031 = vsel %vm1168, %v1982, 0
        %v2034 = vsel %vm1168, %v1983, 0
        %v2037 = vsel %vm1168, %v1984, 0
        %v2040 = vsel %vm1168, %v1985, 0
        %v2043 = vsel %vm1168, %v1986, 0
        %v2046 = vsel %vm1168, %v1987, 0
        %v2049 = vsel %vm1168, %v1988, 0
        %v2052 = vsel %vm1168, %v1989, 0
        %v2055 = vsel %vm1168, %v1990, 0
        %v2058 = vsel %vm1168, %v1991, 0
        %v2061 = vsel %vm1168, %v1992, 0
        %v2064 = vsel %vm1168, %v1993, 0
        %v2067 = vsel %vm1168, %v1994, 0
        %v2070 = vsel %vm1168, %v1995, 0
        %v2073 = vsel %vm1168, %v1996, 0
        %v2076 = vsel %vm1168, %v1997, 0
        %v2079 = vsel %vm1168, %v1998, 0
        %v2082 = vsel %vm1168, %v1999, 0
        %v2085 = vsel %vm1168, %v2000, 0
        %v2088 = vsel %vm1168, %v2001, 0
        %v2091 = vsel %vm1168, %v2002, 0
        %v2094 = vsel %vm1168, %v2003, 0
        %v2097 = vsel %vm1168, %v2004, 0
        %v2100 = vsel %vm1168, %v2005, 0
        %v2103 = vsel %vm1168, %v2006, 0
        %v2106 = vsel %vm1168, %v2007, 0
        %v2109 = vsel %vm1168, %v2008, 0
        %v2112 = vsel %vm1168, %v2009, 0
        %v2115 = vsel %vm1168, %v2010, 0
        %v2118 = vsel %vm1168, %v2011, 0
        %v2121 = vsel %vm1168, %v2012, 0
        %v2124 = vsel %vm1168, %v2013, 0
        %2126 = vmatprep.subr.mxu0 0.0
        %2127 = vmatpush1.xpose.msra.mxu0 %v2079
        %2128 = vmatprep.subr.mxu0 0.0
        %2129 = vmatpush1.xpose.msra.mxu0 %v2082
        %2130 = vmatprep.subr.mxu0 0.0
        %2131 = vmatpush1.xpose.msra.mxu0 %v2085
        %2132 = vmatprep.subr.mxu0 0.0
        %2133 = vmatpush1.xpose.msra.mxu0 %v2088
        %2134 = vmatprep.subr.mxu0 0.0
        %2135 = vmatpush1.xpose.msra.mxu0 %v2091
        %2136 = vmatprep.subr.mxu0 0.0
        %2137 = vmatpush1.xpose.msra.mxu0 %v2094
        %2138 = vmatprep.subr.mxu0 0.0
        %2139 = vmatpush1.xpose.msra.mxu0 %v2097
        %2140 = vmatprep.subr.mxu0 0.0
        %2141 = vmatpush1.xpose.msra.mxu0 %v2100
        %2142 = vmatprep.subr.mxu0 0.0
        %2143 = vmatpush1.xpose.msra.mxu0 %v2103
        %2144 = vmatprep.subr.mxu0 0.0
        %2145 = vmatpush1.xpose.msra.mxu0 %v2106
        %2146 = vmatprep.subr.mxu0 0.0
        %2147 = vmatpush1.xpose.msra.mxu0 %v2109
        %2148 = vmatprep.subr.mxu0 0.0
        %2149 = vmatpush1.xpose.msra.mxu0 %v2112
        %2150 = vmatprep.subr.mxu0 0.0
        %2151 = vmatpush1.xpose.msra.mxu0 %v2115
        %2152 = vmatprep.subr.mxu0 0.0
        %2153 = vmatpush1.xpose.msra.mxu0 %v2118
        %2154 = vmatprep.subr.mxu0 0.0
        %2155 = vmatpush1.xpose.msra.mxu0 %v2121
        %2156 = vmatprep.subr.mxu0 0.0
        %2157 = vmatpush1.xpose.msra.mxu0 %v2124
        %2158 = vmatprep.subr.mxu0 0.0
        %2159 = vmatpush1.xpose.msra.mxu0 0.0
        %2160 = vmatprep.subr.mxu0 0.0
        %2161 = vmatpush1.xpose.msra.mxu0 0.0
        %2162 = vmatprep.subr.mxu0 0.0
        %2163 = vmatpush1.xpose.msra.mxu0 0.0
        %2164 = vmatprep.subr.mxu0 0.0
        %2165 = vmatpush1.xpose.msra.mxu0 0.0
        %2166 = vmatprep.subr.mxu0 0.0
        %2167 = vmatpush1.xpose.msra.mxu0 0.0
        %2168 = vmatprep.subr.mxu0 0.0
        %2169 = vmatpush1.xpose.msra.mxu0 0.0
        %2170 = vmatprep.subr.mxu0 0.0
        %2171 = vmatpush1.xpose.msra.mxu0 0.0
        %2172 = vmatprep.subr.mxu0 0.0
        %2173 = vmatpush1.xpose.msra.mxu0 0.0
        %2174 = vmatprep.subr.mxu0 0.0
        %2175 = vmatpush1.xpose.msra.mxu0 0.0
        %2176 = vmatprep.subr.mxu0 0.0
        %2177 = vmatpush1.xpose.msra.mxu0 0.0
        %2178 = vmatprep.subr.mxu0 0.0
        %2179 = vmatpush1.xpose.msra.mxu0 0.0
        %2180 = vmatprep.subr.mxu0 0.0
        %2181 = vmatpush1.xpose.msra.mxu0 0.0
        %2182 = vmatprep.subr.mxu0 0.0
        %2183 = vmatpush1.xpose.msra.mxu0 0.0
        %2184 = vmatprep.subr.mxu0 0.0
        %2185 = vmatpush1.xpose.msra.mxu0 0.0
        %2186 = vmatprep.subr.mxu0 0.0
        %2187 = vmatpush1.xpose.msra.mxu0 0.0
        %2188 = vmatprep.subr.mxu0 0.0
        %2189 = vmatpush1.xpose.msra.mxu0 0.0
        %2190 = vmatprep.mubr.f32.mxu0 0.0
        %2191 = vmatmul.mubr.f32.gmra.mrb[0].mxu0 %v2031
        %v2192 = vpop.f32.mrb[0].mxu0
        %v2193 = vadd.f32 %v2014, %v2192
        %v2194 = vpop.f32.mrb[0].mxu0
        %2195 = vmatprep.mubr.f32.mxu0 0.0
        %2196 = vmatmul.mubr.f32.gmra.mrb[0].mxu0 %v2034
        %v2197 = vpop.f32.mrb[0].mxu0
        %v2198 = vadd.f32 %v2015, %v2197
        %v2199 = vpop.f32.mrb[0].mxu0
        %2200 = vmatprep.mubr.f32.mxu0 0.0
        %2201 = vmatmul.mubr.f32.gmra.mrb[0].mxu0 %v2037
        %v2202 = vpop.f32.mrb[0].mxu0
        %v2203 = vadd.f32 %v2016, %v2202
        %v2204 = vpop.f32.mrb[0].mxu0
        %2205 = vmatprep.mubr.f32.mxu0 0.0
        %2206 = vmatmul.mubr.f32.gmra.mrb[0].mxu0 %v2040
        %v2207 = vpop.f32.mrb[0].mxu0
        %v2208 = vadd.f32 %v2017, %v2207
        %v2209 = vpop.f32.mrb[0].mxu0
        %2210 = vmatprep.mubr.f32.mxu0 0.0
        %2211 = vmatmul.mubr.f32.gmra.mrb[0].mxu0 %v2043
        %v2212 = vpop.f32.mrb[0].mxu0
        %v2213 = vadd.f32 %v2018, %v2212
        %v2214 = vpop.f32.mrb[0].mxu0
        %2215 = vmatprep.mubr.f32.mxu0 0.0
        %2216 = vmatmul.mubr.f32.gmra.mrb[0].mxu0 %v2046
        %v2217 = vpop.f32.mrb[0].mxu0
        %v2218 = vadd.f32 %v2019, %v2217
        %v2219 = vpop.f32.mrb[0].mxu0
        %2220 = vmatprep.mubr.f32.mxu0 0.0
        %2221 = vmatmul.mubr.f32.gmra.mrb[0].mxu0 %v2049
        %v2222 = vpop.f32.mrb[0].mxu0
        %v2223 = vadd.f32 %v2020, %v2222
        %v2224 = vpop.f32.mrb[0].mxu0
        %2225 = vmatprep.mubr.f32.mxu0 0.0
        %2226 = vmatmul.mubr.f32.gmra.mrb[0].mxu0 %v2052
        %v2227 = vpop.f32.mrb[0].mxu0
        %v2228 = vadd.f32 %v2021, %v2227
        %v2229 = vpop.f32.mrb[0].mxu0
        %2230 = vmatprep.mubr.f32.mxu0 0.0
        %2231 = vmatmul.mubr.f32.gmra.mrb[0].mxu0 %v2055
        %v2232 = vpop.f32.mrb[0].mxu0
        %v2233 = vadd.f32 %v2022, %v2232
        %v2234 = vpop.f32.mrb[0].mxu0
        %2235 = vmatprep.mubr.f32.mxu0 0.0
        %2236 = vmatmul.mubr.f32.gmra.mrb[0].mxu0 %v2058
        %v2237 = vpop.f32.mrb[0].mxu0
        %v2238 = vadd.f32 %v2023, %v2237
        %v2239 = vpop.f32.mrb[0].mxu0
        %2240 = vmatprep.mubr.f32.mxu0 0.0
        %2241 = vmatmul.mubr.f32.gmra.mrb[0].mxu0 %v2061
        %v2242 = vpop.f32.mrb[0].mxu0
        %v2243 = vadd.f32 %v2024, %v2242
        %v2244 = vpop.f32.mrb[0].mxu0
        %2245 = vmatprep.mubr.f32.mxu0 0.0
        %2246 = vmatmul.mubr.f32.gmra.mrb[0].mxu0 %v2064
        %v2247 = vpop.f32.mrb[0].mxu0
        %v2248 = vadd.f32 %v2025, %v2247
        %v2249 = vpop.f32.mrb[0].mxu0
        %2250 = vmatprep.mubr.f32.mxu0 0.0
        %2251 = vmatmul.mubr.f32.gmra.mrb[0].mxu0 %v2067
        %v2252 = vpop.f32.mrb[0].mxu0
        %v2253 = vadd.f32 %v2026, %v2252
        %v2254 = vpop.f32.mrb[0].mxu0
        %2255 = vmatprep.mubr.f32.mxu0 0.0
        %2256 = vmatmul.mubr.f32.gmra.mrb[0].mxu0 %v2070
        %v2257 = vpop.f32.mrb[0].mxu0
        %v2258 = vadd.f32 %v2027, %v2257
        %v2259 = vpop.f32.mrb[0].mxu0
        %2260 = vmatprep.mubr.f32.mxu0 0.0
        %2261 = vmatmul.mubr.f32.gmra.mrb[0].mxu0 %v2073
        %v2262 = vpop.f32.mrb[0].mxu0
        %v2263 = vadd.f32 %v2028, %v2262
        %v2264 = vpop.f32.mrb[0].mxu0
        %2265 = vmatprep.mubr.f32.mxu0 0.0
        %2266 = vmatmul.mubr.f32.gmra.mrb[0].mxu0 %v2076
        %v2267 = vpop.f32.mrb[0].mxu0
        %v2268 = vadd.f32 %v2029, %v2267
        %v2269 = vpop.f32.mrb[0].mxu0
        %2270 = vdwg.mxu0
        %v2271 = vld [vmem:[%s4] sm:$0xff]
        %v2272 = vld [vmem:[%s4 + $0x8] sm:$0xff]
        %v2273 = vld [vmem:[%s4 + $0x10] sm:$0xff]
        %v2274 = vld [vmem:[%s4 + $0x18] sm:$0xff]
        %v2275 = vld [vmem:[%s4 + $0x20] sm:$0xff]
        %v2276 = vld [vmem:[%s4 + $0x28] sm:$0xff]
        %v2277 = vld [vmem:[%s4 + $0x30] sm:$0xff]
        %v2278 = vld [vmem:[%s4 + $0x38] sm:$0xff]
        %v2279 = vld [vmem:[%s4 + $0x40] sm:$0xff]
        %v2280 = vld [vmem:[%s4 + $0x48] sm:$0xff]
        %v2281 = vld [vmem:[%s4 + $0x50] sm:$0xff]
        %v2282 = vld [vmem:[%s4 + $0x58] sm:$0xff]
        %v2283 = vld [vmem:[%s4 + $0x60] sm:$0xff]
        %v2284 = vld [vmem:[%s4 + $0x68] sm:$0xff]
        %v2285 = vld [vmem:[%s4 + $0x70] sm:$0xff]
        %v2286 = vld [vmem:[%s4 + $0x78] sm:$0xff]
        %2287 = vmatprep.subr.mxu0 0.0
        %2288 = vmatpush1.xpose.msra.mxu0 %v2031
        %2289 = vmatprep.subr.mxu0 0.0
        %2290 = vmatpush1.xpose.msra.mxu0 %v2034
        %2291 = vmatprep.subr.mxu0 0.0
        %2292 = vmatpush1.xpose.msra.mxu0 %v2037
        %2293 = vmatprep.subr.mxu0 0.0
        %2294 = vmatpush1.xpose.msra.mxu0 %v2040
        %2295 = vmatprep.subr.mxu0 0.0
        %2296 = vmatpush1.xpose.msra.mxu0 %v2043
        %2297 = vmatprep.subr.mxu0 0.0
        %2298 = vmatpush1.xpose.msra.mxu0 %v2046
        %2299 = vmatprep.subr.mxu0 0.0
        %2300 = vmatpush1.xpose.msra.mxu0 %v2049
        %2301 = vmatprep.subr.mxu0 0.0
        %2302 = vmatpush1.xpose.msra.mxu0 %v2052
        %2303 = vmatprep.subr.mxu0 0.0
        %2304 = vmatpush1.xpose.msra.mxu0 %v2055
        %2305 = vmatprep.subr.mxu0 0.0
        %2306 = vmatpush1.xpose.msra.mxu0 %v2058
        %2307 = vmatprep.subr.mxu0 0.0
        %2308 = vmatpush1.xpose.msra.mxu0 %v2061
        %2309 = vmatprep.subr.mxu0 0.0
        %2310 = vmatpush1.xpose.msra.mxu0 %v2064
        %2311 = vmatprep.subr.mxu0 0.0
        %2312 = vmatpush1.xpose.msra.mxu0 %v2067
        %2313 = vmatprep.subr.mxu0 0.0
        %2314 = vmatpush1.xpose.msra.mxu0 %v2070
        %2315 = vmatprep.subr.mxu0 0.0
        %2316 = vmatpush1.xpose.msra.mxu0 %v2073
        %2317 = vmatprep.subr.mxu0 0.0
        %2318 = vmatpush1.xpose.msra.mxu0 %v2076
        %2319 = vmatprep.subr.mxu0 0.0
        %2320 = vmatpush1.xpose.msra.mxu0 0.0
        %2321 = vmatprep.subr.mxu0 0.0
        %2322 = vmatpush1.xpose.msra.mxu0 0.0
        %2323 = vmatprep.subr.mxu0 0.0
        %2324 = vmatpush1.xpose.msra.mxu0 0.0
        %2325 = vmatprep.subr.mxu0 0.0
        %2326 = vmatpush1.xpose.msra.mxu0 0.0
        %2327 = vmatprep.subr.mxu0 0.0
        %2328 = vmatpush1.xpose.msra.mxu0 0.0
        %2329 = vmatprep.subr.mxu0 0.0
        %2330 = vmatpush1.xpose.msra.mxu0 0.0
        %2331 = vmatprep.subr.mxu0 0.0
        %2332 = vmatpush1.xpose.msra.mxu0 0.0
        %2333 = vmatprep.subr.mxu0 0.0
        %2334 = vmatpush1.xpose.msra.mxu0 0.0
        %2335 = vmatprep.subr.mxu0 0.0
        %2336 = vmatpush1.xpose.msra.mxu0 0.0
        %2337 = vmatprep.subr.mxu0 0.0
        %2338 = vmatpush1.xpose.msra.mxu0 0.0
        %2339 = vmatprep.subr.mxu0 0.0
        %2340 = vmatpush1.xpose.msra.mxu0 0.0
        %2341 = vmatprep.subr.mxu0 0.0
        %2342 = vmatpush1.xpose.msra.mxu0 0.0
        %2343 = vmatprep.subr.mxu0 0.0
        %2344 = vmatpush1.xpose.msra.mxu0 0.0
        %2345 = vmatprep.subr.mxu0 0.0
        %2346 = vmatpush1.xpose.msra.mxu0 0.0
        %2347 = vmatprep.subr.mxu0 0.0
        %2348 = vmatpush1.xpose.msra.mxu0 0.0
        %2349 = vmatprep.subr.mxu0 0.0
        %2350 = vmatpush1.xpose.msra.mxu0 0.0
        %2351 = vmatprep.mubr.f32.mxu0 0.0
        %2352 = vmatmul.mubr.f32.gmra.mrb[0].mxu0 %v2079
        %v2353 = vpop.f32.mrb[0].mxu0
        %v2354 = vadd.f32 %v2271, %v2353
        %v2355 = vpop.f32.mrb[0].mxu0
        %2356 = vmatprep.mubr.f32.mxu0 0.0
        %2357 = vmatmul.mubr.f32.gmra.mrb[0].mxu0 %v2082
        %v2358 = vpop.f32.mrb[0].mxu0
        %v2359 = vadd.f32 %v2272, %v2358
        %v2360 = vpop.f32.mrb[0].mxu0
        %2361 = vmatprep.mubr.f32.mxu0 0.0
        %2362 = vmatmul.mubr.f32.gmra.mrb[0].mxu0 %v2085
        %v2363 = vpop.f32.mrb[0].mxu0
        %v2364 = vadd.f32 %v2273, %v2363
        %v2365 = vpop.f32.mrb[0].mxu0
        %2366 = vmatprep.mubr.f32.mxu0 0.0
        %2367 = vmatmul.mubr.f32.gmra.mrb[0].mxu0 %v2088
        %v2368 = vpop.f32.mrb[0].mxu0
        %v2369 = vadd.f32 %v2274, %v2368
        %v2370 = vpop.f32.mrb[0].mxu0
        %2371 = vmatprep.mubr.f32.mxu0 0.0
        %2372 = vmatmul.mubr.f32.gmra.mrb[0].mxu0 %v2091
        %v2373 = vpop.f32.mrb[0].mxu0
        %v2374 = vadd.f32 %v2275, %v2373
        %v2375 = vpop.f32.mrb[0].mxu0
        %2376 = vmatprep.mubr.f32.mxu0 0.0
        %2377 = vmatmul.mubr.f32.gmra.mrb[0].mxu0 %v2094
        %v2378 = vpop.f32.mrb[0].mxu0
        %v2379 = vadd.f32 %v2276, %v2378
        %v2380 = vpop.f32.mrb[0].mxu0
        %2381 = vmatprep.mubr.f32.mxu0 0.0
        %2382 = vmatmul.mubr.f32.gmra.mrb[0].mxu0 %v2097
        %v2383 = vpop.f32.mrb[0].mxu0
        %v2384 = vadd.f32 %v2277, %v2383
        %v2385 = vpop.f32.mrb[0].mxu0
        %2386 = vmatprep.mubr.f32.mxu0 0.0
        %2387 = vmatmul.mubr.f32.gmra.mrb[0].mxu0 %v2100
        %v2388 = vpop.f32.mrb[0].mxu0
        %v2389 = vadd.f32 %v2278, %v2388
        %v2390 = vpop.f32.mrb[0].mxu0
        %2391 = vmatprep.mubr.f32.mxu0 0.0
        %2392 = vmatmul.mubr.f32.gmra.mrb[0].mxu0 %v2103
        %v2393 = vpop.f32.mrb[0].mxu0
        %v2394 = vadd.f32 %v2279, %v2393
        %v2395 = vpop.f32.mrb[0].mxu0
        %2396 = vmatprep.mubr.f32.mxu0 0.0
        %2397 = vmatmul.mubr.f32.gmra.mrb[0].mxu0 %v2106
        %v2398 = vpop.f32.mrb[0].mxu0
        %v2399 = vadd.f32 %v2280, %v2398
        %v2400 = vpop.f32.mrb[0].mxu0
        %2401 = vmatprep.mubr.f32.mxu0 0.0
        %2402 = vmatmul.mubr.f32.gmra.mrb[0].mxu0 %v2109
        %v2403 = vpop.f32.mrb[0].mxu0
        %v2404 = vadd.f32 %v2281, %v2403
        %v2405 = vpop.f32.mrb[0].mxu0
        %2406 = vmatprep.mubr.f32.mxu0 0.0
        %2407 = vmatmul.mubr.f32.gmra.mrb[0].mxu0 %v2112
        %v2408 = vpop.f32.mrb[0].mxu0
        %v2409 = vadd.f32 %v2282, %v2408
        %v2410 = vpop.f32.mrb[0].mxu0
        %2411 = vmatprep.mubr.f32.mxu0 0.0
        %2412 = vmatmul.mubr.f32.gmra.mrb[0].mxu0 %v2115
        %v2413 = vpop.f32.mrb[0].mxu0
        %v2414 = vadd.f32 %v2283, %v2413
        %v2415 = vpop.f32.mrb[0].mxu0
        %2416 = vmatprep.mubr.f32.mxu0 0.0
        %2417 = vmatmul.mubr.f32.gmra.mrb[0].mxu0 %v2118
        %v2418 = vpop.f32.mrb[0].mxu0
        %v2419 = vadd.f32 %v2284, %v2418
        %v2420 = vpop.f32.mrb[0].mxu0
        %2421 = vmatprep.mubr.f32.mxu0 0.0
        %2422 = vmatmul.mubr.f32.gmra.mrb[0].mxu0 %v2121
        %v2423 = vpop.f32.mrb[0].mxu0
        %v2424 = vadd.f32 %v2285, %v2423
        %v2425 = vpop.f32.mrb[0].mxu0
        %2426 = vmatprep.mubr.f32.mxu0 0.0
        %2427 = vmatmul.mubr.f32.gmra.mrb[0].mxu0 %v2124
        %v2428 = vpop.f32.mrb[0].mxu0
        %v2429 = vadd.f32 %v2286, %v2428
        %v2430 = vpop.f32.mrb[0].mxu0
        %2431 = vdwg.mxu0
        %2432 = vmax.xlane.f32.xlu0 %v2193
        %v2433 = vpop.xlane.xlu0 %2432
        %2434 = vmax.xlane.f32.xlu0 %v2198
        %v2435 = vpop.xlane.xlu0 %2434
        %2436 = vmax.xlane.f32.xlu0 %v2203
        %v2437 = vpop.xlane.xlu0 %2436
        %2438 = vmax.xlane.f32.xlu0 %v2208
        %v2439 = vpop.xlane.xlu0 %2438
        %2440 = vmax.xlane.f32.xlu0 %v2213
        %v2441 = vpop.xlane.xlu0 %2440
        %2442 = vmax.xlane.f32.xlu0 %v2218
        %v2443 = vpop.xlane.xlu0 %2442
        %2444 = vmax.xlane.f32.xlu0 %v2223
        %v2445 = vpop.xlane.xlu0 %2444
        %2446 = vmax.xlane.f32.xlu0 %v2228
        %v2447 = vpop.xlane.xlu0 %2446
        %2448 = vmax.xlane.f32.xlu0 %v2233
        %v2449 = vpop.xlane.xlu0 %2448
        %2450 = vmax.xlane.f32.xlu0 %v2238
        %v2451 = vpop.xlane.xlu0 %2450
        %2452 = vmax.xlane.f32.xlu0 %v2243
        %v2453 = vpop.xlane.xlu0 %2452
        %2454 = vmax.xlane.f32.xlu0 %v2248
        %v2455 = vpop.xlane.xlu0 %2454
        %2456 = vmax.xlane.f32.xlu0 %v2253
        %v2457 = vpop.xlane.xlu0 %2456
        %2458 = vmax.xlane.f32.xlu0 %v2258
        %v2459 = vpop.xlane.xlu0 %2458
        %2460 = vmax.xlane.f32.xlu0 %v2263
        %v2461 = vpop.xlane.xlu0 %2460
        %2462 = vmax.xlane.f32.xlu0 %v2268
        %v2463 = vpop.xlane.xlu0 %2462
        %v2464 = vsub.f32 %v2193, %v2433
        %v2465 = vsub.f32 %v2198, %v2435
        %v2466 = vsub.f32 %v2203, %v2437
        %v2467 = vsub.f32 %v2208, %v2439
        %v2468 = vsub.f32 %v2213, %v2441
        %v2469 = vsub.f32 %v2218, %v2443
        %v2470 = vsub.f32 %v2223, %v2445
        %v2471 = vsub.f32 %v2228, %v2447
        %v2472 = vsub.f32 %v2233, %v2449
        %v2473 = vsub.f32 %v2238, %v2451
        %v2474 = vsub.f32 %v2243, %v2453
        %v2475 = vsub.f32 %v2248, %v2455
        %v2476 = vsub.f32 %v2253, %v2457
        %v2477 = vsub.f32 %v2258, %v2459
        %v2478 = vsub.f32 %v2263, %v2461
        %v2479 = vsub.f32 %v2268, %v2463
        %v2480 = vmul.f32 %v2464, 1.442695
        %v2481 = vpow.pop %v2480
        %v2482 = vmul.f32 %v2465, 1.442695
        %v2483 = vpow.pop %v2482
        %v2484 = vmul.f32 %v2466, 1.442695
        %v2485 = vpow.pop %v2484
        %v2486 = vmul.f32 %v2467, 1.442695
        %v2487 = vpow.pop %v2486
        %v2488 = vmul.f32 %v2468, 1.442695
        %v2489 = vpow.pop %v2488
        %v2490 = vmul.f32 %v2469, 1.442695
        %v2491 = vpow.pop %v2490
        %v2492 = vmul.f32 %v2470, 1.442695
        %v2493 = vpow.pop %v2492
        %v2494 = vmul.f32 %v2471, 1.442695
        %v2495 = vpow.pop %v2494
        %v2496 = vmul.f32 %v2472, 1.442695
        %v2497 = vpow.pop %v2496
        %v2498 = vmul.f32 %v2473, 1.442695
        %v2499 = vpow.pop %v2498
        %v2500 = vmul.f32 %v2474, 1.442695
        %v2501 = vpow.pop %v2500
        %v2502 = vmul.f32 %v2475, 1.442695
        %v2503 = vpow.pop %v2502
        %v2504 = vmul.f32 %v2476, 1.442695
        %v2505 = vpow.pop %v2504
        %v2506 = vmul.f32 %v2477, 1.442695
        %v2507 = vpow.pop %v2506
        %v2508 = vmul.f32 %v2478, 1.442695
        %v2509 = vpow.pop %v2508
        %v2510 = vmul.f32 %v2479, 1.442695
        %v2511 = vpow.pop %v2510
        %2512 = vadd.xlane.f32.xlu0 %v2481
        %v2513 = vpop.xlane.xlu0 %2512
        %2514 = vadd.xlane.f32.xlu0 %v2483
        %v2515 = vpop.xlane.xlu0 %2514
        %2516 = vadd.xlane.f32.xlu0 %v2485
        %v2517 = vpop.xlane.xlu0 %2516
        %2518 = vadd.xlane.f32.xlu0 %v2487
        %v2519 = vpop.xlane.xlu0 %2518
        %2520 = vadd.xlane.f32.xlu0 %v2489
        %v2521 = vpop.xlane.xlu0 %2520
        %2522 = vadd.xlane.f32.xlu0 %v2491
        %v2523 = vpop.xlane.xlu0 %2522
        %2524 = vadd.xlane.f32.xlu0 %v2493
        %v2525 = vpop.xlane.xlu0 %2524
        %2526 = vadd.xlane.f32.xlu0 %v2495
        %v2527 = vpop.xlane.xlu0 %2526
        %2528 = vadd.xlane.f32.xlu0 %v2497
        %v2529 = vpop.xlane.xlu0 %2528
        %2530 = vadd.xlane.f32.xlu0 %v2499
        %v2531 = vpop.xlane.xlu0 %2530
        %2532 = vadd.xlane.f32.xlu0 %v2501
        %v2533 = vpop.xlane.xlu0 %2532
        %2534 = vadd.xlane.f32.xlu0 %v2503
        %v2535 = vpop.xlane.xlu0 %2534
        %2536 = vadd.xlane.f32.xlu0 %v2505
        %v2537 = vpop.xlane.xlu0 %2536
        %2538 = vadd.xlane.f32.xlu0 %v2507
        %v2539 = vpop.xlane.xlu0 %2538
        %2540 = vadd.xlane.f32.xlu0 %v2509
        %v2541 = vpop.xlane.xlu0 %2540
        %2542 = vadd.xlane.f32.xlu0 %v2511
        %v2543 = vpop.xlane.xlu0 %2542
        %v2544 = vrcp.pop %v2513
        %v2545 = vrcp.pop %v2515
        %v2546 = vrcp.pop %v2517
        %v2547 = vrcp.pop %v2519
        %v2548 = vrcp.pop %v2521
        %v2549 = vrcp.pop %v2523
        %v2550 = vrcp.pop %v2525
        %v2551 = vrcp.pop %v2527
        %v2552 = vrcp.pop %v2529
        %v2553 = vrcp.pop %v2531
        %v2554 = vrcp.pop %v2533
        %v2555 = vrcp.pop %v2535
        %v2556 = vrcp.pop %v2537
        %v2557 = vrcp.pop %v2539
        %v2558 = vrcp.pop %v2541
        %v2559 = vrcp.pop %v2543
        %v2560 = vmul.f32 %v2513, %v2544
        %v2561 = vmul.f32 %v2515, %v2545
        %v2562 = vmul.f32 %v2517, %v2546
        %v2563 = vmul.f32 %v2519, %v2547
        %v2564 = vmul.f32 %v2521, %v2548
        %v2565 = vmul.f32 %v2523, %v2549
        %v2566 = vmul.f32 %v2525, %v2550
        %v2567 = vmul.f32 %v2527, %v2551
        %v2568 = vmul.f32 %v2529, %v2552
        %v2569 = vmul.f32 %v2531, %v2553
        %v2570 = vmul.f32 %v2533, %v2554
        %v2571 = vmul.f32 %v2535, %v2555
        %v2572 = vmul.f32 %v2537, %v2556
        %v2573 = vmul.f32 %v2539, %v2557
        %v2574 = vmul.f32 %v2541, %v2558
        %v2575 = vmul.f32 %v2543, %v2559
        %v2576 = vsub.f32 2.0, %v2560
        %v2577 = vsub.f32 2.0, %v2561
        %v2578 = vsub.f32 2.0, %v2562
        %v2579 = vsub.f32 2.0, %v2563
        %v2580 = vsub.f32 2.0, %v2564
        %v2581 = vsub.f32 2.0, %v2565
        %v2582 = vsub.f32 2.0, %v2566
        %v2583 = vsub.f32 2.0, %v2567
        %v2584 = vsub.f32 2.0, %v2568
        %v2585 = vsub.f32 2.0, %v2569
        %v2586 = vsub.f32 2.0, %v2570
        %v2587 = vsub.f32 2.0, %v2571
        %v2588 = vsub.f32 2.0, %v2572
        %v2589 = vsub.f32 2.0, %v2573
        %v2590 = vsub.f32 2.0, %v2574
        %v2591 = vsub.f32 2.0, %v2575
        %v2592 = vmul.f32 %v2544, %v2576
        %v2593 = vmul.f32 %v2545, %v2577
        %v2594 = vmul.f32 %v2546, %v2578
        %v2595 = vmul.f32 %v2547, %v2579
        %v2596 = vmul.f32 %v2548, %v2580
        %v2597 = vmul.f32 %v2549, %v2581
        %v2598 = vmul.f32 %v2550, %v2582
        %v2599 = vmul.f32 %v2551, %v2583
        %v2600 = vmul.f32 %v2552, %v2584
        %v2601 = vmul.f32 %v2553, %v2585
        %v2602 = vmul.f32 %v2554, %v2586
        %v2603 = vmul.f32 %v2555, %v2587
        %v2604 = vmul.f32 %v2556, %v2588
        %v2605 = vmul.f32 %v2557, %v2589
        %v2606 = vmul.f32 %v2558, %v2590
        %v2607 = vmul.f32 %v2559, %v2591
        %v2608 = vmul.f32 %v2481, %v2592
        %v2609 = vmul.f32 %v2483, %v2593
        %v2610 = vmul.f32 %v2485, %v2594
        %v2611 = vmul.f32 %v2487, %v2595
        %v2612 = vmul.f32 %v2489, %v2596
        %v2613 = vmul.f32 %v2491, %v2597
        %v2614 = vmul.f32 %v2493, %v2598
        %v2615 = vmul.f32 %v2495, %v2599
        %v2616 = vmul.f32 %v2497, %v2600
        %v2617 = vmul.f32 %v2499, %v2601
        %v2618 = vmul.f32 %v2501, %v2602
        %v2619 = vmul.f32 %v2503, %v2603
        %v2620 = vmul.f32 %v2505, %v2604
        %v2621 = vmul.f32 %v2507, %v2605
        %v2622 = vmul.f32 %v2509, %v2606
        %v2623 = vmul.f32 %v2511, %v2607
        %2624 = vmatprep.subr.mxu0 0.0
        %2625 = vmatpush1.msra.mxu0 %v1079
        %2626 = vmatprep.subr.mxu0 0.0
        %2627 = vmatpush1.msra.mxu0 %v1084
        %2628 = vmatprep.subr.mxu0 0.0
        %2629 = vmatpush1.msra.mxu0 %v1089
        %2630 = vmatprep.subr.mxu0 0.0
        %2631 = vmatpush1.msra.mxu0 %v1094
        %2632 = vmatprep.subr.mxu0 0.0
        %2633 = vmatpush1.msra.mxu0 %v1099
        %2634 = vmatprep.subr.mxu0 0.0
        %2635 = vmatpush1.msra.mxu0 %v1104
        %2636 = vmatprep.subr.mxu0 0.0
        %2637 = vmatpush1.msra.mxu0 %v1109
        %2638 = vmatprep.subr.mxu0 0.0
        %2639 = vmatpush1.msra.mxu0 %v1114
        %2640 = vmatprep.subr.mxu0 0.0
        %2641 = vmatpush1.msra.mxu0 %v1119
        %2642 = vmatprep.subr.mxu0 0.0
        %2643 = vmatpush1.msra.mxu0 %v1124
        %2644 = vmatprep.subr.mxu0 0.0
        %2645 = vmatpush1.msra.mxu0 %v1129
        %2646 = vmatprep.subr.mxu0 0.0
        %2647 = vmatpush1.msra.mxu0 %v1134
        %2648 = vmatprep.subr.mxu0 0.0
        %2649 = vmatpush1.msra.mxu0 %v1139
        %2650 = vmatprep.subr.mxu0 0.0
        %2651 = vmatpush1.msra.mxu0 %v1144
        %2652 = vmatprep.subr.mxu0 0.0
        %2653 = vmatpush1.msra.mxu0 %v1149
        %2654 = vmatprep.subr.mxu0 0.0
        %2655 = vmatpush1.msra.mxu0 %v1154
        %2656 = vmatprep.subr.mxu0 0.0
        %2657 = vmatpush1.msra.mxu0 0.0
        %2658 = vmatprep.subr.mxu0 0.0
        %2659 = vmatpush1.msra.mxu0 0.0
        %2660 = vmatprep.subr.mxu0 0.0
        %2661 = vmatpush1.msra.mxu0 0.0
        %2662 = vmatprep.subr.mxu0 0.0
        %2663 = vmatpush1.msra.mxu0 0.0
        %2664 = vmatprep.subr.mxu0 0.0
        %2665 = vmatpush1.msra.mxu0 0.0
        %2666 = vmatprep.subr.mxu0 0.0
        %2667 = vmatpush1.msra.mxu0 0.0
        %2668 = vmatprep.subr.mxu0 0.0
        %2669 = vmatpush1.msra.mxu0 0.0
        %2670 = vmatprep.subr.mxu0 0.0
        %2671 = vmatpush1.msra.mxu0 0.0
        %2672 = vmatprep.subr.mxu0 0.0
        %2673 = vmatpush1.msra.mxu0 0.0
        %2674 = vmatprep.subr.mxu0 0.0
        %2675 = vmatpush1.msra.mxu0 0.0
        %2676 = vmatprep.subr.mxu0 0.0
        %2677 = vmatpush1.msra.mxu0 0.0
        %2678 = vmatprep.subr.mxu0 0.0
        %2679 = vmatpush1.msra.mxu0 0.0
        %2680 = vmatprep.subr.mxu0 0.0
        %2681 = vmatpush1.msra.mxu0 0.0
        %2682 = vmatprep.subr.mxu0 0.0
        %2683 = vmatpush1.msra.mxu0 0.0
        %2684 = vmatprep.subr.mxu0 0.0
        %2685 = vmatpush1.msra.mxu0 0.0
        %2686 = vmatprep.subr.mxu0 0.0
        %2687 = vmatpush1.msra.mxu0 0.0
        %2688 = vmatprep.mubr.f32.mxu0 0.0
        %2689 = vmatmul.mubr.f32.gmra.mrb[0].mxu0 %v2608
        %v2690 = vpop.f32.mrb[0].mxu0
        %v2691 = vadd.f32 0.0, %v2690
        %v2692 = vpop.f32.mrb[0].mxu0
        %2693 = vmatprep.mubr.f32.mxu0 0.0
        %2694 = vmatmul.mubr.f32.gmra.mrb[0].mxu0 %v2609
        %v2695 = vpop.f32.mrb[0].mxu0
        %v2696 = vadd.f32 0.0, %v2695
        %v2697 = vpop.f32.mrb[0].mxu0
        %2698 = vmatprep.mubr.f32.mxu0 0.0
        %2699 = vmatmul.mubr.f32.gmra.mrb[0].mxu0 %v2610
        %v2700 = vpop.f32.mrb[0].mxu0
        %v2701 = vadd.f32 0.0, %v2700
        %v2702 = vpop.f32.mrb[0].mxu0
        %2703 = vmatprep.mubr.f32.mxu0 0.0
        %2704 = vmatmul.mubr.f32.gmra.mrb[0].mxu0 %v2611
        %v2705 = vpop.f32.mrb[0].mxu0
        %v2706 = vadd.f32 0.0, %v2705
        %v2707 = vpop.f32.mrb[0].mxu0
        %2708 = vmatprep.mubr.f32.mxu0 0.0
        %2709 = vmatmul.mubr.f32.gmra.mrb[0].mxu0 %v2612
        %v2710 = vpop.f32.mrb[0].mxu0
        %v2711 = vadd.f32 0.0, %v2710
        %v2712 = vpop.f32.mrb[0].mxu0
        %2713 = vmatprep.mubr.f32.mxu0 0.0
        %2714 = vmatmul.mubr.f32.gmra.mrb[0].mxu0 %v2613
        %v2715 = vpop.f32.mrb[0].mxu0
        %v2716 = vadd.f32 0.0, %v2715
        %v2717 = vpop.f32.mrb[0].mxu0
        %2718 = vmatprep.mubr.f32.mxu0 0.0
        %2719 = vmatmul.mubr.f32.gmra.mrb[0].mxu0 %v2614
        %v2720 = vpop.f32.mrb[0].mxu0
        %v2721 = vadd.f32 0.0, %v2720
        %v2722 = vpop.f32.mrb[0].mxu0
        %2723 = vmatprep.mubr.f32.mxu0 0.0
        %2724 = vmatmul.mubr.f32.gmra.mrb[0].mxu0 %v2615
        %v2725 = vpop.f32.mrb[0].mxu0
        %v2726 = vadd.f32 0.0, %v2725
        %v2727 = vpop.f32.mrb[0].mxu0
        %2728 = vmatprep.mubr.f32.mxu0 0.0
        %2729 = vmatmul.mubr.f32.gmra.mrb[0].mxu0 %v2616
        %v2730 = vpop.f32.mrb[0].mxu0
        %v2731 = vadd.f32 0.0, %v2730
        %v2732 = vpop.f32.mrb[0].mxu0
        %2733 = vmatprep.mubr.f32.mxu0 0.0
        %2734 = vmatmul.mubr.f32.gmra.mrb[0].mxu0 %v2617
        %v2735 = vpop.f32.mrb[0].mxu0
        %v2736 = vadd.f32 0.0, %v2735
        %v2737 = vpop.f32.mrb[0].mxu0
        %2738 = vmatprep.mubr.f32.mxu0 0.0
        %2739 = vmatmul.mubr.f32.gmra.mrb[0].mxu0 %v2618
        %v2740 = vpop.f32.mrb[0].mxu0
        %v2741 = vadd.f32 0.0, %v2740
        %v2742 = vpop.f32.mrb[0].mxu0
        %2743 = vmatprep.mubr.f32.mxu0 0.0
        %2744 = vmatmul.mubr.f32.gmra.mrb[0].mxu0 %v2619
        %v2745 = vpop.f32.mrb[0].mxu0
        %v2746 = vadd.f32 0.0, %v2745
        %v2747 = vpop.f32.mrb[0].mxu0
        %2748 = vmatprep.mubr.f32.mxu0 0.0
        %2749 = vmatmul.mubr.f32.gmra.mrb[0].mxu0 %v2620
        %v2750 = vpop.f32.mrb[0].mxu0
        %v2751 = vadd.f32 0.0, %v2750
        %v2752 = vpop.f32.mrb[0].mxu0
        %2753 = vmatprep.mubr.f32.mxu0 0.0
        %2754 = vmatmul.mubr.f32.gmra.mrb[0].mxu0 %v2621
        %v2755 = vpop.f32.mrb[0].mxu0
        %v2756 = vadd.f32 0.0, %v2755
        %v2757 = vpop.f32.mrb[0].mxu0
        %2758 = vmatprep.mubr.f32.mxu0 0.0
        %2759 = vmatmul.mubr.f32.gmra.mrb[0].mxu0 %v2622
        %v2760 = vpop.f32.mrb[0].mxu0
        %v2761 = vadd.f32 0.0, %v2760
        %v2762 = vpop.f32.mrb[0].mxu0
        %2763 = vmatprep.mubr.f32.mxu0 0.0
        %2764 = vmatmul.mubr.f32.gmra.mrb[0].mxu0 %v2623
        %v2765 = vpop.f32.mrb[0].mxu0
        %v2766 = vadd.f32 0.0, %v2765
        %v2767 = vpop.f32.mrb[0].mxu0
        %2768 = vdwg.mxu0
        %2769 = vmax.xlane.f32.xlu0 %v2354
        %v2770 = vpop.xlane.xlu0 %2769
        %2771 = vmax.xlane.f32.xlu0 %v2359
        %v2772 = vpop.xlane.xlu0 %2771
        %2773 = vmax.xlane.f32.xlu0 %v2364
        %v2774 = vpop.xlane.xlu0 %2773
        %2775 = vmax.xlane.f32.xlu0 %v2369
        %v2776 = vpop.xlane.xlu0 %2775
        %2777 = vmax.xlane.f32.xlu0 %v2374
        %v2778 = vpop.xlane.xlu0 %2777
        %2779 = vmax.xlane.f32.xlu0 %v2379
        %v2780 = vpop.xlane.xlu0 %2779
        %2781 = vmax.xlane.f32.xlu0 %v2384
        %v2782 = vpop.xlane.xlu0 %2781
        %2783 = vmax.xlane.f32.xlu0 %v2389
        %v2784 = vpop.xlane.xlu0 %2783
        %2785 = vmax.xlane.f32.xlu0 %v2394
        %v2786 = vpop.xlane.xlu0 %2785
        %2787 = vmax.xlane.f32.xlu0 %v2399
        %v2788 = vpop.xlane.xlu0 %2787
        %2789 = vmax.xlane.f32.xlu0 %v2404
        %v2790 = vpop.xlane.xlu0 %2789
        %2791 = vmax.xlane.f32.xlu0 %v2409
        %v2792 = vpop.xlane.xlu0 %2791
        %2793 = vmax.xlane.f32.xlu0 %v2414
        %v2794 = vpop.xlane.xlu0 %2793
        %2795 = vmax.xlane.f32.xlu0 %v2419
        %v2796 = vpop.xlane.xlu0 %2795
        %2797 = vmax.xlane.f32.xlu0 %v2424
        %v2798 = vpop.xlane.xlu0 %2797
        %2799 = vmax.xlane.f32.xlu0 %v2429
        %v2800 = vpop.xlane.xlu0 %2799
        %v2801 = vsub.f32 %v2354, %v2770
        %v2802 = vsub.f32 %v2359, %v2772
        %v2803 = vsub.f32 %v2364, %v2774
        %v2804 = vsub.f32 %v2369, %v2776
        %v2805 = vsub.f32 %v2374, %v2778
        %v2806 = vsub.f32 %v2379, %v2780
        %v2807 = vsub.f32 %v2384, %v2782
        %v2808 = vsub.f32 %v2389, %v2784
        %v2809 = vsub.f32 %v2394, %v2786
        %v2810 = vsub.f32 %v2399, %v2788
        %v2811 = vsub.f32 %v2404, %v2790
        %v2812 = vsub.f32 %v2409, %v2792
        %v2813 = vsub.f32 %v2414, %v2794
        %v2814 = vsub.f32 %v2419, %v2796
        %v2815 = vsub.f32 %v2424, %v2798
        %v2816 = vsub.f32 %v2429, %v2800
        %v2817 = vmul.f32 %v2801, 1.442695
        %v2818 = vpow.pop %v2817
        %v2819 = vmul.f32 %v2802, 1.442695
        %v2820 = vpow.pop %v2819
        %v2821 = vmul.f32 %v2803, 1.442695
        %v2822 = vpow.pop %v2821
        %v2823 = vmul.f32 %v2804, 1.442695
        %v2824 = vpow.pop %v2823
        %v2825 = vmul.f32 %v2805, 1.442695
        %v2826 = vpow.pop %v2825
        %v2827 = vmul.f32 %v2806, 1.442695
        %v2828 = vpow.pop %v2827
        %v2829 = vmul.f32 %v2807, 1.442695
        %v2830 = vpow.pop %v2829
        %v2831 = vmul.f32 %v2808, 1.442695
        %v2832 = vpow.pop %v2831
        %v2833 = vmul.f32 %v2809, 1.442695
        %v2834 = vpow.pop %v2833
        %v2835 = vmul.f32 %v2810, 1.442695
        %v2836 = vpow.pop %v2835
        %v2837 = vmul.f32 %v2811, 1.442695
        %v2838 = vpow.pop %v2837
        %v2839 = vmul.f32 %v2812, 1.442695
        %v2840 = vpow.pop %v2839
        %v2841 = vmul.f32 %v2813, 1.442695
        %v2842 = vpow.pop %v2841
        %v2843 = vmul.f32 %v2814, 1.442695
        %v2844 = vpow.pop %v2843
        %v2845 = vmul.f32 %v2815, 1.442695
        %v2846 = vpow.pop %v2845
        %v2847 = vmul.f32 %v2816, 1.442695
        %v2848 = vpow.pop %v2847
        %2849 = vadd.xlane.f32.xlu0 %v2818
        %v2850 = vpop.xlane.xlu0 %2849
        %2851 = vadd.xlane.f32.xlu0 %v2820
        %v2852 = vpop.xlane.xlu0 %2851
        %2853 = vadd.xlane.f32.xlu0 %v2822
        %v2854 = vpop.xlane.xlu0 %2853
        %2855 = vadd.xlane.f32.xlu0 %v2824
        %v2856 = vpop.xlane.xlu0 %2855
        %2857 = vadd.xlane.f32.xlu0 %v2826
        %v2858 = vpop.xlane.xlu0 %2857
        %2859 = vadd.xlane.f32.xlu0 %v2828
        %v2860 = vpop.xlane.xlu0 %2859
        %2861 = vadd.xlane.f32.xlu0 %v2830
        %v2862 = vpop.xlane.xlu0 %2861
        %2863 = vadd.xlane.f32.xlu0 %v2832
        %v2864 = vpop.xlane.xlu0 %2863
        %2865 = vadd.xlane.f32.xlu0 %v2834
        %v2866 = vpop.xlane.xlu0 %2865
        %2867 = vadd.xlane.f32.xlu0 %v2836
        %v2868 = vpop.xlane.xlu0 %2867
        %2869 = vadd.xlane.f32.xlu0 %v2838
        %v2870 = vpop.xlane.xlu0 %2869
        %2871 = vadd.xlane.f32.xlu0 %v2840
        %v2872 = vpop.xlane.xlu0 %2871
        %2873 = vadd.xlane.f32.xlu0 %v2842
        %v2874 = vpop.xlane.xlu0 %2873
        %2875 = vadd.xlane.f32.xlu0 %v2844
        %v2876 = vpop.xlane.xlu0 %2875
        %2877 = vadd.xlane.f32.xlu0 %v2846
        %v2878 = vpop.xlane.xlu0 %2877
        %2879 = vadd.xlane.f32.xlu0 %v2848
        %v2880 = vpop.xlane.xlu0 %2879
        %v2881 = vrcp.pop %v2850
        %v2882 = vrcp.pop %v2852
        %v2883 = vrcp.pop %v2854
        %v2884 = vrcp.pop %v2856
        %v2885 = vrcp.pop %v2858
        %v2886 = vrcp.pop %v2860
        %v2887 = vrcp.pop %v2862
        %v2888 = vrcp.pop %v2864
        %v2889 = vrcp.pop %v2866
        %v2890 = vrcp.pop %v2868
        %v2891 = vrcp.pop %v2870
        %v2892 = vrcp.pop %v2872
        %v2893 = vrcp.pop %v2874
        %v2894 = vrcp.pop %v2876
        %v2895 = vrcp.pop %v2878
        %v2896 = vrcp.pop %v2880
        %v2897 = vmul.f32 %v2850, %v2881
        %v2898 = vmul.f32 %v2852, %v2882
        %v2899 = vmul.f32 %v2854, %v2883
        %v2900 = vmul.f32 %v2856, %v2884
        %v2901 = vmul.f32 %v2858, %v2885
        %v2902 = vmul.f32 %v2860, %v2886
        %v2903 = vmul.f32 %v2862, %v2887
        %v2904 = vmul.f32 %v2864, %v2888
        %v2905 = vmul.f32 %v2866, %v2889
        %v2906 = vmul.f32 %v2868, %v2890
        %v2907 = vmul.f32 %v2870, %v2891
        %v2908 = vmul.f32 %v2872, %v2892
        %v2909 = vmul.f32 %v2874, %v2893
        %v2910 = vmul.f32 %v2876, %v2894
        %v2911 = vmul.f32 %v2878, %v2895
        %v2912 = vmul.f32 %v2880, %v2896
        %v2913 = vsub.f32 2.0, %v2897
        %v2914 = vsub.f32 2.0, %v2898
        %v2915 = vsub.f32 2.0, %v2899
        %v2916 = vsub.f32 2.0, %v2900
        %v2917 = vsub.f32 2.0, %v2901
        %v2918 = vsub.f32 2.0, %v2902
        %v2919 = vsub.f32 2.0, %v2903
        %v2920 = vsub.f32 2.0, %v2904
        %v2921 = vsub.f32 2.0, %v2905
        %v2922 = vsub.f32 2.0, %v2906
        %v2923 = vsub.f32 2.0, %v2907
        %v2924 = vsub.f32 2.0, %v2908
        %v2925 = vsub.f32 2.0, %v2909
        %v2926 = vsub.f32 2.0, %v2910
        %v2927 = vsub.f32 2.0, %v2911
        %v2928 = vsub.f32 2.0, %v2912
        %v2929 = vmul.f32 %v2881, %v2913
        %v2930 = vmul.f32 %v2882, %v2914
        %v2931 = vmul.f32 %v2883, %v2915
        %v2932 = vmul.f32 %v2884, %v2916
        %v2933 = vmul.f32 %v2885, %v2917
        %v2934 = vmul.f32 %v2886, %v2918
        %v2935 = vmul.f32 %v2887, %v2919
        %v2936 = vmul.f32 %v2888, %v2920
        %v2937 = vmul.f32 %v2889, %v2921
        %v2938 = vmul.f32 %v2890, %v2922
        %v2939 = vmul.f32 %v2891, %v2923
        %v2940 = vmul.f32 %v2892, %v2924
        %v2941 = vmul.f32 %v2893, %v2925
        %v2942 = vmul.f32 %v2894, %v2926
        %v2943 = vmul.f32 %v2895, %v2927
        %v2944 = vmul.f32 %v2896, %v2928
        %v2945 = vmul.f32 %v2818, %v2929
        %v2946 = vmul.f32 %v2820, %v2930
        %v2947 = vmul.f32 %v2822, %v2931
        %v2948 = vmul.f32 %v2824, %v2932
        %v2949 = vmul.f32 %v2826, %v2933
        %v2950 = vmul.f32 %v2828, %v2934
        %v2951 = vmul.f32 %v2830, %v2935
        %v2952 = vmul.f32 %v2832, %v2936
        %v2953 = vmul.f32 %v2834, %v2937
        %v2954 = vmul.f32 %v2836, %v2938
        %v2955 = vmul.f32 %v2838, %v2939
        %v2956 = vmul.f32 %v2840, %v2940
        %v2957 = vmul.f32 %v2842, %v2941
        %v2958 = vmul.f32 %v2844, %v2942
        %v2959 = vmul.f32 %v2846, %v2943
        %v2960 = vmul.f32 %v2848, %v2944
        %2961 = vmatprep.subr.mxu0 0.0
        %2962 = vmatpush1.msra.mxu0 %v999
        %2963 = vmatprep.subr.mxu0 0.0
        %2964 = vmatpush1.msra.mxu0 %v1004
        %2965 = vmatprep.subr.mxu0 0.0
        %2966 = vmatpush1.msra.mxu0 %v1009
        %2967 = vmatprep.subr.mxu0 0.0
        %2968 = vmatpush1.msra.mxu0 %v1014
        %2969 = vmatprep.subr.mxu0 0.0
        %2970 = vmatpush1.msra.mxu0 %v1019
        %2971 = vmatprep.subr.mxu0 0.0
        %2972 = vmatpush1.msra.mxu0 %v1024
        %2973 = vmatprep.subr.mxu0 0.0
        %2974 = vmatpush1.msra.mxu0 %v1029
        %2975 = vmatprep.subr.mxu0 0.0
        %2976 = vmatpush1.msra.mxu0 %v1034
        %2977 = vmatprep.subr.mxu0 0.0
        %2978 = vmatpush1.msra.mxu0 %v1039
        %2979 = vmatprep.subr.mxu0 0.0
        %2980 = vmatpush1.msra.mxu0 %v1044
        %2981 = vmatprep.subr.mxu0 0.0
        %2982 = vmatpush1.msra.mxu0 %v1049
        %2983 = vmatprep.subr.mxu0 0.0
        %2984 = vmatpush1.msra.mxu0 %v1054
        %2985 = vmatprep.subr.mxu0 0.0
        %2986 = vmatpush1.msra.mxu0 %v1059
        %2987 = vmatprep.subr.mxu0 0.0
        %2988 = vmatpush1.msra.mxu0 %v1064
        %2989 = vmatprep.subr.mxu0 0.0
        %2990 = vmatpush1.msra.mxu0 %v1069
        %2991 = vmatprep.subr.mxu0 0.0
        %2992 = vmatpush1.msra.mxu0 %v1074
        %2993 = vmatprep.subr.mxu0 0.0
        %2994 = vmatpush1.msra.mxu0 0.0
        %2995 = vmatprep.subr.mxu0 0.0
        %2996 = vmatpush1.msra.mxu0 0.0
        %2997 = vmatprep.subr.mxu0 0.0
        %2998 = vmatpush1.msra.mxu0 0.0
        %2999 = vmatprep.subr.mxu0 0.0
        %3000 = vmatpush1.msra.mxu0 0.0
        %3001 = vmatprep.subr.mxu0 0.0
        %3002 = vmatpush1.msra.mxu0 0.0
        %3003 = vmatprep.subr.mxu0 0.0
        %3004 = vmatpush1.msra.mxu0 0.0
        %3005 = vmatprep.subr.mxu0 0.0
        %3006 = vmatpush1.msra.mxu0 0.0
        %3007 = vmatprep.subr.mxu0 0.0
        %3008 = vmatpush1.msra.mxu0 0.0
        %3009 = vmatprep.subr.mxu0 0.0
        %3010 = vmatpush1.msra.mxu0 0.0
        %3011 = vmatprep.subr.mxu0 0.0
        %3012 = vmatpush1.msra.mxu0 0.0
        %3013 = vmatprep.subr.mxu0 0.0
        %3014 = vmatpush1.msra.mxu0 0.0
        %3015 = vmatprep.subr.mxu0 0.0
        %3016 = vmatpush1.msra.mxu0 0.0
        %3017 = vmatprep.subr.mxu0 0.0
        %3018 = vmatpush1.msra.mxu0 0.0
        %3019 = vmatprep.subr.mxu0 0.0
        %3020 = vmatpush1.msra.mxu0 0.0
        %3021 = vmatprep.subr.mxu0 0.0
        %3022 = vmatpush1.msra.mxu0 0.0
        %3023 = vmatprep.subr.mxu0 0.0
        %3024 = vmatpush1.msra.mxu0 0.0
        %3025 = vmatprep.mubr.f32.mxu0 0.0
        %3026 = vmatmul.mubr.f32.gmra.mrb[0].mxu0 %v2945
        %v3027 = vpop.f32.mrb[0].mxu0
        %v3028 = vadd.f32 0.0, %v3027
        %v3029 = vpop.f32.mrb[0].mxu0
        %3030 = vmatprep.mubr.f32.mxu0 0.0
        %3031 = vmatmul.mubr.f32.gmra.mrb[0].mxu0 %v2946
        %v3032 = vpop.f32.mrb[0].mxu0
        %v3033 = vadd.f32 0.0, %v3032
        %v3034 = vpop.f32.mrb[0].mxu0
        %3035 = vmatprep.mubr.f32.mxu0 0.0
        %3036 = vmatmul.mubr.f32.gmra.mrb[0].mxu0 %v2947
        %v3037 = vpop.f32.mrb[0].mxu0
        %v3038 = vadd.f32 0.0, %v3037
        %v3039 = vpop.f32.mrb[0].mxu0
        %3040 = vmatprep.mubr.f32.mxu0 0.0
        %3041 = vmatmul.mubr.f32.gmra.mrb[0].mxu0 %v2948
        %v3042 = vpop.f32.mrb[0].mxu0
        %v3043 = vadd.f32 0.0, %v3042
        %v3044 = vpop.f32.mrb[0].mxu0
        %3045 = vmatprep.mubr.f32.mxu0 0.0
        %3046 = vmatmul.mubr.f32.gmra.mrb[0].mxu0 %v2949
        %v3047 = vpop.f32.mrb[0].mxu0
        %v3048 = vadd.f32 0.0, %v3047
        %v3049 = vpop.f32.mrb[0].mxu0
        %3050 = vmatprep.mubr.f32.mxu0 0.0
        %3051 = vmatmul.mubr.f32.gmra.mrb[0].mxu0 %v2950
        %v3052 = vpop.f32.mrb[0].mxu0
        %v3053 = vadd.f32 0.0, %v3052
        %v3054 = vpop.f32.mrb[0].mxu0
        %3055 = vmatprep.mubr.f32.mxu0 0.0
        %3056 = vmatmul.mubr.f32.gmra.mrb[0].mxu0 %v2951
        %v3057 = vpop.f32.mrb[0].mxu0
        %v3058 = vadd.f32 0.0, %v3057
        %v3059 = vpop.f32.mrb[0].mxu0
        %3060 = vmatprep.mubr.f32.mxu0 0.0
        %3061 = vmatmul.mubr.f32.gmra.mrb[0].mxu0 %v2952
        %v3062 = vpop.f32.mrb[0].mxu0
        %v3063 = vadd.f32 0.0, %v3062
        %v3064 = vpop.f32.mrb[0].mxu0
        %3065 = vmatprep.mubr.f32.mxu0 0.0
        %3066 = vmatmul.mubr.f32.gmra.mrb[0].mxu0 %v2953
        %v3067 = vpop.f32.mrb[0].mxu0
        %v3068 = vadd.f32 0.0, %v3067
        %v3069 = vpop.f32.mrb[0].mxu0
        %3070 = vmatprep.mubr.f32.mxu0 0.0
        %3071 = vmatmul.mubr.f32.gmra.mrb[0].mxu0 %v2954
        %v3072 = vpop.f32.mrb[0].mxu0
        %v3073 = vadd.f32 0.0, %v3072
        %v3074 = vpop.f32.mrb[0].mxu0
        %3075 = vmatprep.mubr.f32.mxu0 0.0
        %3076 = vmatmul.mubr.f32.gmra.mrb[0].mxu0 %v2955
        %v3077 = vpop.f32.mrb[0].mxu0
        %v3078 = vadd.f32 0.0, %v3077
        %v3079 = vpop.f32.mrb[0].mxu0
        %3080 = vmatprep.mubr.f32.mxu0 0.0
        %3081 = vmatmul.mubr.f32.gmra.mrb[0].mxu0 %v2956
        %v3082 = vpop.f32.mrb[0].mxu0
        %v3083 = vadd.f32 0.0, %v3082
        %v3084 = vpop.f32.mrb[0].mxu0
        %3085 = vmatprep.mubr.f32.mxu0 0.0
        %3086 = vmatmul.mubr.f32.gmra.mrb[0].mxu0 %v2957
        %v3087 = vpop.f32.mrb[0].mxu0
        %v3088 = vadd.f32 0.0, %v3087
        %v3089 = vpop.f32.mrb[0].mxu0
        %3090 = vmatprep.mubr.f32.mxu0 0.0
        %3091 = vmatmul.mubr.f32.gmra.mrb[0].mxu0 %v2958
        %v3092 = vpop.f32.mrb[0].mxu0
        %v3093 = vadd.f32 0.0, %v3092
        %v3094 = vpop.f32.mrb[0].mxu0
        %3095 = vmatprep.mubr.f32.mxu0 0.0
        %3096 = vmatmul.mubr.f32.gmra.mrb[0].mxu0 %v2959
        %v3097 = vpop.f32.mrb[0].mxu0
        %v3098 = vadd.f32 0.0, %v3097
        %v3099 = vpop.f32.mrb[0].mxu0
        %3100 = vmatprep.mubr.f32.mxu0 0.0
        %3101 = vmatmul.mubr.f32.gmra.mrb[0].mxu0 %v2960
        %v3102 = vpop.f32.mrb[0].mxu0
        %v3103 = vadd.f32 0.0, %v3102
        %v3104 = vpop.f32.mrb[0].mxu0
        %3105 = vdwg.mxu0
        %v3106 = vld [vmem:[%s9] sm:$0xff]
        %v3107 = vld [vmem:[%s9 + $0x8] sm:$0xff]
        %v3108 = vld [vmem:[%s9 + $0x10] sm:$0xff]
        %v3109 = vld [vmem:[%s9 + $0x18] sm:$0xff]
        %v3110 = vld [vmem:[%s10] sm:$0xff]
        %v3111 = vld [vmem:[%s10 + $0x8] sm:$0xff]
        %v3112 = vld [vmem:[%s10 + $0x10] sm:$0xff]
        %v3113 = vld [vmem:[%s10 + $0x18] sm:$0xff]
        %v3115 = vsel %vm1168, %v2691, 0
        %v3118 = vsel %vm1168, %v2696, 0
        %v3121 = vsel %vm1168, %v2701, 0
        %v3124 = vsel %vm1168, %v2706, 0
        %v3127 = vsel %vm1168, %v2711, 0
        %v3130 = vsel %vm1168, %v2716, 0
        %v3133 = vsel %vm1168, %v2721, 0
        %v3136 = vsel %vm1168, %v2726, 0
        %v3139 = vsel %vm1168, %v2731, 0
        %v3142 = vsel %vm1168, %v2736, 0
        %v3145 = vsel %vm1168, %v2741, 0
        %v3148 = vsel %vm1168, %v2746, 0
        %v3151 = vsel %vm1168, %v2751, 0
        %v3154 = vsel %vm1168, %v2756, 0
        %v3157 = vsel %vm1168, %v2761, 0
        %v3160 = vsel %vm1168, %v2766, 0
        %v3163 = vsel %vm1168, %v3028, 0
        %v3166 = vsel %vm1168, %v3033, 0
        %v3169 = vsel %vm1168, %v3038, 0
        %v3172 = vsel %vm1168, %v3043, 0
        %v3175 = vsel %vm1168, %v3048, 0
        %v3178 = vsel %vm1168, %v3053, 0
        %v3181 = vsel %vm1168, %v3058, 0
        %v3184 = vsel %vm1168, %v3063, 0
        %v3187 = vsel %vm1168, %v3068, 0
        %v3190 = vsel %vm1168, %v3073, 0
        %v3193 = vsel %vm1168, %v3078, 0
        %v3196 = vsel %vm1168, %v3083, 0
        %v3199 = vsel %vm1168, %v3088, 0
        %v3202 = vsel %vm1168, %v3093, 0
        %v3205 = vsel %vm1168, %v3098, 0
        %v3208 = vsel %vm1168, %v3103, 0
        %3210 = vmatprep.subr.mxu0 0.0
        %3211 = vmatpush1.msra.mxu0 %v3110
        %3212 = vmatprep.subr.mxu0 0.0
        %3213 = vmatpush1.msra.mxu0 %v3111
        %3214 = vmatprep.subr.mxu0 0.0
        %3215 = vmatpush1.msra.mxu0 %v3112
        %3216 = vmatprep.subr.mxu0 0.0
        %3217 = vmatpush1.msra.mxu0 %v3113
        %3218 = vmatprep.subr.mxu0 0.0
        %3219 = vmatpush1.msra.mxu0 0.0
        %3220 = vmatprep.subr.mxu0 0.0
        %3221 = vmatpush1.msra.mxu0 0.0
        %3222 = vmatprep.subr.mxu0 0.0
        %3223 = vmatpush1.msra.mxu0 0.0
        %3224 = vmatprep.subr.mxu0 0.0
        %3225 = vmatpush1.msra.mxu0 0.0
        %3226 = vmatprep.subr.mxu0 0.0
        %3227 = vmatpush1.msra.mxu0 0.0
        %3228 = vmatprep.subr.mxu0 0.0
        %3229 = vmatpush1.msra.mxu0 0.0
        %3230 = vmatprep.subr.mxu0 0.0
        %3231 = vmatpush1.msra.mxu0 0.0
        %3232 = vmatprep.subr.mxu0 0.0
        %3233 = vmatpush1.msra.mxu0 0.0
        %3234 = vmatprep.subr.mxu0 0.0
        %3235 = vmatpush1.msra.mxu0 0.0
        %3236 = vmatprep.subr.mxu0 0.0
        %3237 = vmatpush1.msra.mxu0 0.0
        %3238 = vmatprep.subr.mxu0 0.0
        %3239 = vmatpush1.msra.mxu0 0.0
        %3240 = vmatprep.subr.mxu0 0.0
        %3241 = vmatpush1.msra.mxu0 0.0
        %3242 = vmatprep.subr.mxu0 0.0
        %3243 = vmatpush1.msra.mxu0 0.0
        %3244 = vmatprep.subr.mxu0 0.0
        %3245 = vmatpush1.msra.mxu0 0.0
        %3246 = vmatprep.subr.mxu0 0.0
        %3247 = vmatpush1.msra.mxu0 0.0
        %3248 = vmatprep.subr.mxu0 0.0
        %3249 = vmatpush1.msra.mxu0 0.0
        %3250 = vmatprep.subr.mxu0 0.0
        %3251 = vmatpush1.msra.mxu0 0.0
        %3252 = vmatprep.subr.mxu0 0.0
        %3253 = vmatpush1.msra.mxu0 0.0
        %3254 = vmatprep.subr.mxu0 0.0
        %3255 = vmatpush1.msra.mxu0 0.0
        %3256 = vmatprep.subr.mxu0 0.0
        %3257 = vmatpush1.msra.mxu0 0.0
        %3258 = vmatprep.subr.mxu0 0.0
        %3259 = vmatpush1.msra.mxu0 0.0
        %3260 = vmatprep.subr.mxu0 0.0
        %3261 = vmatpush1.msra.mxu0 0.0
        %3262 = vmatprep.subr.mxu0 0.0
        %3263 = vmatpush1.msra.mxu0 0.0
        %3264 = vmatprep.subr.mxu0 0.0
        %3265 = vmatpush1.msra.mxu0 0.0
        %3266 = vmatprep.subr.mxu0 0.0
        %3267 = vmatpush1.msra.mxu0 0.0
        %3268 = vmatprep.subr.mxu0 0.0
        %3269 = vmatpush1.msra.mxu0 0.0
        %3270 = vmatprep.subr.mxu0 0.0
        %3271 = vmatpush1.msra.mxu0 0.0
        %3272 = vmatprep.subr.mxu0 0.0
        %3273 = vmatpush1.msra.mxu0 0.0
        %3274 = vmatprep.mubr.f32.mxu0 0.0
        %3275 = vmatmul.mubr.f32.gmra.mrb[0].mxu0 %v3115
        %v3276 = vpop.f32.mrb[0].mxu0
        %v3277 = vadd.f32 0.0, %v3276
        %v3278 = vpop.f32.mrb[0].mxu0
        %3279 = vmatprep.mubr.f32.mxu0 0.0
        %3280 = vmatmul.mubr.f32.gmra.mrb[0].mxu0 %v3118
        %v3281 = vpop.f32.mrb[0].mxu0
        %v3282 = vadd.f32 0.0, %v3281
        %v3283 = vpop.f32.mrb[0].mxu0
        %3284 = vmatprep.mubr.f32.mxu0 0.0
        %3285 = vmatmul.mubr.f32.gmra.mrb[0].mxu0 %v3121
        %v3286 = vpop.f32.mrb[0].mxu0
        %v3287 = vadd.f32 0.0, %v3286
        %v3288 = vpop.f32.mrb[0].mxu0
        %3289 = vmatprep.mubr.f32.mxu0 0.0
        %3290 = vmatmul.mubr.f32.gmra.mrb[0].mxu0 %v3124
        %v3291 = vpop.f32.mrb[0].mxu0
        %v3292 = vadd.f32 0.0, %v3291
        %v3293 = vpop.f32.mrb[0].mxu0
        %3294 = vmatprep.mubr.f32.mxu0 0.0
        %3295 = vmatmul.mubr.f32.gmra.mrb[0].mxu0 %v3127
        %v3296 = vpop.f32.mrb[0].mxu0
        %v3297 = vadd.f32 0.0, %v3296
        %v3298 = vpop.f32.mrb[0].mxu0
        %3299 = vmatprep.mubr.f32.mxu0 0.0
        %3300 = vmatmul.mubr.f32.gmra.mrb[0].mxu0 %v3130
        %v3301 = vpop.f32.mrb[0].mxu0
        %v3302 = vadd.f32 0.0, %v3301
        %v3303 = vpop.f32.mrb[0].mxu0
        %3304 = vmatprep.mubr.f32.mxu0 0.0
        %3305 = vmatmul.mubr.f32.gmra.mrb[0].mxu0 %v3133
        %v3306 = vpop.f32.mrb[0].mxu0
        %v3307 = vadd.f32 0.0, %v3306
        %v3308 = vpop.f32.mrb[0].mxu0
        %3309 = vmatprep.mubr.f32.mxu0 0.0
        %3310 = vmatmul.mubr.f32.gmra.mrb[0].mxu0 %v3136
        %v3311 = vpop.f32.mrb[0].mxu0
        %v3312 = vadd.f32 0.0, %v3311
        %v3313 = vpop.f32.mrb[0].mxu0
        %3314 = vmatprep.mubr.f32.mxu0 0.0
        %3315 = vmatmul.mubr.f32.gmra.mrb[0].mxu0 %v3139
        %v3316 = vpop.f32.mrb[0].mxu0
        %v3317 = vadd.f32 0.0, %v3316
        %v3318 = vpop.f32.mrb[0].mxu0
        %3319 = vmatprep.mubr.f32.mxu0 0.0
        %3320 = vmatmul.mubr.f32.gmra.mrb[0].mxu0 %v3142
        %v3321 = vpop.f32.mrb[0].mxu0
        %v3322 = vadd.f32 0.0, %v3321
        %v3323 = vpop.f32.mrb[0].mxu0
        %3324 = vmatprep.mubr.f32.mxu0 0.0
        %3325 = vmatmul.mubr.f32.gmra.mrb[0].mxu0 %v3145
        %v3326 = vpop.f32.mrb[0].mxu0
        %v3327 = vadd.f32 0.0, %v3326
        %v3328 = vpop.f32.mrb[0].mxu0
        %3329 = vmatprep.mubr.f32.mxu0 0.0
        %3330 = vmatmul.mubr.f32.gmra.mrb[0].mxu0 %v3148
        %v3331 = vpop.f32.mrb[0].mxu0
        %v3332 = vadd.f32 0.0, %v3331
        %v3333 = vpop.f32.mrb[0].mxu0
        %3334 = vmatprep.mubr.f32.mxu0 0.0
        %3335 = vmatmul.mubr.f32.gmra.mrb[0].mxu0 %v3151
        %v3336 = vpop.f32.mrb[0].mxu0
        %v3337 = vadd.f32 0.0, %v3336
        %v3338 = vpop.f32.mrb[0].mxu0
        %3339 = vmatprep.mubr.f32.mxu0 0.0
        %3340 = vmatmul.mubr.f32.gmra.mrb[0].mxu0 %v3154
        %v3341 = vpop.f32.mrb[0].mxu0
        %v3342 = vadd.f32 0.0, %v3341
        %v3343 = vpop.f32.mrb[0].mxu0
        %3344 = vmatprep.mubr.f32.mxu0 0.0
        %3345 = vmatmul.mubr.f32.gmra.mrb[0].mxu0 %v3157
        %v3346 = vpop.f32.mrb[0].mxu0
        %v3347 = vadd.f32 0.0, %v3346
        %v3348 = vpop.f32.mrb[0].mxu0
        %3349 = vmatprep.mubr.f32.mxu0 0.0
        %3350 = vmatmul.mubr.f32.gmra.mrb[0].mxu0 %v3160
        %v3351 = vpop.f32.mrb[0].mxu0
        %v3352 = vadd.f32 0.0, %v3351
        %v3353 = vpop.f32.mrb[0].mxu0
        %3354 = vmatprep.mubr.f32.mxu0 0.0
        %3355 = vmatmul.mubr.f32.gmra.mrb[0].mxu0 %v3163
        %v3356 = vpop.f32.mrb[0].mxu0
        %v3357 = vadd.f32 0.0, %v3356
        %v3358 = vpop.f32.mrb[0].mxu0
        %3359 = vmatprep.mubr.f32.mxu0 0.0
        %3360 = vmatmul.mubr.f32.gmra.mrb[0].mxu0 %v3166
        %v3361 = vpop.f32.mrb[0].mxu0
        %v3362 = vadd.f32 0.0, %v3361
        %v3363 = vpop.f32.mrb[0].mxu0
        %3364 = vmatprep.mubr.f32.mxu0 0.0
        %3365 = vmatmul.mubr.f32.gmra.mrb[0].mxu0 %v3169
        %v3366 = vpop.f32.mrb[0].mxu0
        %v3367 = vadd.f32 0.0, %v3366
        %v3368 = vpop.f32.mrb[0].mxu0
        %3369 = vmatprep.mubr.f32.mxu0 0.0
        %3370 = vmatmul.mubr.f32.gmra.mrb[0].mxu0 %v3172
        %v3371 = vpop.f32.mrb[0].mxu0
        %v3372 = vadd.f32 0.0, %v3371
        %v3373 = vpop.f32.mrb[0].mxu0
        %3374 = vmatprep.mubr.f32.mxu0 0.0
        %3375 = vmatmul.mubr.f32.gmra.mrb[0].mxu0 %v3175
        %v3376 = vpop.f32.mrb[0].mxu0
        %v3377 = vadd.f32 0.0, %v3376
        %v3378 = vpop.f32.mrb[0].mxu0
        %3379 = vmatprep.mubr.f32.mxu0 0.0
        %3380 = vmatmul.mubr.f32.gmra.mrb[0].mxu0 %v3178
        %v3381 = vpop.f32.mrb[0].mxu0
        %v3382 = vadd.f32 0.0, %v3381
        %v3383 = vpop.f32.mrb[0].mxu0
        %3384 = vmatprep.mubr.f32.mxu0 0.0
        %3385 = vmatmul.mubr.f32.gmra.mrb[0].mxu0 %v3181
        %v3386 = vpop.f32.mrb[0].mxu0
        %v3387 = vadd.f32 0.0, %v3386
        %v3388 = vpop.f32.mrb[0].mxu0
        %3389 = vmatprep.mubr.f32.mxu0 0.0
        %3390 = vmatmul.mubr.f32.gmra.mrb[0].mxu0 %v3184
        %v3391 = vpop.f32.mrb[0].mxu0
        %v3392 = vadd.f32 0.0, %v3391
        %v3393 = vpop.f32.mrb[0].mxu0
        %3394 = vmatprep.mubr.f32.mxu0 0.0
        %3395 = vmatmul.mubr.f32.gmra.mrb[0].mxu0 %v3187
        %v3396 = vpop.f32.mrb[0].mxu0
        %v3397 = vadd.f32 0.0, %v3396
        %v3398 = vpop.f32.mrb[0].mxu0
        %3399 = vmatprep.mubr.f32.mxu0 0.0
        %3400 = vmatmul.mubr.f32.gmra.mrb[0].mxu0 %v3190
        %v3401 = vpop.f32.mrb[0].mxu0
        %v3402 = vadd.f32 0.0, %v3401
        %v3403 = vpop.f32.mrb[0].mxu0
        %3404 = vmatprep.mubr.f32.mxu0 0.0
        %3405 = vmatmul.mubr.f32.gmra.mrb[0].mxu0 %v3193
        %v3406 = vpop.f32.mrb[0].mxu0
        %v3407 = vadd.f32 0.0, %v3406
        %v3408 = vpop.f32.mrb[0].mxu0
        %3409 = vmatprep.mubr.f32.mxu0 0.0
        %3410 = vmatmul.mubr.f32.gmra.mrb[0].mxu0 %v3196
        %v3411 = vpop.f32.mrb[0].mxu0
        %v3412 = vadd.f32 0.0, %v3411
        %v3413 = vpop.f32.mrb[0].mxu0
        %3414 = vmatprep.mubr.f32.mxu0 0.0
        %3415 = vmatmul.mubr.f32.gmra.mrb[0].mxu0 %v3199
        %v3416 = vpop.f32.mrb[0].mxu0
        %v3417 = vadd.f32 0.0, %v3416
        %v3418 = vpop.f32.mrb[0].mxu0
        %3419 = vmatprep.mubr.f32.mxu0 0.0
        %3420 = vmatmul.mubr.f32.gmra.mrb[0].mxu0 %v3202
        %v3421 = vpop.f32.mrb[0].mxu0
        %v3422 = vadd.f32 0.0, %v3421
        %v3423 = vpop.f32.mrb[0].mxu0
        %3424 = vmatprep.mubr.f32.mxu0 0.0
        %3425 = vmatmul.mubr.f32.gmra.mrb[0].mxu0 %v3205
        %v3426 = vpop.f32.mrb[0].mxu0
        %v3427 = vadd.f32 0.0, %v3426
        %v3428 = vpop.f32.mrb[0].mxu0
        %3429 = vmatprep.mubr.f32.mxu0 0.0
        %3430 = vmatmul.mubr.f32.gmra.mrb[0].mxu0 %v3208
        %v3431 = vpop.f32.mrb[0].mxu0
        %v3432 = vadd.f32 0.0, %v3431
        %v3433 = vpop.f32.mrb[0].mxu0
        %3434 = vdwg.mxu0
        %3435 = vmatprep.subr.mxu0 0.0
        %3436 = vmatpush1.msra.mxu0 %v3106
        %3437 = vmatprep.subr.mxu0 0.0
        %3438 = vmatpush1.msra.mxu0 %v3107
        %3439 = vmatprep.subr.mxu0 0.0
        %3440 = vmatpush1.msra.mxu0 %v3108
        %3441 = vmatprep.subr.mxu0 0.0
        %3442 = vmatpush1.msra.mxu0 %v3109
        %3443 = vmatprep.subr.mxu0 0.0
        %3444 = vmatpush1.msra.mxu0 0.0
        %3445 = vmatprep.subr.mxu0 0.0
        %3446 = vmatpush1.msra.mxu0 0.0
        %3447 = vmatprep.subr.mxu0 0.0
        %3448 = vmatpush1.msra.mxu0 0.0
        %3449 = vmatprep.subr.mxu0 0.0
        %3450 = vmatpush1.msra.mxu0 0.0
        %3451 = vmatprep.subr.mxu0 0.0
        %3452 = vmatpush1.msra.mxu0 0.0
        %3453 = vmatprep.subr.mxu0 0.0
        %3454 = vmatpush1.msra.mxu0 0.0
        %3455 = vmatprep.subr.mxu0 0.0
        %3456 = vmatpush1.msra.mxu0 0.0
        %3457 = vmatprep.subr.mxu0 0.0
        %3458 = vmatpush1.msra.mxu0 0.0
        %3459 = vmatprep.subr.mxu0 0.0
        %3460 = vmatpush1.msra.mxu0 0.0
        %3461 = vmatprep.subr.mxu0 0.0
        %3462 = vmatpush1.msra.mxu0 0.0
        %3463 = vmatprep.subr.mxu0 0.0
        %3464 = vmatpush1.msra.mxu0 0.0
        %3465 = vmatprep.subr.mxu0 0.0
        %3466 = vmatpush1.msra.mxu0 0.0
        %3467 = vmatprep.subr.mxu0 0.0
        %3468 = vmatpush1.msra.mxu0 0.0
        %3469 = vmatprep.subr.mxu0 0.0
        %3470 = vmatpush1.msra.mxu0 0.0
        %3471 = vmatprep.subr.mxu0 0.0
        %3472 = vmatpush1.msra.mxu0 0.0
        %3473 = vmatprep.subr.mxu0 0.0
        %3474 = vmatpush1.msra.mxu0 0.0
        %3475 = vmatprep.subr.mxu0 0.0
        %3476 = vmatpush1.msra.mxu0 0.0
        %3477 = vmatprep.subr.mxu0 0.0
        %3478 = vmatpush1.msra.mxu0 0.0
        %3479 = vmatprep.subr.mxu0 0.0
        %3480 = vmatpush1.msra.mxu0 0.0
        %3481 = vmatprep.subr.mxu0 0.0
        %3482 = vmatpush1.msra.mxu0 0.0
        %3483 = vmatprep.subr.mxu0 0.0
        %3484 = vmatpush1.msra.mxu0 0.0
        %3485 = vmatprep.subr.mxu0 0.0
        %3486 = vmatpush1.msra.mxu0 0.0
        %3487 = vmatprep.subr.mxu0 0.0
        %3488 = vmatpush1.msra.mxu0 0.0
        %3489 = vmatprep.subr.mxu0 0.0
        %3490 = vmatpush1.msra.mxu0 0.0
        %3491 = vmatprep.subr.mxu0 0.0
        %3492 = vmatpush1.msra.mxu0 0.0
        %3493 = vmatprep.subr.mxu0 0.0
        %3494 = vmatpush1.msra.mxu0 0.0
        %3495 = vmatprep.subr.mxu0 0.0
        %3496 = vmatpush1.msra.mxu0 0.0
        %3497 = vmatprep.subr.mxu0 0.0
        %3498 = vmatpush1.msra.mxu0 0.0
        %3499 = vmatprep.mubr.f32.mxu0 0.0
        %3500 = vmatmul.mubr.f32.gmra.mrb[0].mxu0 %v1170
        %v3501 = vpop.f32.mrb[0].mxu0
        %v3502 = vadd.f32 %v3277, %v3501
        %v3503 = vpop.f32.mrb[0].mxu0
        %3504 = vmatprep.mubr.f32.mxu0 0.0
        %3505 = vmatmul.mubr.f32.gmra.mrb[0].mxu0 %v1173
        %v3506 = vpop.f32.mrb[0].mxu0
        %v3507 = vadd.f32 %v3282, %v3506
        %v3508 = vpop.f32.mrb[0].mxu0
        %3509 = vmatprep.mubr.f32.mxu0 0.0
        %3510 = vmatmul.mubr.f32.gmra.mrb[0].mxu0 %v1176
        %v3511 = vpop.f32.mrb[0].mxu0
        %v3512 = vadd.f32 %v3287, %v3511
        %v3513 = vpop.f32.mrb[0].mxu0
        %3514 = vmatprep.mubr.f32.mxu0 0.0
        %3515 = vmatmul.mubr.f32.gmra.mrb[0].mxu0 %v1179
        %v3516 = vpop.f32.mrb[0].mxu0
        %v3517 = vadd.f32 %v3292, %v3516
        %v3518 = vpop.f32.mrb[0].mxu0
        %3519 = vmatprep.mubr.f32.mxu0 0.0
        %3520 = vmatmul.mubr.f32.gmra.mrb[0].mxu0 %v1182
        %v3521 = vpop.f32.mrb[0].mxu0
        %v3522 = vadd.f32 %v3297, %v3521
        %v3523 = vpop.f32.mrb[0].mxu0
        %3524 = vmatprep.mubr.f32.mxu0 0.0
        %3525 = vmatmul.mubr.f32.gmra.mrb[0].mxu0 %v1185
        %v3526 = vpop.f32.mrb[0].mxu0
        %v3527 = vadd.f32 %v3302, %v3526
        %v3528 = vpop.f32.mrb[0].mxu0
        %3529 = vmatprep.mubr.f32.mxu0 0.0
        %3530 = vmatmul.mubr.f32.gmra.mrb[0].mxu0 %v1188
        %v3531 = vpop.f32.mrb[0].mxu0
        %v3532 = vadd.f32 %v3307, %v3531
        %v3533 = vpop.f32.mrb[0].mxu0
        %3534 = vmatprep.mubr.f32.mxu0 0.0
        %3535 = vmatmul.mubr.f32.gmra.mrb[0].mxu0 %v1191
        %v3536 = vpop.f32.mrb[0].mxu0
        %v3537 = vadd.f32 %v3312, %v3536
        %v3538 = vpop.f32.mrb[0].mxu0
        %3539 = vmatprep.mubr.f32.mxu0 0.0
        %3540 = vmatmul.mubr.f32.gmra.mrb[0].mxu0 %v1194
        %v3541 = vpop.f32.mrb[0].mxu0
        %v3542 = vadd.f32 %v3317, %v3541
        %v3543 = vpop.f32.mrb[0].mxu0
        %3544 = vmatprep.mubr.f32.mxu0 0.0
        %3545 = vmatmul.mubr.f32.gmra.mrb[0].mxu0 %v1197
        %v3546 = vpop.f32.mrb[0].mxu0
        %v3547 = vadd.f32 %v3322, %v3546
        %v3548 = vpop.f32.mrb[0].mxu0
        %3549 = vmatprep.mubr.f32.mxu0 0.0
        %3550 = vmatmul.mubr.f32.gmra.mrb[0].mxu0 %v1200
        %v3551 = vpop.f32.mrb[0].mxu0
        %v3552 = vadd.f32 %v3327, %v3551
        %v3553 = vpop.f32.mrb[0].mxu0
        %3554 = vmatprep.mubr.f32.mxu0 0.0
        %3555 = vmatmul.mubr.f32.gmra.mrb[0].mxu0 %v1203
        %v3556 = vpop.f32.mrb[0].mxu0
        %v3557 = vadd.f32 %v3332, %v3556
        %v3558 = vpop.f32.mrb[0].mxu0
        %3559 = vmatprep.mubr.f32.mxu0 0.0
        %3560 = vmatmul.mubr.f32.gmra.mrb[0].mxu0 %v1206
        %v3561 = vpop.f32.mrb[0].mxu0
        %v3562 = vadd.f32 %v3337, %v3561
        %v3563 = vpop.f32.mrb[0].mxu0
        %3564 = vmatprep.mubr.f32.mxu0 0.0
        %3565 = vmatmul.mubr.f32.gmra.mrb[0].mxu0 %v1209
        %v3566 = vpop.f32.mrb[0].mxu0
        %v3567 = vadd.f32 %v3342, %v3566
        %v3568 = vpop.f32.mrb[0].mxu0
        %3569 = vmatprep.mubr.f32.mxu0 0.0
        %3570 = vmatmul.mubr.f32.gmra.mrb[0].mxu0 %v1212
        %v3571 = vpop.f32.mrb[0].mxu0
        %v3572 = vadd.f32 %v3347, %v3571
        %v3573 = vpop.f32.mrb[0].mxu0
        %3574 = vmatprep.mubr.f32.mxu0 0.0
        %3575 = vmatmul.mubr.f32.gmra.mrb[0].mxu0 %v1215
        %v3576 = vpop.f32.mrb[0].mxu0
        %v3577 = vadd.f32 %v3352, %v3576
        %v3578 = vpop.f32.mrb[0].mxu0
        %3579 = vmatprep.mubr.f32.mxu0 0.0
        %3580 = vmatmul.mubr.f32.gmra.mrb[0].mxu0 %v1218
        %v3581 = vpop.f32.mrb[0].mxu0
        %v3582 = vadd.f32 %v3357, %v3581
        %v3583 = vpop.f32.mrb[0].mxu0
        %3584 = vmatprep.mubr.f32.mxu0 0.0
        %3585 = vmatmul.mubr.f32.gmra.mrb[0].mxu0 %v1221
        %v3586 = vpop.f32.mrb[0].mxu0
        %v3587 = vadd.f32 %v3362, %v3586
        %v3588 = vpop.f32.mrb[0].mxu0
        %3589 = vmatprep.mubr.f32.mxu0 0.0
        %3590 = vmatmul.mubr.f32.gmra.mrb[0].mxu0 %v1224
        %v3591 = vpop.f32.mrb[0].mxu0
        %v3592 = vadd.f32 %v3367, %v3591
        %v3593 = vpop.f32.mrb[0].mxu0
        %3594 = vmatprep.mubr.f32.mxu0 0.0
        %3595 = vmatmul.mubr.f32.gmra.mrb[0].mxu0 %v1227
        %v3596 = vpop.f32.mrb[0].mxu0
        %v3597 = vadd.f32 %v3372, %v3596
        %v3598 = vpop.f32.mrb[0].mxu0
        %3599 = vmatprep.mubr.f32.mxu0 0.0
        %3600 = vmatmul.mubr.f32.gmra.mrb[0].mxu0 %v1230
        %v3601 = vpop.f32.mrb[0].mxu0
        %v3602 = vadd.f32 %v3377, %v3601
        %v3603 = vpop.f32.mrb[0].mxu0
        %3604 = vmatprep.mubr.f32.mxu0 0.0
        %3605 = vmatmul.mubr.f32.gmra.mrb[0].mxu0 %v1233
        %v3606 = vpop.f32.mrb[0].mxu0
        %v3607 = vadd.f32 %v3382, %v3606
        %v3608 = vpop.f32.mrb[0].mxu0
        %3609 = vmatprep.mubr.f32.mxu0 0.0
        %3610 = vmatmul.mubr.f32.gmra.mrb[0].mxu0 %v1236
        %v3611 = vpop.f32.mrb[0].mxu0
        %v3612 = vadd.f32 %v3387, %v3611
        %v3613 = vpop.f32.mrb[0].mxu0
        %3614 = vmatprep.mubr.f32.mxu0 0.0
        %3615 = vmatmul.mubr.f32.gmra.mrb[0].mxu0 %v1239
        %v3616 = vpop.f32.mrb[0].mxu0
        %v3617 = vadd.f32 %v3392, %v3616
        %v3618 = vpop.f32.mrb[0].mxu0
        %3619 = vmatprep.mubr.f32.mxu0 0.0
        %3620 = vmatmul.mubr.f32.gmra.mrb[0].mxu0 %v1242
        %v3621 = vpop.f32.mrb[0].mxu0
        %v3622 = vadd.f32 %v3397, %v3621
        %v3623 = vpop.f32.mrb[0].mxu0
        %3624 = vmatprep.mubr.f32.mxu0 0.0
        %3625 = vmatmul.mubr.f32.gmra.mrb[0].mxu0 %v1245
        %v3626 = vpop.f32.mrb[0].mxu0
        %v3627 = vadd.f32 %v3402, %v3626
        %v3628 = vpop.f32.mrb[0].mxu0
        %3629 = vmatprep.mubr.f32.mxu0 0.0
        %3630 = vmatmul.mubr.f32.gmra.mrb[0].mxu0 %v1248
        %v3631 = vpop.f32.mrb[0].mxu0
        %v3632 = vadd.f32 %v3407, %v3631
        %v3633 = vpop.f32.mrb[0].mxu0
        %3634 = vmatprep.mubr.f32.mxu0 0.0
        %3635 = vmatmul.mubr.f32.gmra.mrb[0].mxu0 %v1251
        %v3636 = vpop.f32.mrb[0].mxu0
        %v3637 = vadd.f32 %v3412, %v3636
        %v3638 = vpop.f32.mrb[0].mxu0
        %3639 = vmatprep.mubr.f32.mxu0 0.0
        %3640 = vmatmul.mubr.f32.gmra.mrb[0].mxu0 %v1254
        %v3641 = vpop.f32.mrb[0].mxu0
        %v3642 = vadd.f32 %v3417, %v3641
        %v3643 = vpop.f32.mrb[0].mxu0
        %3644 = vmatprep.mubr.f32.mxu0 0.0
        %3645 = vmatmul.mubr.f32.gmra.mrb[0].mxu0 %v1257
        %v3646 = vpop.f32.mrb[0].mxu0
        %v3647 = vadd.f32 %v3422, %v3646
        %v3648 = vpop.f32.mrb[0].mxu0
        %3649 = vmatprep.mubr.f32.mxu0 0.0
        %3650 = vmatmul.mubr.f32.gmra.mrb[0].mxu0 %v1260
        %v3651 = vpop.f32.mrb[0].mxu0
        %v3652 = vadd.f32 %v3427, %v3651
        %v3653 = vpop.f32.mrb[0].mxu0
        %3654 = vmatprep.mubr.f32.mxu0 0.0
        %3655 = vmatmul.mubr.f32.gmra.mrb[0].mxu0 %v1263
        %v3656 = vpop.f32.mrb[0].mxu0
        %v3657 = vadd.f32 %v3432, %v3656
        %v3658 = vpop.f32.mrb[0].mxu0
        %3659 = vdwg.mxu0
        %v3660 = vld [vmem:[%s11] sm:$0x1]
        %v3662 = vlaneseq
        %v3663 = vshrl.u32 %v3662, 7
        %v3664 = vsub.s32 0, %v3663
        %v3665 = vrot.slane %v3660, %v3664
        %v3667 = vadd.f32 %v3502, %v3665
        %v3668 = vadd.f32 %v3507, %v3665
        %v3669 = vadd.f32 %v3512, %v3665
        %v3670 = vadd.f32 %v3517, %v3665
        %v3671 = vadd.f32 %v3522, %v3665
        %v3672 = vadd.f32 %v3527, %v3665
        %v3673 = vadd.f32 %v3532, %v3665
        %v3674 = vadd.f32 %v3537, %v3665
        %v3675 = vadd.f32 %v3542, %v3665
        %v3676 = vadd.f32 %v3547, %v3665
        %v3677 = vadd.f32 %v3552, %v3665
        %v3678 = vadd.f32 %v3557, %v3665
        %v3679 = vadd.f32 %v3562, %v3665
        %v3680 = vadd.f32 %v3567, %v3665
        %v3681 = vadd.f32 %v3572, %v3665
        %v3682 = vadd.f32 %v3577, %v3665
        %v3683 = vadd.f32 %v3582, %v3665
        %v3684 = vadd.f32 %v3587, %v3665
        %v3685 = vadd.f32 %v3592, %v3665
        %v3686 = vadd.f32 %v3597, %v3665
        %v3687 = vadd.f32 %v3602, %v3665
        %v3688 = vadd.f32 %v3607, %v3665
        %v3689 = vadd.f32 %v3612, %v3665
        %v3690 = vadd.f32 %v3617, %v3665
        %v3691 = vadd.f32 %v3622, %v3665
        %v3692 = vadd.f32 %v3627, %v3665
        %v3693 = vadd.f32 %v3632, %v3665
        %v3694 = vadd.f32 %v3637, %v3665
        %v3695 = vadd.f32 %v3642, %v3665
        %v3696 = vadd.f32 %v3647, %v3665
        %v3697 = vadd.f32 %v3652, %v3665
        %v3698 = vadd.f32 %v3657, %v3665
        %vm3699 = vcmp.gt.f32.partialorder %v3667, 0.0
        %vm3700 = vcmp.gt.f32.partialorder %v3668, 0.0
        %vm3701 = vcmp.gt.f32.partialorder %v3669, 0.0
        %vm3702 = vcmp.gt.f32.partialorder %v3670, 0.0
        %vm3703 = vcmp.gt.f32.partialorder %v3671, 0.0
        %vm3704 = vcmp.gt.f32.partialorder %v3672, 0.0
        %vm3705 = vcmp.gt.f32.partialorder %v3673, 0.0
        %vm3706 = vcmp.gt.f32.partialorder %v3674, 0.0
        %vm3707 = vcmp.gt.f32.partialorder %v3675, 0.0
        %vm3708 = vcmp.gt.f32.partialorder %v3676, 0.0
        %vm3709 = vcmp.gt.f32.partialorder %v3677, 0.0
        %vm3710 = vcmp.gt.f32.partialorder %v3678, 0.0
        %vm3711 = vcmp.gt.f32.partialorder %v3679, 0.0
        %vm3712 = vcmp.gt.f32.partialorder %v3680, 0.0
        %vm3713 = vcmp.gt.f32.partialorder %v3681, 0.0
        %vm3714 = vcmp.gt.f32.partialorder %v3682, 0.0
        %vm3715 = vcmp.gt.f32.partialorder %v3683, 0.0
        %vm3716 = vcmp.gt.f32.partialorder %v3684, 0.0
        %vm3717 = vcmp.gt.f32.partialorder %v3685, 0.0
        %vm3718 = vcmp.gt.f32.partialorder %v3686, 0.0
        %vm3719 = vcmp.gt.f32.partialorder %v3687, 0.0
        %vm3720 = vcmp.gt.f32.partialorder %v3688, 0.0
        %vm3721 = vcmp.gt.f32.partialorder %v3689, 0.0
        %vm3722 = vcmp.gt.f32.partialorder %v3690, 0.0
        %vm3723 = vcmp.gt.f32.partialorder %v3691, 0.0
        %vm3724 = vcmp.gt.f32.partialorder %v3692, 0.0
        %vm3725 = vcmp.gt.f32.partialorder %v3693, 0.0
        %vm3726 = vcmp.gt.f32.partialorder %v3694, 0.0
        %vm3727 = vcmp.gt.f32.partialorder %v3695, 0.0
        %vm3728 = vcmp.gt.f32.partialorder %v3696, 0.0
        %vm3729 = vcmp.gt.f32.partialorder %v3697, 0.0
        %vm3730 = vcmp.gt.f32.partialorder %v3698, 0.0
        %v3731 = vmul.f32 %v3667, 0.01
        %v3732 = vmul.f32 %v3668, 0.01
        %v3733 = vmul.f32 %v3669, 0.01
        %v3734 = vmul.f32 %v3670, 0.01
        %v3735 = vmul.f32 %v3671, 0.01
        %v3736 = vmul.f32 %v3672, 0.01
        %v3737 = vmul.f32 %v3673, 0.01
        %v3738 = vmul.f32 %v3674, 0.01
        %v3739 = vmul.f32 %v3675, 0.01
        %v3740 = vmul.f32 %v3676, 0.01
        %v3741 = vmul.f32 %v3677, 0.01
        %v3742 = vmul.f32 %v3678, 0.01
        %v3743 = vmul.f32 %v3679, 0.01
        %v3744 = vmul.f32 %v3680, 0.01
        %v3745 = vmul.f32 %v3681, 0.01
        %v3746 = vmul.f32 %v3682, 0.01
        %v3747 = vmul.f32 %v3683, 0.01
        %v3748 = vmul.f32 %v3684, 0.01
        %v3749 = vmul.f32 %v3685, 0.01
        %v3750 = vmul.f32 %v3686, 0.01
        %v3751 = vmul.f32 %v3687, 0.01
        %v3752 = vmul.f32 %v3688, 0.01
        %v3753 = vmul.f32 %v3689, 0.01
        %v3754 = vmul.f32 %v3690, 0.01
        %v3755 = vmul.f32 %v3691, 0.01
        %v3756 = vmul.f32 %v3692, 0.01
        %v3757 = vmul.f32 %v3693, 0.01
        %v3758 = vmul.f32 %v3694, 0.01
        %v3759 = vmul.f32 %v3695, 0.01
        %v3760 = vmul.f32 %v3696, 0.01
        %v3761 = vmul.f32 %v3697, 0.01
        %v3762 = vmul.f32 %v3698, 0.01
        %v3763 = vsel %vm3699, %v3667, %v3731
        %v3764 = vsel %vm3700, %v3668, %v3732
        %v3765 = vsel %vm3701, %v3669, %v3733
        %v3766 = vsel %vm3702, %v3670, %v3734
        %v3767 = vsel %vm3703, %v3671, %v3735
        %v3768 = vsel %vm3704, %v3672, %v3736
        %v3769 = vsel %vm3705, %v3673, %v3737
        %v3770 = vsel %vm3706, %v3674, %v3738
        %v3771 = vsel %vm3707, %v3675, %v3739
        %v3772 = vsel %vm3708, %v3676, %v3740
        %v3773 = vsel %vm3709, %v3677, %v3741
        %v3774 = vsel %vm3710, %v3678, %v3742
        %v3775 = vsel %vm3711, %v3679, %v3743
        %v3776 = vsel %vm3712, %v3680, %v3744
        %v3777 = vsel %vm3713, %v3681, %v3745
        %v3778 = vsel %vm3714, %v3682, %v3746
        %v3779 = vsel %vm3715, %v3683, %v3747
        %v3780 = vsel %vm3716, %v3684, %v3748
        %v3781 = vsel %vm3717, %v3685, %v3749
        %v3782 = vsel %vm3718, %v3686, %v3750
        %v3783 = vsel %vm3719, %v3687, %v3751
        %v3784 = vsel %vm3720, %v3688, %v3752
        %v3785 = vsel %vm3721, %v3689, %v3753
        %v3786 = vsel %vm3722, %v3690, %v3754
        %v3787 = vsel %vm3723, %v3691, %v3755
        %v3788 = vsel %vm3724, %v3692, %v3756
        %v3789 = vsel %vm3725, %v3693, %v3757
        %v3790 = vsel %vm3726, %v3694, %v3758
        %v3791 = vsel %vm3727, %v3695, %v3759
        %v3792 = vsel %vm3728, %v3696, %v3760
        %v3793 = vsel %vm3729, %v3697, %v3761
        %v3794 = vsel %vm3730, %v3698, %v3762
        %v3795 = vld [vmem:[%s12] sm:$0xff]
        %v3796 = vld [vmem:[%s12 + $0x8] sm:$0xff]
        %v3797 = vld [vmem:[%s12 + $0x10] sm:$0xff]
        %v3798 = vld [vmem:[%s12 + $0x18] sm:$0xff]
        %v3799 = vld [vmem:[%s13] sm:$0x1]
        %v3801 = vlaneseq
        %v3802 = vshrl.u32 %v3801, 7
        %v3803 = vsub.s32 0, %v3802
        %v3804 = vrot.slane %v3799, %v3803
        %v3807 = vsel %vm1168, %v3763, 0
        %v3810 = vsel %vm1168, %v3764, 0
        %v3813 = vsel %vm1168, %v3765, 0
        %v3816 = vsel %vm1168, %v3766, 0
        %v3819 = vsel %vm1168, %v3767, 0
        %v3822 = vsel %vm1168, %v3768, 0
        %v3825 = vsel %vm1168, %v3769, 0
        %v3828 = vsel %vm1168, %v3770, 0
        %v3831 = vsel %vm1168, %v3771, 0
        %v3834 = vsel %vm1168, %v3772, 0
        %v3837 = vsel %vm1168, %v3773, 0
        %v3840 = vsel %vm1168, %v3774, 0
        %v3843 = vsel %vm1168, %v3775, 0
        %v3846 = vsel %vm1168, %v3776, 0
        %v3849 = vsel %vm1168, %v3777, 0
        %v3852 = vsel %vm1168, %v3778, 0
        %v3855 = vsel %vm1168, %v3779, 0
        %v3858 = vsel %vm1168, %v3780, 0
        %v3861 = vsel %vm1168, %v3781, 0
        %v3864 = vsel %vm1168, %v3782, 0
        %v3867 = vsel %vm1168, %v3783, 0
        %v3870 = vsel %vm1168, %v3784, 0
        %v3873 = vsel %vm1168, %v3785, 0
        %v3876 = vsel %vm1168, %v3786, 0
        %v3879 = vsel %vm1168, %v3787, 0
        %v3882 = vsel %vm1168, %v3788, 0
        %v3885 = vsel %vm1168, %v3789, 0
        %v3888 = vsel %vm1168, %v3790, 0
        %v3891 = vsel %vm1168, %v3791, 0
        %v3894 = vsel %vm1168, %v3792, 0
        %v3897 = vsel %vm1168, %v3793, 0
        %v3900 = vsel %vm1168, %v3794, 0
        %3902 = vmatprep.subr.mxu0 0.0
        %3903 = vmatpush1.msra.mxu0 %v3795
        %3904 = vmatprep.subr.mxu0 0.0
        %3905 = vmatpush1.msra.mxu0 %v3796
        %3906 = vmatprep.subr.mxu0 0.0
        %3907 = vmatpush1.msra.mxu0 %v3797
        %3908 = vmatprep.subr.mxu0 0.0
        %3909 = vmatpush1.msra.mxu0 %v3798
        %3910 = vmatprep.subr.mxu0 0.0
        %3911 = vmatpush1.msra.mxu0 0.0
        %3912 = vmatprep.subr.mxu0 0.0
        %3913 = vmatpush1.msra.mxu0 0.0
        %3914 = vmatprep.subr.mxu0 0.0
        %3915 = vmatpush1.msra.mxu0 0.0
        %3916 = vmatprep.subr.mxu0 0.0
        %3917 = vmatpush1.msra.mxu0 0.0
        %3918 = vmatprep.subr.mxu0 0.0
        %3919 = vmatpush1.msra.mxu0 0.0
        %3920 = vmatprep.subr.mxu0 0.0
        %3921 = vmatpush1.msra.mxu0 0.0
        %3922 = vmatprep.subr.mxu0 0.0
        %3923 = vmatpush1.msra.mxu0 0.0
        %3924 = vmatprep.subr.mxu0 0.0
        %3925 = vmatpush1.msra.mxu0 0.0
        %3926 = vmatprep.subr.mxu0 0.0
        %3927 = vmatpush1.msra.mxu0 0.0
        %3928 = vmatprep.subr.mxu0 0.0
        %3929 = vmatpush1.msra.mxu0 0.0
        %3930 = vmatprep.subr.mxu0 0.0
        %3931 = vmatpush1.msra.mxu0 0.0
        %3932 = vmatprep.subr.mxu0 0.0
        %3933 = vmatpush1.msra.mxu0 0.0
        %3934 = vmatprep.subr.mxu0 0.0
        %3935 = vmatpush1.msra.mxu0 0.0
        %3936 = vmatprep.subr.mxu0 0.0
        %3937 = vmatpush1.msra.mxu0 0.0
        %3938 = vmatprep.subr.mxu0 0.0
        %3939 = vmatpush1.msra.mxu0 0.0
        %3940 = vmatprep.subr.mxu0 0.0
        %3941 = vmatpush1.msra.mxu0 0.0
        %3942 = vmatprep.subr.mxu0 0.0
        %3943 = vmatpush1.msra.mxu0 0.0
        %3944 = vmatprep.subr.mxu0 0.0
        %3945 = vmatpush1.msra.mxu0 0.0
        %3946 = vmatprep.subr.mxu0 0.0
        %3947 = vmatpush1.msra.mxu0 0.0
        %3948 = vmatprep.subr.mxu0 0.0
        %3949 = vmatpush1.msra.mxu0 0.0
        %3950 = vmatprep.subr.mxu0 0.0
        %3951 = vmatpush1.msra.mxu0 0.0
        %3952 = vmatprep.subr.mxu0 0.0
        %3953 = vmatpush1.msra.mxu0 0.0
        %3954 = vmatprep.subr.mxu0 0.0
        %3955 = vmatpush1.msra.mxu0 0.0
        %3956 = vmatprep.subr.mxu0 0.0
        %3957 = vmatpush1.msra.mxu0 0.0
        %3958 = vmatprep.subr.mxu0 0.0
        %3959 = vmatpush1.msra.mxu0 0.0
        %3960 = vmatprep.subr.mxu0 0.0
        %3961 = vmatpush1.msra.mxu0 0.0
        %3962 = vmatprep.subr.mxu0 0.0
        %3963 = vmatpush1.msra.mxu0 0.0
        %3964 = vmatprep.subr.mxu0 0.0
        %3965 = vmatpush1.msra.mxu0 0.0
        %3966 = vmatprep.mubr.f32.mxu0 0.0
        %3967 = vmatmul.mubr.f32.gmra.mrb[0].mxu0 %v3807
        %v3968 = vpop.f32.mrb[0].mxu0
        %v3969 = vadd.f32 %v3804, %v3968
        %v3970 = vpop.f32.mrb[0].mxu0
        %3971 = vmatprep.mubr.f32.mxu0 0.0
        %3972 = vmatmul.mubr.f32.gmra.mrb[0].mxu0 %v3810
        %v3973 = vpop.f32.mrb[0].mxu0
        %v3974 = vadd.f32 %v3804, %v3973
        %v3975 = vpop.f32.mrb[0].mxu0
        %3976 = vmatprep.mubr.f32.mxu0 0.0
        %3977 = vmatmul.mubr.f32.gmra.mrb[0].mxu0 %v3813
        %v3978 = vpop.f32.mrb[0].mxu0
        %v3979 = vadd.f32 %v3804, %v3978
        %v3980 = vpop.f32.mrb[0].mxu0
        %3981 = vmatprep.mubr.f32.mxu0 0.0
        %3982 = vmatmul.mubr.f32.gmra.mrb[0].mxu0 %v3816
        %v3983 = vpop.f32.mrb[0].mxu0
        %v3984 = vadd.f32 %v3804, %v3983
        %v3985 = vpop.f32.mrb[0].mxu0
        %3986 = vmatprep.mubr.f32.mxu0 0.0
        %3987 = vmatmul.mubr.f32.gmra.mrb[0].mxu0 %v3819
        %v3988 = vpop.f32.mrb[0].mxu0
        %v3989 = vadd.f32 %v3804, %v3988
        %v3990 = vpop.f32.mrb[0].mxu0
        %3991 = vmatprep.mubr.f32.mxu0 0.0
        %3992 = vmatmul.mubr.f32.gmra.mrb[0].mxu0 %v3822
        %v3993 = vpop.f32.mrb[0].mxu0
        %v3994 = vadd.f32 %v3804, %v3993
        %v3995 = vpop.f32.mrb[0].mxu0
        %3996 = vmatprep.mubr.f32.mxu0 0.0
        %3997 = vmatmul.mubr.f32.gmra.mrb[0].mxu0 %v3825
        %v3998 = vpop.f32.mrb[0].mxu0
        %v3999 = vadd.f32 %v3804, %v3998
        %v4000 = vpop.f32.mrb[0].mxu0
        %4001 = vmatprep.mubr.f32.mxu0 0.0
        %4002 = vmatmul.mubr.f32.gmra.mrb[0].mxu0 %v3828
        %v4003 = vpop.f32.mrb[0].mxu0
        %v4004 = vadd.f32 %v3804, %v4003
        %v4005 = vpop.f32.mrb[0].mxu0
        %4006 = vmatprep.mubr.f32.mxu0 0.0
        %4007 = vmatmul.mubr.f32.gmra.mrb[0].mxu0 %v3831
        %v4008 = vpop.f32.mrb[0].mxu0
        %v4009 = vadd.f32 %v3804, %v4008
        %v4010 = vpop.f32.mrb[0].mxu0
        %4011 = vmatprep.mubr.f32.mxu0 0.0
        %4012 = vmatmul.mubr.f32.gmra.mrb[0].mxu0 %v3834
        %v4013 = vpop.f32.mrb[0].mxu0
        %v4014 = vadd.f32 %v3804, %v4013
        %v4015 = vpop.f32.mrb[0].mxu0
        %4016 = vmatprep.mubr.f32.mxu0 0.0
        %4017 = vmatmul.mubr.f32.gmra.mrb[0].mxu0 %v3837
        %v4018 = vpop.f32.mrb[0].mxu0
        %v4019 = vadd.f32 %v3804, %v4018
        %v4020 = vpop.f32.mrb[0].mxu0
        %4021 = vmatprep.mubr.f32.mxu0 0.0
        %4022 = vmatmul.mubr.f32.gmra.mrb[0].mxu0 %v3840
        %v4023 = vpop.f32.mrb[0].mxu0
        %v4024 = vadd.f32 %v3804, %v4023
        %v4025 = vpop.f32.mrb[0].mxu0
        %4026 = vmatprep.mubr.f32.mxu0 0.0
        %4027 = vmatmul.mubr.f32.gmra.mrb[0].mxu0 %v3843
        %v4028 = vpop.f32.mrb[0].mxu0
        %v4029 = vadd.f32 %v3804, %v4028
        %v4030 = vpop.f32.mrb[0].mxu0
        %4031 = vmatprep.mubr.f32.mxu0 0.0
        %4032 = vmatmul.mubr.f32.gmra.mrb[0].mxu0 %v3846
        %v4033 = vpop.f32.mrb[0].mxu0
        %v4034 = vadd.f32 %v3804, %v4033
        %v4035 = vpop.f32.mrb[0].mxu0
        %4036 = vmatprep.mubr.f32.mxu0 0.0
        %4037 = vmatmul.mubr.f32.gmra.mrb[0].mxu0 %v3849
        %v4038 = vpop.f32.mrb[0].mxu0
        %v4039 = vadd.f32 %v3804, %v4038
        %v4040 = vpop.f32.mrb[0].mxu0
        %4041 = vmatprep.mubr.f32.mxu0 0.0
        %4042 = vmatmul.mubr.f32.gmra.mrb[0].mxu0 %v3852
        %v4043 = vpop.f32.mrb[0].mxu0
        %v4044 = vadd.f32 %v3804, %v4043
        %v4045 = vpop.f32.mrb[0].mxu0
        %4046 = vmatprep.mubr.f32.mxu0 0.0
        %4047 = vmatmul.mubr.f32.gmra.mrb[0].mxu0 %v3855
        %v4048 = vpop.f32.mrb[0].mxu0
        %v4049 = vadd.f32 %v3804, %v4048
        %v4050 = vpop.f32.mrb[0].mxu0
        %4051 = vmatprep.mubr.f32.mxu0 0.0
        %4052 = vmatmul.mubr.f32.gmra.mrb[0].mxu0 %v3858
        %v4053 = vpop.f32.mrb[0].mxu0
        %v4054 = vadd.f32 %v3804, %v4053
        %v4055 = vpop.f32.mrb[0].mxu0
        %4056 = vmatprep.mubr.f32.mxu0 0.0
        %4057 = vmatmul.mubr.f32.gmra.mrb[0].mxu0 %v3861
        %v4058 = vpop.f32.mrb[0].mxu0
        %v4059 = vadd.f32 %v3804, %v4058
        %v4060 = vpop.f32.mrb[0].mxu0
        %4061 = vmatprep.mubr.f32.mxu0 0.0
        %4062 = vmatmul.mubr.f32.gmra.mrb[0].mxu0 %v3864
        %v4063 = vpop.f32.mrb[0].mxu0
        %v4064 = vadd.f32 %v3804, %v4063
        %v4065 = vpop.f32.mrb[0].mxu0
        %4066 = vmatprep.mubr.f32.mxu0 0.0
        %4067 = vmatmul.mubr.f32.gmra.mrb[0].mxu0 %v3867
        %v4068 = vpop.f32.mrb[0].mxu0
        %v4069 = vadd.f32 %v3804, %v4068
        %v4070 = vpop.f32.mrb[0].mxu0
        %4071 = vmatprep.mubr.f32.mxu0 0.0
        %4072 = vmatmul.mubr.f32.gmra.mrb[0].mxu0 %v3870
        %v4073 = vpop.f32.mrb[0].mxu0
        %v4074 = vadd.f32 %v3804, %v4073
        %v4075 = vpop.f32.mrb[0].mxu0
        %4076 = vmatprep.mubr.f32.mxu0 0.0
        %4077 = vmatmul.mubr.f32.gmra.mrb[0].mxu0 %v3873
        %v4078 = vpop.f32.mrb[0].mxu0
        %v4079 = vadd.f32 %v3804, %v4078
        %v4080 = vpop.f32.mrb[0].mxu0
        %4081 = vmatprep.mubr.f32.mxu0 0.0
        %4082 = vmatmul.mubr.f32.gmra.mrb[0].mxu0 %v3876
        %v4083 = vpop.f32.mrb[0].mxu0
        %v4084 = vadd.f32 %v3804, %v4083
        %v4085 = vpop.f32.mrb[0].mxu0
        %4086 = vmatprep.mubr.f32.mxu0 0.0
        %4087 = vmatmul.mubr.f32.gmra.mrb[0].mxu0 %v3879
        %v4088 = vpop.f32.mrb[0].mxu0
        %v4089 = vadd.f32 %v3804, %v4088
        %v4090 = vpop.f32.mrb[0].mxu0
        %4091 = vmatprep.mubr.f32.mxu0 0.0
        %4092 = vmatmul.mubr.f32.gmra.mrb[0].mxu0 %v3882
        %v4093 = vpop.f32.mrb[0].mxu0
        %v4094 = vadd.f32 %v3804, %v4093
        %v4095 = vpop.f32.mrb[0].mxu0
        %4096 = vmatprep.mubr.f32.mxu0 0.0
        %4097 = vmatmul.mubr.f32.gmra.mrb[0].mxu0 %v3885
        %v4098 = vpop.f32.mrb[0].mxu0
        %v4099 = vadd.f32 %v3804, %v4098
        %v4100 = vpop.f32.mrb[0].mxu0
        %4101 = vmatprep.mubr.f32.mxu0 0.0
        %4102 = vmatmul.mubr.f32.gmra.mrb[0].mxu0 %v3888
        %v4103 = vpop.f32.mrb[0].mxu0
        %v4104 = vadd.f32 %v3804, %v4103
        %v4105 = vpop.f32.mrb[0].mxu0
        %4106 = vmatprep.mubr.f32.mxu0 0.0
        %4107 = vmatmul.mubr.f32.gmra.mrb[0].mxu0 %v3891
        %v4108 = vpop.f32.mrb[0].mxu0
        %v4109 = vadd.f32 %v3804, %v4108
        %v4110 = vpop.f32.mrb[0].mxu0
        %4111 = vmatprep.mubr.f32.mxu0 0.0
        %4112 = vmatmul.mubr.f32.gmra.mrb[0].mxu0 %v3894
        %v4113 = vpop.f32.mrb[0].mxu0
        %v4114 = vadd.f32 %v3804, %v4113
        %v4115 = vpop.f32.mrb[0].mxu0
        %4116 = vmatprep.mubr.f32.mxu0 0.0
        %4117 = vmatmul.mubr.f32.gmra.mrb[0].mxu0 %v3897
        %v4118 = vpop.f32.mrb[0].mxu0
        %v4119 = vadd.f32 %v3804, %v4118
        %v4120 = vpop.f32.mrb[0].mxu0
        %4121 = vmatprep.mubr.f32.mxu0 0.0
        %4122 = vmatmul.mubr.f32.gmra.mrb[0].mxu0 %v3900
        %v4123 = vpop.f32.mrb[0].mxu0
        %v4124 = vadd.f32 %v3804, %v4123
        %v4125 = vpop.f32.mrb[0].mxu0
        %4126 = vdwg.mxu0
        %vm4127 = vcmp.gt.f32.partialorder %v3969, 0.0
        %vm4128 = vcmp.gt.f32.partialorder %v3974, 0.0
        %vm4129 = vcmp.gt.f32.partialorder %v3979, 0.0
        %vm4130 = vcmp.gt.f32.partialorder %v3984, 0.0
        %vm4131 = vcmp.gt.f32.partialorder %v3989, 0.0
        %vm4132 = vcmp.gt.f32.partialorder %v3994, 0.0
        %vm4133 = vcmp.gt.f32.partialorder %v3999, 0.0
        %vm4134 = vcmp.gt.f32.partialorder %v4004, 0.0
        %vm4135 = vcmp.gt.f32.partialorder %v4009, 0.0
        %vm4136 = vcmp.gt.f32.partialorder %v4014, 0.0
        %vm4137 = vcmp.gt.f32.partialorder %v4019, 0.0
        %vm4138 = vcmp.gt.f32.partialorder %v4024, 0.0
        %vm4139 = vcmp.gt.f32.partialorder %v4029, 0.0
        %vm4140 = vcmp.gt.f32.partialorder %v4034, 0.0
        %vm4141 = vcmp.gt.f32.partialorder %v4039, 0.0
        %vm4142 = vcmp.gt.f32.partialorder %v4044, 0.0
        %vm4143 = vcmp.gt.f32.partialorder %v4049, 0.0
        %vm4144 = vcmp.gt.f32.partialorder %v4054, 0.0
        %vm4145 = vcmp.gt.f32.partialorder %v4059, 0.0
        %vm4146 = vcmp.gt.f32.partialorder %v4064, 0.0
        %vm4147 = vcmp.gt.f32.partialorder %v4069, 0.0
        %vm4148 = vcmp.gt.f32.partialorder %v4074, 0.0
        %vm4149 = vcmp.gt.f32.partialorder %v4079, 0.0
        %vm4150 = vcmp.gt.f32.partialorder %v4084, 0.0
        %vm4151 = vcmp.gt.f32.partialorder %v4089, 0.0
        %vm4152 = vcmp.gt.f32.partialorder %v4094, 0.0
        %vm4153 = vcmp.gt.f32.partialorder %v4099, 0.0
        %vm4154 = vcmp.gt.f32.partialorder %v4104, 0.0
        %vm4155 = vcmp.gt.f32.partialorder %v4109, 0.0
        %vm4156 = vcmp.gt.f32.partialorder %v4114, 0.0
        %vm4157 = vcmp.gt.f32.partialorder %v4119, 0.0
        %vm4158 = vcmp.gt.f32.partialorder %v4124, 0.0
        %v4159 = vmul.f32 %v3969, 0.01
        %v4160 = vmul.f32 %v3974, 0.01
        %v4161 = vmul.f32 %v3979, 0.01
        %v4162 = vmul.f32 %v3984, 0.01
        %v4163 = vmul.f32 %v3989, 0.01
        %v4164 = vmul.f32 %v3994, 0.01
        %v4165 = vmul.f32 %v3999, 0.01
        %v4166 = vmul.f32 %v4004, 0.01
        %v4167 = vmul.f32 %v4009, 0.01
        %v4168 = vmul.f32 %v4014, 0.01
        %v4169 = vmul.f32 %v4019, 0.01
        %v4170 = vmul.f32 %v4024, 0.01
        %v4171 = vmul.f32 %v4029, 0.01
        %v4172 = vmul.f32 %v4034, 0.01
        %v4173 = vmul.f32 %v4039, 0.01
        %v4174 = vmul.f32 %v4044, 0.01
        %v4175 = vmul.f32 %v4049, 0.01
        %v4176 = vmul.f32 %v4054, 0.01
        %v4177 = vmul.f32 %v4059, 0.01
        %v4178 = vmul.f32 %v4064, 0.01
        %v4179 = vmul.f32 %v4069, 0.01
        %v4180 = vmul.f32 %v4074, 0.01
        %v4181 = vmul.f32 %v4079, 0.01
        %v4182 = vmul.f32 %v4084, 0.01
        %v4183 = vmul.f32 %v4089, 0.01
        %v4184 = vmul.f32 %v4094, 0.01
        %v4185 = vmul.f32 %v4099, 0.01
        %v4186 = vmul.f32 %v4104, 0.01
        %v4187 = vmul.f32 %v4109, 0.01
        %v4188 = vmul.f32 %v4114, 0.01
        %v4189 = vmul.f32 %v4119, 0.01
        %v4190 = vmul.f32 %v4124, 0.01
        %v4191 = vsel %vm4127, %v3969, %v4159
        %v4192 = vsel %vm4128, %v3974, %v4160
        %v4193 = vsel %vm4129, %v3979, %v4161
        %v4194 = vsel %vm4130, %v3984, %v4162
        %v4195 = vsel %vm4131, %v3989, %v4163
        %v4196 = vsel %vm4132, %v3994, %v4164
        %v4197 = vsel %vm4133, %v3999, %v4165
        %v4198 = vsel %vm4134, %v4004, %v4166
        %v4199 = vsel %vm4135, %v4009, %v4167
        %v4200 = vsel %vm4136, %v4014, %v4168
        %v4201 = vsel %vm4137, %v4019, %v4169
        %v4202 = vsel %vm4138, %v4024, %v4170
        %v4203 = vsel %vm4139, %v4029, %v4171
        %v4204 = vsel %vm4140, %v4034, %v4172
        %v4205 = vsel %vm4141, %v4039, %v4173
        %v4206 = vsel %vm4142, %v4044, %v4174
        %v4207 = vsel %vm4143, %v4049, %v4175
        %v4208 = vsel %vm4144, %v4054, %v4176
        %v4209 = vsel %vm4145, %v4059, %v4177
        %v4210 = vsel %vm4146, %v4064, %v4178
        %v4211 = vsel %vm4147, %v4069, %v4179
        %v4212 = vsel %vm4148, %v4074, %v4180
        %v4213 = vsel %vm4149, %v4079, %v4181
        %v4214 = vsel %vm4150, %v4084, %v4182
        %v4215 = vsel %vm4151, %v4089, %v4183
        %v4216 = vsel %vm4152, %v4094, %v4184
        %v4217 = vsel %vm4153, %v4099, %v4185
        %v4218 = vsel %vm4154, %v4104, %v4186
        %v4219 = vsel %vm4155, %v4109, %v4187
        %v4220 = vsel %vm4156, %v4114, %v4188
        %v4221 = vsel %vm4157, %v4119, %v4189
        %v4222 = vsel %vm4158, %v4124, %v4190
        %v4223 = vsel %vm1168, %v4191, 0.0
        %v4224 = vrot.slane %v4223, 4
        %v4225 = vadd.f32 %v4223, %v4224
        %v4226 = vrot.slane %v4225, 2
        %v4227 = vadd.f32 %v4225, %v4226
        %v4228 = vrot.slane %v4227, 1
        %v4229 = vadd.f32 %v4227, %v4228
        %v4230 = vsel %vm1168, %v4192, 0.0
        %v4231 = vrot.slane %v4230, 4
        %v4232 = vadd.f32 %v4230, %v4231
        %v4233 = vrot.slane %v4232, 2
        %v4234 = vadd.f32 %v4232, %v4233
        %v4235 = vrot.slane %v4234, 1
        %v4236 = vadd.f32 %v4234, %v4235
        %v4237 = vsel %vm1168, %v4193, 0.0
        %v4238 = vrot.slane %v4237, 4
        %v4239 = vadd.f32 %v4237, %v4238
        %v4240 = vrot.slane %v4239, 2
        %v4241 = vadd.f32 %v4239, %v4240
        %v4242 = vrot.slane %v4241, 1
        %v4243 = vadd.f32 %v4241, %v4242
        %v4244 = vsel %vm1168, %v4194, 0.0
        %v4245 = vrot.slane %v4244, 4
        %v4246 = vadd.f32 %v4244, %v4245
        %v4247 = vrot.slane %v4246, 2
        %v4248 = vadd.f32 %v4246, %v4247
        %v4249 = vrot.slane %v4248, 1
        %v4250 = vadd.f32 %v4248, %v4249
        %v4251 = vsel %vm1168, %v4195, 0.0
        %v4252 = vrot.slane %v4251, 4
        %v4253 = vadd.f32 %v4251, %v4252
        %v4254 = vrot.slane %v4253, 2
        %v4255 = vadd.f32 %v4253, %v4254
        %v4256 = vrot.slane %v4255, 1
        %v4257 = vadd.f32 %v4255, %v4256
        %v4258 = vsel %vm1168, %v4196, 0.0
        %v4259 = vrot.slane %v4258, 4
        %v4260 = vadd.f32 %v4258, %v4259
        %v4261 = vrot.slane %v4260, 2
        %v4262 = vadd.f32 %v4260, %v4261
        %v4263 = vrot.slane %v4262, 1
        %v4264 = vadd.f32 %v4262, %v4263
        %v4265 = vsel %vm1168, %v4197, 0.0
        %v4266 = vrot.slane %v4265, 4
        %v4267 = vadd.f32 %v4265, %v4266
        %v4268 = vrot.slane %v4267, 2
        %v4269 = vadd.f32 %v4267, %v4268
        %v4270 = vrot.slane %v4269, 1
        %v4271 = vadd.f32 %v4269, %v4270
        %v4272 = vsel %vm1168, %v4198, 0.0
        %v4273 = vrot.slane %v4272, 4
        %v4274 = vadd.f32 %v4272, %v4273
        %v4275 = vrot.slane %v4274, 2
        %v4276 = vadd.f32 %v4274, %v4275
        %v4277 = vrot.slane %v4276, 1
        %v4278 = vadd.f32 %v4276, %v4277
        %v4279 = vsel %vm1168, %v4199, 0.0
        %v4280 = vrot.slane %v4279, 4
        %v4281 = vadd.f32 %v4279, %v4280
        %v4282 = vrot.slane %v4281, 2
        %v4283 = vadd.f32 %v4281, %v4282
        %v4284 = vrot.slane %v4283, 1
        %v4285 = vadd.f32 %v4283, %v4284
        %v4286 = vsel %vm1168, %v4200, 0.0
        %v4287 = vrot.slane %v4286, 4
        %v4288 = vadd.f32 %v4286, %v4287
        %v4289 = vrot.slane %v4288, 2
        %v4290 = vadd.f32 %v4288, %v4289
        %v4291 = vrot.slane %v4290, 1
        %v4292 = vadd.f32 %v4290, %v4291
        %v4293 = vsel %vm1168, %v4201, 0.0
        %v4294 = vrot.slane %v4293, 4
        %v4295 = vadd.f32 %v4293, %v4294
        %v4296 = vrot.slane %v4295, 2
        %v4297 = vadd.f32 %v4295, %v4296
        %v4298 = vrot.slane %v4297, 1
        %v4299 = vadd.f32 %v4297, %v4298
        %v4300 = vsel %vm1168, %v4202, 0.0
        %v4301 = vrot.slane %v4300, 4
        %v4302 = vadd.f32 %v4300, %v4301
        %v4303 = vrot.slane %v4302, 2
        %v4304 = vadd.f32 %v4302, %v4303
        %v4305 = vrot.slane %v4304, 1
        %v4306 = vadd.f32 %v4304, %v4305
        %v4307 = vsel %vm1168, %v4203, 0.0
        %v4308 = vrot.slane %v4307, 4
        %v4309 = vadd.f32 %v4307, %v4308
        %v4310 = vrot.slane %v4309, 2
        %v4311 = vadd.f32 %v4309, %v4310
        %v4312 = vrot.slane %v4311, 1
        %v4313 = vadd.f32 %v4311, %v4312
        %v4314 = vsel %vm1168, %v4204, 0.0
        %v4315 = vrot.slane %v4314, 4
        %v4316 = vadd.f32 %v4314, %v4315
        %v4317 = vrot.slane %v4316, 2
        %v4318 = vadd.f32 %v4316, %v4317
        %v4319 = vrot.slane %v4318, 1
        %v4320 = vadd.f32 %v4318, %v4319
        %v4321 = vsel %vm1168, %v4205, 0.0
        %v4322 = vrot.slane %v4321, 4
        %v4323 = vadd.f32 %v4321, %v4322
        %v4324 = vrot.slane %v4323, 2
        %v4325 = vadd.f32 %v4323, %v4324
        %v4326 = vrot.slane %v4325, 1
        %v4327 = vadd.f32 %v4325, %v4326
        %v4328 = vsel %vm1168, %v4206, 0.0
        %v4329 = vrot.slane %v4328, 4
        %v4330 = vadd.f32 %v4328, %v4329
        %v4331 = vrot.slane %v4330, 2
        %v4332 = vadd.f32 %v4330, %v4331
        %v4333 = vrot.slane %v4332, 1
        %v4334 = vadd.f32 %v4332, %v4333
        %v4335 = vsel %vm1168, %v4207, 0.0
        %v4336 = vrot.slane %v4335, 4
        %v4337 = vadd.f32 %v4335, %v4336
        %v4338 = vrot.slane %v4337, 2
        %v4339 = vadd.f32 %v4337, %v4338
        %v4340 = vrot.slane %v4339, 1
        %v4341 = vadd.f32 %v4339, %v4340
        %v4342 = vsel %vm1168, %v4208, 0.0
        %v4343 = vrot.slane %v4342, 4
        %v4344 = vadd.f32 %v4342, %v4343
        %v4345 = vrot.slane %v4344, 2
        %v4346 = vadd.f32 %v4344, %v4345
        %v4347 = vrot.slane %v4346, 1
        %v4348 = vadd.f32 %v4346, %v4347
        %v4349 = vsel %vm1168, %v4209, 0.0
        %v4350 = vrot.slane %v4349, 4
        %v4351 = vadd.f32 %v4349, %v4350
        %v4352 = vrot.slane %v4351, 2
        %v4353 = vadd.f32 %v4351, %v4352
        %v4354 = vrot.slane %v4353, 1
        %v4355 = vadd.f32 %v4353, %v4354
        %v4356 = vsel %vm1168, %v4210, 0.0
        %v4357 = vrot.slane %v4356, 4
        %v4358 = vadd.f32 %v4356, %v4357
        %v4359 = vrot.slane %v4358, 2
        %v4360 = vadd.f32 %v4358, %v4359
        %v4361 = vrot.slane %v4360, 1
        %v4362 = vadd.f32 %v4360, %v4361
        %v4363 = vsel %vm1168, %v4211, 0.0
        %v4364 = vrot.slane %v4363, 4
        %v4365 = vadd.f32 %v4363, %v4364
        %v4366 = vrot.slane %v4365, 2
        %v4367 = vadd.f32 %v4365, %v4366
        %v4368 = vrot.slane %v4367, 1
        %v4369 = vadd.f32 %v4367, %v4368
        %v4370 = vsel %vm1168, %v4212, 0.0
        %v4371 = vrot.slane %v4370, 4
        %v4372 = vadd.f32 %v4370, %v4371
        %v4373 = vrot.slane %v4372, 2
        %v4374 = vadd.f32 %v4372, %v4373
        %v4375 = vrot.slane %v4374, 1
        %v4376 = vadd.f32 %v4374, %v4375
        %v4377 = vsel %vm1168, %v4213, 0.0
        %v4378 = vrot.slane %v4377, 4
        %v4379 = vadd.f32 %v4377, %v4378
        %v4380 = vrot.slane %v4379, 2
        %v4381 = vadd.f32 %v4379, %v4380
        %v4382 = vrot.slane %v4381, 1
        %v4383 = vadd.f32 %v4381, %v4382
        %v4384 = vsel %vm1168, %v4214, 0.0
        %v4385 = vrot.slane %v4384, 4
        %v4386 = vadd.f32 %v4384, %v4385
        %v4387 = vrot.slane %v4386, 2
        %v4388 = vadd.f32 %v4386, %v4387
        %v4389 = vrot.slane %v4388, 1
        %v4390 = vadd.f32 %v4388, %v4389
        %v4391 = vsel %vm1168, %v4215, 0.0
        %v4392 = vrot.slane %v4391, 4
        %v4393 = vadd.f32 %v4391, %v4392
        %v4394 = vrot.slane %v4393, 2
        %v4395 = vadd.f32 %v4393, %v4394
        %v4396 = vrot.slane %v4395, 1
        %v4397 = vadd.f32 %v4395, %v4396
        %v4398 = vsel %vm1168, %v4216, 0.0
        %v4399 = vrot.slane %v4398, 4
        %v4400 = vadd.f32 %v4398, %v4399
        %v4401 = vrot.slane %v4400, 2
        %v4402 = vadd.f32 %v4400, %v4401
        %v4403 = vrot.slane %v4402, 1
        %v4404 = vadd.f32 %v4402, %v4403
        %v4405 = vsel %vm1168, %v4217, 0.0
        %v4406 = vrot.slane %v4405, 4
        %v4407 = vadd.f32 %v4405, %v4406
        %v4408 = vrot.slane %v4407, 2
        %v4409 = vadd.f32 %v4407, %v4408
        %v4410 = vrot.slane %v4409, 1
        %v4411 = vadd.f32 %v4409, %v4410
        %v4412 = vsel %vm1168, %v4218, 0.0
        %v4413 = vrot.slane %v4412, 4
        %v4414 = vadd.f32 %v4412, %v4413
        %v4415 = vrot.slane %v4414, 2
        %v4416 = vadd.f32 %v4414, %v4415
        %v4417 = vrot.slane %v4416, 1
        %v4418 = vadd.f32 %v4416, %v4417
        %v4419 = vsel %vm1168, %v4219, 0.0
        %v4420 = vrot.slane %v4419, 4
        %v4421 = vadd.f32 %v4419, %v4420
        %v4422 = vrot.slane %v4421, 2
        %v4423 = vadd.f32 %v4421, %v4422
        %v4424 = vrot.slane %v4423, 1
        %v4425 = vadd.f32 %v4423, %v4424
        %v4426 = vsel %vm1168, %v4220, 0.0
        %v4427 = vrot.slane %v4426, 4
        %v4428 = vadd.f32 %v4426, %v4427
        %v4429 = vrot.slane %v4428, 2
        %v4430 = vadd.f32 %v4428, %v4429
        %v4431 = vrot.slane %v4430, 1
        %v4432 = vadd.f32 %v4430, %v4431
        %v4433 = vsel %vm1168, %v4221, 0.0
        %v4434 = vrot.slane %v4433, 4
        %v4435 = vadd.f32 %v4433, %v4434
        %v4436 = vrot.slane %v4435, 2
        %v4437 = vadd.f32 %v4435, %v4436
        %v4438 = vrot.slane %v4437, 1
        %v4439 = vadd.f32 %v4437, %v4438
        %v4440 = vsel %vm1168, %v4222, 0.0
        %v4441 = vrot.slane %v4440, 4
        %v4442 = vadd.f32 %v4440, %v4441
        %v4443 = vrot.slane %v4442, 2
        %v4444 = vadd.f32 %v4442, %v4443
        %v4445 = vrot.slane %v4444, 1
        %v4446 = vadd.f32 %v4444, %v4445
        %v4447 = vld [vmem:[%s14] sm:$0xff]
        %v4448 = vld [vmem:[%s14 + $0x8] sm:$0xff]
        %v4449 = vld [vmem:[%s14 + $0x10] sm:$0xff]
        %v4450 = vld [vmem:[%s14 + $0x18] sm:$0xff]
        %v4451 = vld [vmem:[%s15] sm:$0xff]
        %v4452 = vld [vmem:[%s15 + $0x8] sm:$0xff]
        %v4453 = vld [vmem:[%s15 + $0x10] sm:$0xff]
        %v4454 = vld [vmem:[%s15 + $0x18] sm:$0xff]
        %vm4471 = vcmask 1041409
        %v4472 = vsel %vm4471, %v4348, %v4341
        %vm4473 = vcmask 1042434
        %v4474 = vsel %vm4473, %v4355, %v4472
        %vm4475 = vcmask 1043459
        %v4476 = vsel %vm4475, %v4362, %v4474
        %vm4477 = vcmask 1044484
        %v4478 = vsel %vm4477, %v4369, %v4476
        %vm4479 = vcmask 1045509
        %v4480 = vsel %vm4479, %v4376, %v4478
        %vm4481 = vcmask 1046534
        %v4482 = vsel %vm4481, %v4383, %v4480
        %vm4483 = vcmask 1047559
        %v4484 = vsel %vm4483, %v4390, %v4482
        %v4485 = vsel %vm4471, %v4404, %v4397
        %v4486 = vsel %vm4473, %v4411, %v4485
        %v4487 = vsel %vm4475, %v4418, %v4486
        %v4488 = vsel %vm4477, %v4425, %v4487
        %v4489 = vsel %vm4479, %v4432, %v4488
        %v4490 = vsel %vm4481, %v4439, %v4489
        %v4491 = vsel %vm4483, %v4446, %v4490
        %v4492 = vsel %vm1168, %v4484, 0
        %v4494 = vsel %vm1168, %v4491, 0
        %4496 = vmatprep.subr.mxu0 0.0
        %4497 = vmatpush1.msra.mxu0 %v4451
        %4498 = vmatprep.subr.mxu0 0.0
        %4499 = vmatpush1.msra.mxu0 %v4452
        %4500 = vmatprep.subr.mxu0 0.0
        %4501 = vmatpush1.msra.mxu0 %v4453
        %4502 = vmatprep.subr.mxu0 0.0
        %4503 = vmatpush1.msra.mxu0 %v4454
        %4504 = vmatprep.subr.mxu0 0.0
        %4505 = vmatpush1.msra.mxu0 0.0
        %4506 = vmatprep.subr.mxu0 0.0
        %4507 = vmatpush1.msra.mxu0 0.0
        %4508 = vmatprep.subr.mxu0 0.0
        %4509 = vmatpush1.msra.mxu0 0.0
        %4510 = vmatprep.subr.mxu0 0.0
        %4511 = vmatpush1.msra.mxu0 0.0
        %4512 = vmatprep.subr.mxu0 0.0
        %4513 = vmatpush1.msra.mxu0 0.0
        %4514 = vmatprep.subr.mxu0 0.0
        %4515 = vmatpush1.msra.mxu0 0.0
        %4516 = vmatprep.subr.mxu0 0.0
        %4517 = vmatpush1.msra.mxu0 0.0
        %4518 = vmatprep.subr.mxu0 0.0
        %4519 = vmatpush1.msra.mxu0 0.0
        %4520 = vmatprep.subr.mxu0 0.0
        %4521 = vmatpush1.msra.mxu0 0.0
        %4522 = vmatprep.subr.mxu0 0.0
        %4523 = vmatpush1.msra.mxu0 0.0
        %4524 = vmatprep.subr.mxu0 0.0
        %4525 = vmatpush1.msra.mxu0 0.0
        %4526 = vmatprep.subr.mxu0 0.0
        %4527 = vmatpush1.msra.mxu0 0.0
        %4528 = vmatprep.subr.mxu0 0.0
        %4529 = vmatpush1.msra.mxu0 0.0
        %4530 = vmatprep.subr.mxu0 0.0
        %4531 = vmatpush1.msra.mxu0 0.0
        %4532 = vmatprep.subr.mxu0 0.0
        %4533 = vmatpush1.msra.mxu0 0.0
        %4534 = vmatprep.subr.mxu0 0.0
        %4535 = vmatpush1.msra.mxu0 0.0
        %4536 = vmatprep.subr.mxu0 0.0
        %4537 = vmatpush1.msra.mxu0 0.0
        %4538 = vmatprep.subr.mxu0 0.0
        %4539 = vmatpush1.msra.mxu0 0.0
        %4540 = vmatprep.subr.mxu0 0.0
        %4541 = vmatpush1.msra.mxu0 0.0
        %4542 = vmatprep.subr.mxu0 0.0
        %4543 = vmatpush1.msra.mxu0 0.0
        %4544 = vmatprep.subr.mxu0 0.0
        %4545 = vmatpush1.msra.mxu0 0.0
        %4546 = vmatprep.subr.mxu0 0.0
        %4547 = vmatpush1.msra.mxu0 0.0
        %4548 = vmatprep.subr.mxu0 0.0
        %4549 = vmatpush1.msra.mxu0 0.0
        %4550 = vmatprep.subr.mxu0 0.0
        %4551 = vmatpush1.msra.mxu0 0.0
        %4552 = vmatprep.subr.mxu0 0.0
        %4553 = vmatpush1.msra.mxu0 0.0
        %4554 = vmatprep.subr.mxu0 0.0
        %4555 = vmatpush1.msra.mxu0 0.0
        %4556 = vmatprep.subr.mxu0 0.0
        %4557 = vmatpush1.msra.mxu0 0.0
        %4558 = vmatprep.subr.mxu0 0.0
        %4559 = vmatpush1.msra.mxu0 0.0
        %4560 = vmatprep.mubr.f32.mxu0 0.0
        %4561 = vmatmul.mubr.f32.gmra.mrb[0].mxu0 %v4492
        %v4562 = vpop.f32.mrb[0].mxu0
        %v4563 = vadd.f32 0.0, %v4562
        %v4564 = vpop.f32.mrb[0].mxu0
        %4565 = vmatprep.mubr.f32.mxu0 0.0
        %4566 = vmatmul.mubr.f32.gmra.mrb[0].mxu0 %v4494
        %v4567 = vpop.f32.mrb[0].mxu0
        %v4568 = vadd.f32 0.0, %v4567
        %v4569 = vpop.f32.mrb[0].mxu0
        %4570 = vdwg.mxu0
        %v4587 = vsel %vm4471, %v4236, %v4229
        %v4588 = vsel %vm4473, %v4243, %v4587
        %v4589 = vsel %vm4475, %v4250, %v4588
        %v4590 = vsel %vm4477, %v4257, %v4589
        %v4591 = vsel %vm4479, %v4264, %v4590
        %v4592 = vsel %vm4481, %v4271, %v4591
        %v4593 = vsel %vm4483, %v4278, %v4592
        %v4594 = vsel %vm4471, %v4292, %v4285
        %v4595 = vsel %vm4473, %v4299, %v4594
        %v4596 = vsel %vm4475, %v4306, %v4595
        %v4597 = vsel %vm4477, %v4313, %v4596
        %v4598 = vsel %vm4479, %v4320, %v4597
        %v4599 = vsel %vm4481, %v4327, %v4598
        %v4600 = vsel %vm4483, %v4334, %v4599
        %v4601 = vsel %vm1168, %v4593, 0
        %v4603 = vsel %vm1168, %v4600, 0
        %4605 = vmatprep.subr.mxu0 0.0
        %4606 = vmatpush1.msra.mxu0 %v4447
        %4607 = vmatprep.subr.mxu0 0.0
        %4608 = vmatpush1.msra.mxu0 %v4448
        %4609 = vmatprep.subr.mxu0 0.0
        %4610 = vmatpush1.msra.mxu0 %v4449
        %4611 = vmatprep.subr.mxu0 0.0
        %4612 = vmatpush1.msra.mxu0 %v4450
        %4613 = vmatprep.subr.mxu0 0.0
        %4614 = vmatpush1.msra.mxu0 0.0
        %4615 = vmatprep.subr.mxu0 0.0
        %4616 = vmatpush1.msra.mxu0 0.0
        %4617 = vmatprep.subr.mxu0 0.0
        %4618 = vmatpush1.msra.mxu0 0.0
        %4619 = vmatprep.subr.mxu0 0.0
        %4620 = vmatpush1.msra.mxu0 0.0
        %4621 = vmatprep.subr.mxu0 0.0
        %4622 = vmatpush1.msra.mxu0 0.0
        %4623 = vmatprep.subr.mxu0 0.0
        %4624 = vmatpush1.msra.mxu0 0.0
        %4625 = vmatprep.subr.mxu0 0.0
        %4626 = vmatpush1.msra.mxu0 0.0
        %4627 = vmatprep.subr.mxu0 0.0
        %4628 = vmatpush1.msra.mxu0 0.0
        %4629 = vmatprep.subr.mxu0 0.0
        %4630 = vmatpush1.msra.mxu0 0.0
        %4631 = vmatprep.subr.mxu0 0.0
        %4632 = vmatpush1.msra.mxu0 0.0
        %4633 = vmatprep.subr.mxu0 0.0
        %4634 = vmatpush1.msra.mxu0 0.0
        %4635 = vmatprep.subr.mxu0 0.0
        %4636 = vmatpush1.msra.mxu0 0.0
        %4637 = vmatprep.subr.mxu0 0.0
        %4638 = vmatpush1.msra.mxu0 0.0
        %4639 = vmatprep.subr.mxu0 0.0
        %4640 = vmatpush1.msra.mxu0 0.0
        %4641 = vmatprep.subr.mxu0 0.0
        %4642 = vmatpush1.msra.mxu0 0.0
        %4643 = vmatprep.subr.mxu0 0.0
        %4644 = vmatpush1.msra.mxu0 0.0
        %4645 = vmatprep.subr.mxu0 0.0
        %4646 = vmatpush1.msra.mxu0 0.0
        %4647 = vmatprep.subr.mxu0 0.0
        %4648 = vmatpush1.msra.mxu0 0.0
        %4649 = vmatprep.subr.mxu0 0.0
        %4650 = vmatpush1.msra.mxu0 0.0
        %4651 = vmatprep.subr.mxu0 0.0
        %4652 = vmatpush1.msra.mxu0 0.0
        %4653 = vmatprep.subr.mxu0 0.0
        %4654 = vmatpush1.msra.mxu0 0.0
        %4655 = vmatprep.subr.mxu0 0.0
        %4656 = vmatpush1.msra.mxu0 0.0
        %4657 = vmatprep.subr.mxu0 0.0
        %4658 = vmatpush1.msra.mxu0 0.0
        %4659 = vmatprep.subr.mxu0 0.0
        %4660 = vmatpush1.msra.mxu0 0.0
        %4661 = vmatprep.subr.mxu0 0.0
        %4662 = vmatpush1.msra.mxu0 0.0
        %4663 = vmatprep.subr.mxu0 0.0
        %4664 = vmatpush1.msra.mxu0 0.0
        %4665 = vmatprep.subr.mxu0 0.0
        %4666 = vmatpush1.msra.mxu0 0.0
        %4667 = vmatprep.subr.mxu0 0.0
        %4668 = vmatpush1.msra.mxu0 0.0
        %4669 = vmatprep.mubr.f32.mxu0 0.0
        %4670 = vmatmul.mubr.f32.gmra.mrb[0].mxu0 %v4601
        %v4671 = vpop.f32.mrb[0].mxu0
        %v4672 = vadd.f32 %v4563, %v4671
        %v4673 = vpop.f32.mrb[0].mxu0
        %4674 = vmatprep.mubr.f32.mxu0 0.0
        %4675 = vmatmul.mubr.f32.gmra.mrb[0].mxu0 %v4603
        %v4676 = vpop.f32.mrb[0].mxu0
        %v4677 = vadd.f32 %v4568, %v4676
        %v4678 = vpop.f32.mrb[0].mxu0
        %4679 = vdwg.mxu0
        %v4680 = vld [vmem:[%s16] sm:$0x1]
        %v4682 = vlaneseq
        %v4683 = vshrl.u32 %v4682, 7
        %v4684 = vsub.s32 0, %v4683
        %v4685 = vrot.slane %v4680, %v4684
        %v4687 = vadd.f32 %v4672, %v4685
        %v4688 = vadd.f32 %v4677, %v4685
        %vm4689 = vcmp.gt.f32.partialorder %v4687, 0.0
        %vm4690 = vcmp.gt.f32.partialorder %v4688, 0.0
        %v4691 = vmul.f32 %v4687, 0.01
        %v4692 = vmul.f32 %v4688, 0.01
        %v4693 = vsel %vm4689, %v4687, %v4691
        %v4694 = vsel %vm4690, %v4688, %v4692
        %v4695 = vld [vmem:[%s17] sm:$0xff]
        %v4696 = vld [vmem:[%s17 + $0x8] sm:$0xff]
        %v4697 = vld [vmem:[%s17 + $0x10] sm:$0xff]
        %v4698 = vld [vmem:[%s17 + $0x18] sm:$0xff]
        %v4699 = vld [vmem:[%s18] sm:$0x1]
        %v4701 = vlaneseq
        %v4702 = vshrl.u32 %v4701, 7
        %v4703 = vsub.s32 0, %v4702
        %v4704 = vrot.slane %v4699, %v4703
        %v4707 = vsel %vm1168, %v4693, 0
        %v4710 = vsel %vm1168, %v4694, 0
        %4712 = vmatprep.subr.mxu0 0.0
        %4713 = vmatpush1.msra.mxu0 %v4695
        %4714 = vmatprep.subr.mxu0 0.0
        %4715 = vmatpush1.msra.mxu0 %v4696
        %4716 = vmatprep.subr.mxu0 0.0
        %4717 = vmatpush1.msra.mxu0 %v4697
        %4718 = vmatprep.subr.mxu0 0.0
        %4719 = vmatpush1.msra.mxu0 %v4698
        %4720 = vmatprep.subr.mxu0 0.0
        %4721 = vmatpush1.msra.mxu0 0.0
        %4722 = vmatprep.subr.mxu0 0.0
        %4723 = vmatpush1.msra.mxu0 0.0
        %4724 = vmatprep.subr.mxu0 0.0
        %4725 = vmatpush1.msra.mxu0 0.0
        %4726 = vmatprep.subr.mxu0 0.0
        %4727 = vmatpush1.msra.mxu0 0.0
        %4728 = vmatprep.subr.mxu0 0.0
        %4729 = vmatpush1.msra.mxu0 0.0
        %4730 = vmatprep.subr.mxu0 0.0
        %4731 = vmatpush1.msra.mxu0 0.0
        %4732 = vmatprep.subr.mxu0 0.0
        %4733 = vmatpush1.msra.mxu0 0.0
        %4734 = vmatprep.subr.mxu0 0.0
        %4735 = vmatpush1.msra.mxu0 0.0
        %4736 = vmatprep.subr.mxu0 0.0
        %4737 = vmatpush1.msra.mxu0 0.0
        %4738 = vmatprep.subr.mxu0 0.0
        %4739 = vmatpush1.msra.mxu0 0.0
        %4740 = vmatprep.subr.mxu0 0.0
        %4741 = vmatpush1.msra.mxu0 0.0
        %4742 = vmatprep.subr.mxu0 0.0
        %4743 = vmatpush1.msra.mxu0 0.0
        %4744 = vmatprep.subr.mxu0 0.0
        %4745 = vmatpush1.msra.mxu0 0.0
        %4746 = vmatprep.subr.mxu0 0.0
        %4747 = vmatpush1.msra.mxu0 0.0
        %4748 = vmatprep.subr.mxu0 0.0
        %4749 = vmatpush1.msra.mxu0 0.0
        %4750 = vmatprep.subr.mxu0 0.0
        %4751 = vmatpush1.msra.mxu0 0.0
        %4752 = vmatprep.subr.mxu0 0.0
        %4753 = vmatpush1.msra.mxu0 0.0
        %4754 = vmatprep.subr.mxu0 0.0
        %4755 = vmatpush1.msra.mxu0 0.0
        %4756 = vmatprep.subr.mxu0 0.0
        %4757 = vmatpush1.msra.mxu0 0.0
        %4758 = vmatprep.subr.mxu0 0.0
        %4759 = vmatpush1.msra.mxu0 0.0
        %4760 = vmatprep.subr.mxu0 0.0
        %4761 = vmatpush1.msra.mxu0 0.0
        %4762 = vmatprep.subr.mxu0 0.0
        %4763 = vmatpush1.msra.mxu0 0.0
        %4764 = vmatprep.subr.mxu0 0.0
        %4765 = vmatpush1.msra.mxu0 0.0
        %4766 = vmatprep.subr.mxu0 0.0
        %4767 = vmatpush1.msra.mxu0 0.0
        %4768 = vmatprep.subr.mxu0 0.0
        %4769 = vmatpush1.msra.mxu0 0.0
        %4770 = vmatprep.subr.mxu0 0.0
        %4771 = vmatpush1.msra.mxu0 0.0
        %4772 = vmatprep.subr.mxu0 0.0
        %4773 = vmatpush1.msra.mxu0 0.0
        %4774 = vmatprep.subr.mxu0 0.0
        %4775 = vmatpush1.msra.mxu0 0.0
        %4776 = vmatprep.mubr.f32.mxu0 0.0
        %4777 = vmatmul.mubr.f32.gmra.mrb[0].mxu0 %v4707
        %v4778 = vpop.f32.mrb[0].mxu0
        %v4779 = vadd.f32 %v4704, %v4778
        %v4780 = vpop.f32.mrb[0].mxu0
        %4781 = vmatprep.mubr.f32.mxu0 0.0
        %4782 = vmatmul.mubr.f32.gmra.mrb[0].mxu0 %v4710
        %v4783 = vpop.f32.mrb[0].mxu0
        %v4784 = vadd.f32 %v4704, %v4783
        %v4785 = vpop.f32.mrb[0].mxu0
        %4786 = vdwg.mxu0
        %vm4787 = vcmp.gt.f32.partialorder %v4779, 0.0
        %vm4788 = vcmp.gt.f32.partialorder %v4784, 0.0
        %v4789 = vmul.f32 %v4779, 0.01
        %v4790 = vmul.f32 %v4784, 0.01
        %v4791 = vsel %vm4787, %v4779, %v4789
        %v4792 = vsel %vm4788, %v4784, %v4790
        %v4793 = vld [vmem:[%s19] sm:$0xff]
        %v4794 = vld [vmem:[%s19 + $0x8] sm:$0xff]
        %v4795 = vld [vmem:[%s19 + $0x10] sm:$0xff]
        %v4796 = vld [vmem:[%s19 + $0x18] sm:$0xff]
        %v4797 = vld [vmem:[%s20] sm:$0x1]
        %v4799 = vlaneseq
        %v4800 = vshrl.u32 %v4799, 7
        %v4801 = vsub.s32 0, %v4800
        %v4802 = vrot.slane %v4797, %v4801
        %v4805 = vsel %vm1168, %v4791, 0
        %v4808 = vsel %vm1168, %v4792, 0
        %4810 = vmatprep.subr.mxu0 0.0
        %4811 = vmatpush1.msra.mxu0 %v4793
        %4812 = vmatprep.subr.mxu0 0.0
        %4813 = vmatpush1.msra.mxu0 %v4794
        %4814 = vmatprep.subr.mxu0 0.0
        %4815 = vmatpush1.msra.mxu0 %v4795
        %4816 = vmatprep.subr.mxu0 0.0
        %4817 = vmatpush1.msra.mxu0 %v4796
        %4818 = vmatprep.subr.mxu0 0.0
        %4819 = vmatpush1.msra.mxu0 0.0
        %4820 = vmatprep.subr.mxu0 0.0
        %4821 = vmatpush1.msra.mxu0 0.0
        %4822 = vmatprep.subr.mxu0 0.0
        %4823 = vmatpush1.msra.mxu0 0.0
        %4824 = vmatprep.subr.mxu0 0.0
        %4825 = vmatpush1.msra.mxu0 0.0
        %4826 = vmatprep.subr.mxu0 0.0
        %4827 = vmatpush1.msra.mxu0 0.0
        %4828 = vmatprep.subr.mxu0 0.0
        %4829 = vmatpush1.msra.mxu0 0.0
        %4830 = vmatprep.subr.mxu0 0.0
        %4831 = vmatpush1.msra.mxu0 0.0
        %4832 = vmatprep.subr.mxu0 0.0
        %4833 = vmatpush1.msra.mxu0 0.0
        %4834 = vmatprep.subr.mxu0 0.0
        %4835 = vmatpush1.msra.mxu0 0.0
        %4836 = vmatprep.subr.mxu0 0.0
        %4837 = vmatpush1.msra.mxu0 0.0
        %4838 = vmatprep.subr.mxu0 0.0
        %4839 = vmatpush1.msra.mxu0 0.0
        %4840 = vmatprep.subr.mxu0 0.0
        %4841 = vmatpush1.msra.mxu0 0.0
        %4842 = vmatprep.subr.mxu0 0.0
        %4843 = vmatpush1.msra.mxu0 0.0
        %4844 = vmatprep.subr.mxu0 0.0
        %4845 = vmatpush1.msra.mxu0 0.0
        %4846 = vmatprep.subr.mxu0 0.0
        %4847 = vmatpush1.msra.mxu0 0.0
        %4848 = vmatprep.subr.mxu0 0.0
        %4849 = vmatpush1.msra.mxu0 0.0
        %4850 = vmatprep.subr.mxu0 0.0
        %4851 = vmatpush1.msra.mxu0 0.0
        %4852 = vmatprep.subr.mxu0 0.0
        %4853 = vmatpush1.msra.mxu0 0.0
        %4854 = vmatprep.subr.mxu0 0.0
        %4855 = vmatpush1.msra.mxu0 0.0
        %4856 = vmatprep.subr.mxu0 0.0
        %4857 = vmatpush1.msra.mxu0 0.0
        %4858 = vmatprep.subr.mxu0 0.0
        %4859 = vmatpush1.msra.mxu0 0.0
        %4860 = vmatprep.subr.mxu0 0.0
        %4861 = vmatpush1.msra.mxu0 0.0
        %4862 = vmatprep.subr.mxu0 0.0
        %4863 = vmatpush1.msra.mxu0 0.0
        %4864 = vmatprep.subr.mxu0 0.0
        %4865 = vmatpush1.msra.mxu0 0.0
        %4866 = vmatprep.subr.mxu0 0.0
        %4867 = vmatpush1.msra.mxu0 0.0
        %4868 = vmatprep.subr.mxu0 0.0
        %4869 = vmatpush1.msra.mxu0 0.0
        %4870 = vmatprep.subr.mxu0 0.0
        %4871 = vmatpush1.msra.mxu0 0.0
        %4872 = vmatprep.subr.mxu0 0.0
        %4873 = vmatpush1.msra.mxu0 0.0
        %4874 = vmatprep.mubr.f32.mxu0 0.0
        %4875 = vmatmul.mubr.f32.gmra.mrb[0].mxu0 %v4805
        %v4876 = vpop.f32.mrb[0].mxu0
        %v4877 = vadd.f32 %v4802, %v4876
        %v4878 = vpop.f32.mrb[0].mxu0
        %4879 = vmatprep.mubr.f32.mxu0 0.0
        %4880 = vmatmul.mubr.f32.gmra.mrb[0].mxu0 %v4808
        %v4881 = vpop.f32.mrb[0].mxu0
        %v4882 = vadd.f32 %v4802, %v4881
        %v4883 = vpop.f32.mrb[0].mxu0
        %4884 = vdwg.mxu0
        %4885 = vst [vmem:[%s650] sm:$0xff] %v4877
        %4886 = vst [vmem:[%s650 + $0x8] sm:$0xff] %v4882
        %s4887 = sand.u32 %s489, 1
        %s4888 = scalar_lea.sflag [#allocation3], %s4887
        %s4889 = sand.u32 %s489, 1
        %s4890 = smul.addr %s4889, 16
        %s4891 = scalar_lea.vmem [#allocation2], %s4890
        // Predicated region
        $region105: #{tpu_custom_call.1} parent=103 // pred_check
          %p4892 = pneg %p499
        $region106: #{tpu_custom_call.1} parent=103 // pred_check_branch
          %4894 = sbr.rel (%p4892) target = $region108
        $region107: #{tpu_custom_call.1} parent=103 // pred_region
          %s4895 = smul.u32 2, %s35
          %s4897 = ssub.s32 256, 256
          %4898 = vsyncadd %s4888, %s4897
          %s4899 = smul.addr %s4895, 128
          %s4900 = scalar_lea.hbm %s21, %s4899
          %s4901 = sshll.u32 %s4891, 4
          %s4902 = int_to_ptr.vmem [resolvable:$true] %s4901
          %4907 = dma.vmem_to_hbm [thread:$0]  %s4902, 256, %s4900, %s4888, 128, 128, 8
        $region108: #{tpu_custom_call.1} parent=103 // pred_fallthru
          _
      $region104: #{tpu_custom_call.1} parent=5 // pred_fallthru
        _
      %p4908 = scmp.le.s32.totalorder 2, %s30
      // Predicated region
      $region109: #{tpu_custom_call.1} parent=5 // pred_check
        %p4909 = pneg %p4908
      $region110: #{tpu_custom_call.1} parent=5 // pred_check_branch
        %4911 = sbr.rel (%p4909) target = $region112
      $region111: #{tpu_custom_call.1} parent=5 // pred_region
        %s4912 = ssub.s32 %s30, 2
        // Predicated region
        $region113: #{tpu_custom_call.1} parent=111 // pred_check
          %p4913 = pneg %p505
        $region114: #{tpu_custom_call.1} parent=111 // pred_check_branch
          %4915 = sbr.rel (%p4913) target = $region116
        $region115: #{tpu_custom_call.1} parent=111 // pred_region
          %s4916 = sand.u32 %s490, 1
          %s4917 = scalar_lea.sflag [#allocation3], %s4916
          %s4918 = sand.u32 %s490, 1
          %s4919 = smul.addr %s4918, 16
          %s4920 = scalar_lea.vmem [#allocation2], %s4919
          %4921 = dma.done %s4917, 256
        $region116: #{tpu_custom_call.1} parent=111 // pred_fallthru
          _
      $region112: #{tpu_custom_call.1} parent=5 // pred_fallthru
        _
    $region6: #{tpu_custom_call.1} parent=1 // loop_footer
      %s34 = sadd.s32 1, %s30
    $region7: #{tpu_custom_call.1} parent=1 // loop_footer_branch
      %29 = sbr.rel target = $region3
    $region8: #{tpu_custom_call.1} parent=1 // loop_exit
      _
    %4922 = vsyncpa [#allocation3], 1
    %s4923 = scalar_lea.sflag [#allocation3], 1
    %4924 = vsyncpa %s4923, 1

</llo_original>
